<compile_context>
chip_gen: v7x
topology: tpu7x:2x2x1
jax: 0.10.0
libtpu: 0.0.40
codegen_flags: <defaults>
</compile_context>

<pallas_src>
import functools

import jax
import jax.numpy as jnp
from jax.experimental import pallas as pl
from jax.experimental.pallas import tpu as pltpu


# ----------------------------- fused Pallas kernel --------------------------

def _fused_actor_critic_kernel(x_ref, wconv_ref, bconv_ref, w1_ref, b1_ref,
                               whead_ref, bhead_ref, out_ref, acc_ref, *,
                               H, W, C, TB):
    """One batch tile: conv3x3(pad1)+ReLU -> fc1+ReLU -> fused policy/value.

    x_ref     : [1, (H+2)*TB, (W+2)*C]  bf16, rows (h_pad, b), lanes (w_pad, c)
    wconv_ref : [3, (W+2)*C, W*C_out]   bf16, per-kh banded conv weights (kw folded)
    bconv_ref : [1, W*C_out]            f32, conv bias tiled over w
    w1_ref    : [H, W*C_out, HIDP]      bf16, fc1 weights, NCHW perm folded, HID padded
    b1_ref    : [1, HIDP]               f32
    whead_ref : [HIDP, NPAD]            bf16, [policy | value | zero-pad], NPAD % 128 == 0
    bhead_ref : [1, NPAD]               f32
    out_ref   : [TB, NPAD]              f32 lane-dense output slab
    acc_ref   : [H*TB, W*C_out]         f32 VMEM scratch conv accumulator
    """
    del C  # layout already folded into the banded weights
    x = x_ref[0]                            # [(H+2)*TB, (W+2)*C] bf16
    n_rows = H * TB

    # --- 3x3/pad=1 conv: 3 banded MXU dots (one per kh), f32 VMEM accumulator.
    # Each dot contracts a contiguous, sublane-aligned row window of x against
    # a [(W+2)*C, W*C_out] banded weight; result lands directly in the
    # rows=(h, b), lanes=(w, c_out) layout fc1 consumes -- no reshape/transpose.
    acc_ref[...] = jnp.dot(x[0:n_rows, :], wconv_ref[0],
                           preferred_element_type=jnp.float32)
    acc_ref[...] += jnp.dot(x[TB:TB + n_rows, :], wconv_ref[1],
                            preferred_element_type=jnp.float32)
    acc_ref[...] += jnp.dot(x[2 * TB:2 * TB + n_rows, :], wconv_ref[2],
                            preferred_element_type=jnp.float32)

    # --- fc1: contract (h, w, c_out) row-group by row-group (no reshape) -----
    hidp = b1_ref.shape[1]
    bconv = bconv_ref[...]
    h1 = jnp.broadcast_to(b1_ref[...], (TB, hidp))        # f32
    for h in range(H):
        conv_h = jnp.maximum(acc_ref[h * TB:(h + 1) * TB, :] + bconv, 0.0)
        h1 = h1 + jnp.dot(conv_h.astype(jnp.bfloat16), w1_ref[h],
                          preferred_element_type=jnp.float32)
    h1 = jnp.maximum(h1, 0.0).astype(jnp.bfloat16)         # [TB, HIDP]

    # --- fused policy + value head, 128-lane-dense unmasked stores -----------
    out_ref[...] = (jnp.dot(h1, whead_ref[...],
                            preferred_element_type=jnp.float32)
                    + bhead_ref[...])


# ----------------------------- JAX glue / wrapper ----------------------------

def _batch_tiling(batch):
    """Rows-per-grid-step (TB) and padded batch.

    TB is either the full (tiny) batch or a multiple of 8, and for batch > 8
    the grid always has >= 2 steps so both v7x TensorCores get work.  Capped
    at 128 rows/step (per-step VMEM footprint stays ~4 MiB)."""
    if batch <= 8:
        return batch, batch
    tb = min(128, 8 * ((batch + 15) // 16))
    b_pad = tb * ((batch + tb - 1) // tb)
    return tb, b_pad


def actor_critic_forward(obs_nchw, kparams, *, num_outputs):
    """obs_nchw: [B, C, H, W] float32 (PyTorch convention).
    Returns (logits [B, num_outputs], value [B]); value already matches
    value_function()'s .squeeze(1)."""
    B, C, H, W = obs_nchw.shape
    TB, b_pad = _batch_tiling(B)
    n_tiles = b_pad // TB
    h_pad, w_pad = H + 2, W + 2
    lanes_in = w_pad * C
    npad = kparams["w_head"].shape[1]
    wco = kparams["conv_b"].shape[1]                 # W * C_out

    # NCHW -> bf16 "(tile, (h_pad, b), (w_pad, c))" slab the kernel consumes
    # directly.  allow_input_fusion below lets XLA fold this relayout into the
    # kernel's input DMA where profitable.
    x = jnp.transpose(obs_nchw.astype(jnp.bfloat16), (0, 2, 3, 1))   # NHWC bf16
    x = jnp.pad(x, ((0, b_pad - B), (1, 1), (1, 1), (0, 0)))          # batch + spatial pad
    x = x.reshape(n_tiles, TB, h_pad, lanes_in)
    x = jnp.transpose(x, (0, 2, 1, 3)).reshape(n_tiles, h_pad * TB, lanes_in)

    kernel = functools.partial(_fused_actor_critic_kernel,
                               H=H, W=W, C=C, TB=TB)

    out = pl.pallas_call(
        kernel,
        out_shape=jax.ShapeDtypeStruct((b_pad, npad), jnp.float32),
        grid=(n_tiles,),
        in_specs=[
            pl.BlockSpec((1, h_pad * TB, lanes_in), lambda i: (i, 0, 0)),
            pl.BlockSpec(kparams["conv_w"].shape, lambda i: (0, 0, 0)),
            pl.BlockSpec(kparams["conv_b"].shape, lambda i: (0, 0)),
            pl.BlockSpec(kparams["w1"].shape, lambda i: (0, 0, 0)),
            pl.BlockSpec(kparams["b1"].shape, lambda i: (0, 0)),
            pl.BlockSpec(kparams["w_head"].shape, lambda i: (0, 0)),
            pl.BlockSpec(kparams["b_head"].shape, lambda i: (0, 0)),
        ],
        out_specs=pl.BlockSpec((TB, npad), lambda i: (i, 0)),
        scratch_shapes=[pltpu.VMEM((H * TB, wco), jnp.float32)],
        compiler_params=pltpu.CompilerParams(
            dimension_semantics=("parallel",),      # shard batch tiles on v7x
            allow_input_fusion=[True, False, False, False, False, False, False]),
    )(x, kparams["conv_w"], kparams["conv_b"], kparams["w1"], kparams["b1"],
      kparams["w_head"], kparams["b_head"])

    logits = out[:B, :num_outputs]
    value = out[:B, num_outputs]
    return logits, value


def prepare_params(tp, H, W, num_outputs, hid_pad=128):
    """Convert PyTorch-layout weights into the fused-kernel layout (bf16 operands).

    tp (torch layout):
      conv_w [C_out, C_in, 3, 3], conv_b [C_out]
      fc1_w  [HID, C_out*H*W]  (flatten order (c_out, h, w)), fc1_b [HID]
      pi_w   [num_outputs, HID], pi_b [num_outputs]
      v_w    [1, HID],           v_b  [1]
    """
    w_conv = tp["conv_w"].astype(jnp.float32)
    c_out, c_in, kh_sz, kw_sz = w_conv.shape
    hid = tp["fc1_w"].shape[0]

    # Per-kh banded conv weights: W_kh[(w+kw)*C + c, w*C_out + co] =
    # conv_w[co, c, kh, kw], shape [(W+2)*C_in, W*C_out].  One dot per kh.
    bands = []
    for kh in range(kh_sz):
        band = jnp.zeros(((W + 2) * c_in, W * c_out), jnp.float32)
        for kw in range(kw_sz):
            sel = jnp.eye(W + 2, W, k=-kw, dtype=jnp.float32)  # sel[w+kw, w] = 1
            band = band + jnp.kron(sel, w_conv[:, :, kh, kw].T)
        bands.append(band)
    conv_wband = jnp.stack(bands, axis=0).astype(jnp.bfloat16)   # [3, (W+2)*C, W*C_out]
    conv_b = jnp.tile(tp["conv_b"].astype(jnp.float32)[None, :], (1, W))  # [1, W*C_out]

    # fc1 with the NCHW-flatten permutation folded in: rows (h, (w, c_out)),
    # HID zero-padded to 128 so the fc1 output is lane-dense.
    w1r = tp["fc1_w"].astype(jnp.float32).reshape(hid, c_out, H, W)
    w1r = w1r.transpose(2, 3, 1, 0).reshape(H, W * c_out, hid)    # [H, W*C_out, HID]
    w1p = jnp.zeros((H, W * c_out, hid_pad), jnp.float32).at[:, :, :hid].set(w1r)
    b1p = jnp.zeros((1, hid_pad), jnp.float32).at[0, :hid].set(tp["fc1_b"])

    # Fused, lane-dense (>=128-wide) policy+value head; value is column
    # `num_outputs`, remaining lanes / rows >= HID are zero padding.
    n_head = num_outputs + 1
    npad = max(128, ((n_head + 127) // 128) * 128)
    w_head = jnp.zeros((hid_pad, npad), jnp.float32)
    w_head = w_head.at[:hid, :num_outputs].set(tp["pi_w"].T)
    w_head = w_head.at[:hid, num_outputs].set(tp["v_w"][0])
    b_head = jnp.zeros((1, npad), jnp.float32)
    b_head = b_head.at[0, :num_outputs].set(tp["pi_b"])
    b_head = b_head.at[0, num_outputs].set(tp["v_b"][0])

    return {"conv_w": conv_wband, "conv_b": conv_b,
            "w1": w1p.astype(jnp.bfloat16), "b1": b1p,
            "w_head": w_head.astype(jnp.bfloat16), "b_head": b_head}


def init_torch_params(key, c_in, h, w, num_outputs, c_out=16, hidden=64):
    ks = jax.random.split(key, 8)
    s = 0.1
    return {
        "conv_w": s * jax.random.normal(ks[0], (c_out, c_in, 3, 3), jnp.float32),
        "conv_b": s * jax.random.normal(ks[1], (c_out,), jnp.float32),
        "fc1_w": s * jax.random.normal(ks[2], (hidden, c_out * h * w), jnp.float32),
        "fc1_b": s * jax.random.normal(ks[3], (hidden,), jnp.float32),
        "pi_w": s * jax.random.normal(ks[4], (num_outputs, hidden), jnp.float32),
        "pi_b": s * jax.random.normal(ks[5], (num_outputs,), jnp.float32),
        "v_w": s * jax.random.normal(ks[6], (1, hidden), jnp.float32),
        "v_b": s * jax.random.normal(ks[7], (1,), jnp.float32),
    }


def reference_forward(obs_nchw, tp):
    """Pure-JAX f32 reference with PyTorch-layout params (correctness check)."""
    x = obs_nchw.astype(jnp.float32)
    conv = jax.lax.conv_general_dilated(
        x, tp["conv_w"], window_strides=(1, 1), padding=((1, 1), (1, 1)),
        dimension_numbers=("NCHW", "OIHW", "NCHW"),
        precision=jax.lax.Precision.HIGHEST)
    conv = jnp.maximum(conv + tp["conv_b"][None, :, None, None], 0.0)
    feat = conv.reshape(conv.shape[0], -1)                     # NCHW flatten
    h1 = jnp.maximum(
        jnp.dot(feat, tp["fc1_w"].T, precision=jax.lax.Precision.HIGHEST)
        + tp["fc1_b"], 0.0)
    logits = jnp.dot(h1, tp["pi_w"].T,
                     precision=jax.lax.Precision.HIGHEST) + tp["pi_b"]
    value = jnp.dot(h1, tp["v_w"].T,
                    precision=jax.lax.Precision.HIGHEST) + tp["v_b"]
    return logits, value[:, 0]


if __name__ == "__main__":
    key = jax.random.PRNGKey(0)
    k_obs, k_par, k_obs2 = jax.random.split(key, 3)

    B, C, H, W = 2, 4, 16, 16
    NUM_OUTPUTS = 6

    obs = jax.random.normal(k_obs, (B, C, H, W), jnp.float32)   # NCHW like torch
    torch_params = init_torch_params(k_par, C, H, W, NUM_OUTPUTS)
    kernel_params = prepare_params(torch_params, H, W, NUM_OUTPUTS)

    fwd = jax.jit(functools.partial(actor_critic_forward,
                                    num_outputs=NUM_OUTPUTS))
    logits, value = fwd(obs, kernel_params)
    jax.block_until_ready((logits, value))

    assert logits.shape == (B, NUM_OUTPUTS), logits.shape
    assert value.shape == (B,), value.shape

    # bf16 operands (f32 accumulation) vs f32 reference -> relaxed tolerance.
    ref_logits, ref_value = reference_forward(obs, torch_params)
    assert jnp.allclose(logits, ref_logits, rtol=5e-2, atol=5e-2), \
        "logits mismatch vs reference"
    assert jnp.allclose(value, ref_value, rtol=5e-2, atol=5e-2), \
        "value mismatch vs reference"

    # Also exercise the multi-tile grid path (B=16 -> TB=8, 2 grid steps).
    obs2 = jax.random.normal(k_obs2, (16, C, H, W), jnp.float32)
    logits2, value2 = fwd(obs2, kernel_params)
    jax.block_until_ready((logits2, value2))
    ref_logits2, ref_value2 = reference_forward(obs2, torch_params)
    assert jnp.allclose(logits2, ref_logits2, rtol=5e-2, atol=5e-2), \
        "logits mismatch vs reference (multi-tile)"
    assert jnp.allclose(value2, ref_value2, rtol=5e-2, atol=5e-2), \
        "value mismatch vs reference (multi-tile)"

    print("KERNEL_OK")
</pallas_src>

<mosaic_0001>
module attributes {stable_mosaic.version = 11 : i64} {
  func.func @_fused_actor_critic_kernel(%arg0: i32, %arg1: memref<1x36x72xbf16, #tpu.memory_space<vmem>>, %arg2: memref<3x72x256xbf16, #tpu.memory_space<vmem>>, %arg3: memref<1x256xf32, #tpu.memory_space<vmem>>, %arg4: memref<16x256x128xbf16, #tpu.memory_space<vmem>>, %arg5: memref<1x128xf32, #tpu.memory_space<vmem>>, %arg6: memref<128x128xbf16, #tpu.memory_space<vmem>>, %arg7: memref<1x128xf32, #tpu.memory_space<vmem>>, %arg8: memref<2x128xf32, #tpu.memory_space<vmem>>, %arg9: memref<32x256xf32, #tpu.memory_space<vmem>>) attributes {dimension_semantics = [#tpu.dimension_semantics<parallel>], iteration_bounds = array<i64: 1>, scalar_prefetch = 0 : i64, scratch_operands = 1 : i64, tpu.core_type = #tpu.core_type<tc>, window_params = [{transform_indices = @transform_0, window_bounds = array<i64: 1, 36, 72>}, {pipeline_mode = #tpu.pipeline_mode<synchronous>, transform_indices = @transform_1, window_bounds = array<i64: 3, 72, 256>}, {pipeline_mode = #tpu.pipeline_mode<synchronous>, transform_indices = @transform_2, window_bounds = array<i64: 1, 256>}, {pipeline_mode = #tpu.pipeline_mode<synchronous>, transform_indices = @transform_3, window_bounds = array<i64: 16, 256, 128>}, {pipeline_mode = #tpu.pipeline_mode<synchronous>, transform_indices = @transform_4, window_bounds = array<i64: 1, 128>}, {pipeline_mode = #tpu.pipeline_mode<synchronous>, transform_indices = @transform_5, window_bounds = array<i64: 128, 128>}, {pipeline_mode = #tpu.pipeline_mode<synchronous>, transform_indices = @transform_6, window_bounds = array<i64: 1, 128>}, {transform_indices = @transform_7, window_bounds = array<i64: 2, 128>}]} {
    %c0 = arith.constant 0 : index
    %c0_0 = arith.constant 0 : index
    %c0_1 = arith.constant 0 : index
    %0 = vector.load %arg1[%c0, %c0_0, %c0_1] : memref<1x36x72xbf16, #tpu.memory_space<vmem>>, vector<1x36x72xbf16>
    %1 = vector.shape_cast %0 : vector<1x36x72xbf16> to vector<36x72xbf16>
    %2 = vector.extract_strided_slice %1 {offsets = [0, 0], sizes = [32, 72], strides = [1, 1]} : vector<36x72xbf16> to vector<32x72xbf16>
    %c0_2 = arith.constant 0 : index
    %c0_3 = arith.constant 0 : index
    %c0_4 = arith.constant 0 : index
    %3 = vector.load %arg2[%c0_2, %c0_3, %c0_4] : memref<3x72x256xbf16, #tpu.memory_space<vmem>>, vector<1x72x256xbf16>
    %4 = vector.shape_cast %3 : vector<1x72x256xbf16> to vector<72x256xbf16>
    %cst = arith.constant dense<0.000000e+00> : vector<32x256xf32>
    %5 = tpu.matmul %2, %4, %cst {dimension_numbers = #tpu.dot_dimension_numbers<[1], [0], [0], [1], [0, 0, 1, 1], [], []>} : vector<32x72xbf16>, vector<72x256xbf16>, vector<32x256xf32> -> vector<32x256xf32>
    %c0_5 = arith.constant 0 : index
    %c0_6 = arith.constant 0 : index
    %6 = vector.load %arg9[%c0_5, %c0_6] : memref<32x256xf32, #tpu.memory_space<vmem>>, vector<32x256xf32>
    tpu.vector_store %arg9[%c0_5, %c0_6], %5 {strides = array<i32>} : memref<32x256xf32, #tpu.memory_space<vmem>>, vector<32x256xf32>,
    %c0_7 = arith.constant 0 : index
    %c0_8 = arith.constant 0 : index
    %7 = vector.load %arg9[%c0_7, %c0_8] : memref<32x256xf32, #tpu.memory_space<vmem>>, vector<32x256xf32>
    %8 = vector.extract_strided_slice %1 {offsets = [2, 0], sizes = [32, 72], strides = [1, 1]} : vector<36x72xbf16> to vector<32x72xbf16>
    %c1 = arith.constant 1 : index
    %c0_9 = arith.constant 0 : index
    %c0_10 = arith.constant 0 : index
    %9 = vector.load %arg2[%c1, %c0_9, %c0_10] : memref<3x72x256xbf16, #tpu.memory_space<vmem>>, vector<1x72x256xbf16>
    %10 = vector.shape_cast %9 : vector<1x72x256xbf16> to vector<72x256xbf16>
    %cst_11 = arith.constant dense<0.000000e+00> : vector<32x256xf32>
    %11 = tpu.matmul %8, %10, %cst_11 {dimension_numbers = #tpu.dot_dimension_numbers<[1], [0], [0], [1], [0, 0, 1, 1], [], []>} : vector<32x72xbf16>, vector<72x256xbf16>, vector<32x256xf32> -> vector<32x256xf32>
    %12 = arith.addf %7, %11 : vector<32x256xf32>
    %c0_12 = arith.constant 0 : index
    %c0_13 = arith.constant 0 : index
    %13 = vector.load %arg9[%c0_12, %c0_13] : memref<32x256xf32, #tpu.memory_space<vmem>>, vector<32x256xf32>
    tpu.vector_store %arg9[%c0_12, %c0_13], %12 {strides = array<i32>} : memref<32x256xf32, #tpu.memory_space<vmem>>, vector<32x256xf32>,
    %c0_14 = arith.constant 0 : index
    %c0_15 = arith.constant 0 : index
    %14 = vector.load %arg9[%c0_14, %c0_15] : memref<32x256xf32, #tpu.memory_space<vmem>>, vector<32x256xf32>
    %15 = vector.extract_strided_slice %1 {offsets = [4, 0], sizes = [32, 72], strides = [1, 1]} : vector<36x72xbf16> to vector<32x72xbf16>
    %c2 = arith.constant 2 : index
    %c0_16 = arith.constant 0 : index
    %c0_17 = arith.constant 0 : index
    %16 = vector.load %arg2[%c2, %c0_16, %c0_17] : memref<3x72x256xbf16, #tpu.memory_space<vmem>>, vector<1x72x256xbf16>
    %17 = vector.shape_cast %16 : vector<1x72x256xbf16> to vector<72x256xbf16>
    %cst_18 = arith.constant dense<0.000000e+00> : vector<32x256xf32>
    %18 = tpu.matmul %15, %17, %cst_18 {dimension_numbers = #tpu.dot_dimension_numbers<[1], [0], [0], [1], [0, 0, 1, 1], [], []>} : vector<32x72xbf16>, vector<72x256xbf16>, vector<32x256xf32> -> vector<32x256xf32>
    %19 = arith.addf %14, %18 : vector<32x256xf32>
    %c0_19 = arith.constant 0 : index
    %c0_20 = arith.constant 0 : index
    %20 = vector.load %arg9[%c0_19, %c0_20] : memref<32x256xf32, #tpu.memory_space<vmem>>, vector<32x256xf32>
    tpu.vector_store %arg9[%c0_19, %c0_20], %19 {strides = array<i32>} : memref<32x256xf32, #tpu.memory_space<vmem>>, vector<32x256xf32>,
    %c0_21 = arith.constant 0 : index
    %c0_22 = arith.constant 0 : index
    %21 = vector.load %arg3[%c0_21, %c0_22] : memref<1x256xf32, #tpu.memory_space<vmem>>, vector<1x256xf32>
    %c0_23 = arith.constant 0 : index
    %c0_24 = arith.constant 0 : index
    %22 = vector.load %arg5[%c0_23, %c0_24] : memref<1x128xf32, #tpu.memory_space<vmem>>, vector<1x128xf32>
    %23 = vector.shape_cast %22 : vector<1x128xf32> to vector<1x128xf32>
    %24 = vector.broadcast %23 : vector<1x128xf32> to vector<2x128xf32>
    %c0_25 = arith.constant 0 : index
    %c0_26 = arith.constant 0 : index
    %25 = vector.load %arg9[%c0_25, %c0_26] : memref<32x256xf32, #tpu.memory_space<vmem>>, vector<2x256xf32>
    %26 = vector.broadcast %21 : vector<1x256xf32> to vector<2x256xf32>
    %27 = arith.addf %25, %26 : vector<2x256xf32>
    %cst_27 = arith.constant 0.000000e+00 : f32
    %28 = vector.broadcast %cst_27 : f32 to vector<2x256xf32>
    %29 = arith.maximumf %27, %28 : vector<2x256xf32>
    %30 = arith.truncf %29 : vector<2x256xf32> to vector<2x256xbf16>
    %c0_28 = arith.constant 0 : index
    %c0_29 = arith.constant 0 : index
    %c0_30 = arith.constant 0 : index
    %31 = vector.load %arg4[%c0_28, %c0_29, %c0_30] : memref<16x256x128xbf16, #tpu.memory_space<vmem>>, vector<1x256x128xbf16>
    %32 = vector.shape_cast %31 : vector<1x256x128xbf16> to vector<256x128xbf16>
    %cst_31 = arith.constant dense<0.000000e+00> : vector<2x128xf32>
    %33 = tpu.matmul %30, %32, %cst_31 {dimension_numbers = #tpu.dot_dimension_numbers<[1], [0], [0], [1], [0, 0, 1, 1], [], []>} : vector<2x256xbf16>, vector<256x128xbf16>, vector<2x128xf32> -> vector<2x128xf32>
    %34 = arith.addf %24, %33 : vector<2x128xf32>
    %c2_32 = arith.constant 2 : index
    %c0_33 = arith.constant 0 : index
    %35 = vector.load %arg9[%c2_32, %c0_33] : memref<32x256xf32, #tpu.memory_space<vmem>>, vector<2x256xf32>
    %36 = vector.broadcast %21 : vector<1x256xf32> to vector<2x256xf32>
    %37 = arith.addf %35, %36 : vector<2x256xf32>
    %cst_34 = arith.constant 0.000000e+00 : f32
    %38 = vector.broadcast %cst_34 : f32 to vector<2x256xf32>
    %39 = arith.maximumf %37, %38 : vector<2x256xf32>
    %40 = arith.truncf %39 : vector<2x256xf32> to vector<2x256xbf16>
    %c1_35 = arith.constant 1 : index
    %c0_36 = arith.constant 0 : index
    %c0_37 = arith.constant 0 : index
    %41 = vector.load %arg4[%c1_35, %c0_36, %c0_37] : memref<16x256x128xbf16, #tpu.memory_space<vmem>>, vector<1x256x128xbf16>
    %42 = vector.shape_cast %41 : vector<1x256x128xbf16> to vector<256x128xbf16>
    %cst_38 = arith.constant dense<0.000000e+00> : vector<2x128xf32>
    %43 = tpu.matmul %40, %42, %cst_38 {dimension_numbers = #tpu.dot_dimension_numbers<[1], [0], [0], [1], [0, 0, 1, 1], [], []>} : vector<2x256xbf16>, vector<256x128xbf16>, vector<2x128xf32> -> vector<2x128xf32>
    %44 = arith.addf %34, %43 : vector<2x128xf32>
    %c4 = arith.constant 4 : index
    %c0_39 = arith.constant 0 : index
    %45 = vector.load %arg9[%c4, %c0_39] : memref<32x256xf32, #tpu.memory_space<vmem>>, vector<2x256xf32>
    %46 = vector.broadcast %21 : vector<1x256xf32> to vector<2x256xf32>
    %47 = arith.addf %45, %46 : vector<2x256xf32>
    %cst_40 = arith.constant 0.000000e+00 : f32
    %48 = vector.broadcast %cst_40 : f32 to vector<2x256xf32>
    %49 = arith.maximumf %47, %48 : vector<2x256xf32>
    %50 = arith.truncf %49 : vector<2x256xf32> to vector<2x256xbf16>
    %c2_41 = arith.constant 2 : index
    %c0_42 = arith.constant 0 : index
    %c0_43 = arith.constant 0 : index
    %51 = vector.load %arg4[%c2_41, %c0_42, %c0_43] : memref<16x256x128xbf16, #tpu.memory_space<vmem>>, vector<1x256x128xbf16>
    %52 = vector.shape_cast %51 : vector<1x256x128xbf16> to vector<256x128xbf16>
    %cst_44 = arith.constant dense<0.000000e+00> : vector<2x128xf32>
    %53 = tpu.matmul %50, %52, %cst_44 {dimension_numbers = #tpu.dot_dimension_numbers<[1], [0], [0], [1], [0, 0, 1, 1], [], []>} : vector<2x256xbf16>, vector<256x128xbf16>, vector<2x128xf32> -> vector<2x128xf32>
    %54 = arith.addf %44, %53 : vector<2x128xf32>
    %c6 = arith.constant 6 : index
    %c0_45 = arith.constant 0 : index
    %55 = vector.load %arg9[%c6, %c0_45] : memref<32x256xf32, #tpu.memory_space<vmem>>, vector<2x256xf32>
    %56 = vector.broadcast %21 : vector<1x256xf32> to vector<2x256xf32>
    %57 = arith.addf %55, %56 : vector<2x256xf32>
    %cst_46 = arith.constant 0.000000e+00 : f32
    %58 = vector.broadcast %cst_46 : f32 to vector<2x256xf32>
    %59 = arith.maximumf %57, %58 : vector<2x256xf32>
    %60 = arith.truncf %59 : vector<2x256xf32> to vector<2x256xbf16>
    %c3 = arith.constant 3 : index
    %c0_47 = arith.constant 0 : index
    %c0_48 = arith.constant 0 : index
    %61 = vector.load %arg4[%c3, %c0_47, %c0_48] : memref<16x256x128xbf16, #tpu.memory_space<vmem>>, vector<1x256x128xbf16>
    %62 = vector.shape_cast %61 : vector<1x256x128xbf16> to vector<256x128xbf16>
    %cst_49 = arith.constant dense<0.000000e+00> : vector<2x128xf32>
    %63 = tpu.matmul %60, %62, %cst_49 {dimension_numbers = #tpu.dot_dimension_numbers<[1], [0], [0], [1], [0, 0, 1, 1], [], []>} : vector<2x256xbf16>, vector<256x128xbf16>, vector<2x128xf32> -> vector<2x128xf32>
    %64 = arith.addf %54, %63 : vector<2x128xf32>
    %c8 = arith.constant 8 : index
    %c0_50 = arith.constant 0 : index
    %65 = vector.load %arg9[%c8, %c0_50] : memref<32x256xf32, #tpu.memory_space<vmem>>, vector<2x256xf32>
    %66 = vector.broadcast %21 : vector<1x256xf32> to vector<2x256xf32>
    %67 = arith.addf %65, %66 : vector<2x256xf32>
    %cst_51 = arith.constant 0.000000e+00 : f32
    %68 = vector.broadcast %cst_51 : f32 to vector<2x256xf32>
    %69 = arith.maximumf %67, %68 : vector<2x256xf32>
    %70 = arith.truncf %69 : vector<2x256xf32> to vector<2x256xbf16>
    %c4_52 = arith.constant 4 : index
    %c0_53 = arith.constant 0 : index
    %c0_54 = arith.constant 0 : index
    %71 = vector.load %arg4[%c4_52, %c0_53, %c0_54] : memref<16x256x128xbf16, #tpu.memory_space<vmem>>, vector<1x256x128xbf16>
    %72 = vector.shape_cast %71 : vector<1x256x128xbf16> to vector<256x128xbf16>
    %cst_55 = arith.constant dense<0.000000e+00> : vector<2x128xf32>
    %73 = tpu.matmul %70, %72, %cst_55 {dimension_numbers = #tpu.dot_dimension_numbers<[1], [0], [0], [1], [0, 0, 1, 1], [], []>} : vector<2x256xbf16>, vector<256x128xbf16>, vector<2x128xf32> -> vector<2x128xf32>
    %74 = arith.addf %64, %73 : vector<2x128xf32>
    %c10 = arith.constant 10 : index
    %c0_56 = arith.constant 0 : index
    %75 = vector.load %arg9[%c10, %c0_56] : memref<32x256xf32, #tpu.memory_space<vmem>>, vector<2x256xf32>
    %76 = vector.broadcast %21 : vector<1x256xf32> to vector<2x256xf32>
    %77 = arith.addf %75, %76 : vector<2x256xf32>
    %cst_57 = arith.constant 0.000000e+00 : f32
    %78 = vector.broadcast %cst_57 : f32 to vector<2x256xf32>
    %79 = arith.maximumf %77, %78 : vector<2x256xf32>
    %80 = arith.truncf %79 : vector<2x256xf32> to vector<2x256xbf16>
    %c5 = arith.constant 5 : index
    %c0_58 = arith.constant 0 : index
    %c0_59 = arith.constant 0 : index
    %81 = vector.load %arg4[%c5, %c0_58, %c0_59] : memref<16x256x128xbf16, #tpu.memory_space<vmem>>, vector<1x256x128xbf16>
    %82 = vector.shape_cast %81 : vector<1x256x128xbf16> to vector<256x128xbf16>
    %cst_60 = arith.constant dense<0.000000e+00> : vector<2x128xf32>
    %83 = tpu.matmul %80, %82, %cst_60 {dimension_numbers = #tpu.dot_dimension_numbers<[1], [0], [0], [1], [0, 0, 1, 1], [], []>} : vector<2x256xbf16>, vector<256x128xbf16>, vector<2x128xf32> -> vector<2x128xf32>
    %84 = arith.addf %74, %83 : vector<2x128xf32>
    %c12 = arith.constant 12 : index
    %c0_61 = arith.constant 0 : index
    %85 = vector.load %arg9[%c12, %c0_61] : memref<32x256xf32, #tpu.memory_space<vmem>>, vector<2x256xf32>
    %86 = vector.broadcast %21 : vector<1x256xf32> to vector<2x256xf32>
    %87 = arith.addf %85, %86 : vector<2x256xf32>
    %cst_62 = arith.constant 0.000000e+00 : f32
    %88 = vector.broadcast %cst_62 : f32 to vector<2x256xf32>
    %89 = arith.maximumf %87, %88 : vector<2x256xf32>
    %90 = arith.truncf %89 : vector<2x256xf32> to vector<2x256xbf16>
    %c6_63 = arith.constant 6 : index
    %c0_64 = arith.constant 0 : index
    %c0_65 = arith.constant 0 : index
    %91 = vector.load %arg4[%c6_63, %c0_64, %c0_65] : memref<16x256x128xbf16, #tpu.memory_space<vmem>>, vector<1x256x128xbf16>
    %92 = vector.shape_cast %91 : vector<1x256x128xbf16> to vector<256x128xbf16>
    %cst_66 = arith.constant dense<0.000000e+00> : vector<2x128xf32>
    %93 = tpu.matmul %90, %92, %cst_66 {dimension_numbers = #tpu.dot_dimension_numbers<[1], [0], [0], [1], [0, 0, 1, 1], [], []>} : vector<2x256xbf16>, vector<256x128xbf16>, vector<2x128xf32> -> vector<2x128xf32>
    %94 = arith.addf %84, %93 : vector<2x128xf32>
    %c14 = arith.constant 14 : index
    %c0_67 = arith.constant 0 : index
    %95 = vector.load %arg9[%c14, %c0_67] : memref<32x256xf32, #tpu.memory_space<vmem>>, vector<2x256xf32>
    %96 = vector.broadcast %21 : vector<1x256xf32> to vector<2x256xf32>
    %97 = arith.addf %95, %96 : vector<2x256xf32>
    %cst_68 = arith.constant 0.000000e+00 : f32
    %98 = vector.broadcast %cst_68 : f32 to vector<2x256xf32>
    %99 = arith.maximumf %97, %98 : vector<2x256xf32>
    %100 = arith.truncf %99 : vector<2x256xf32> to vector<2x256xbf16>
    %c7 = arith.constant 7 : index
    %c0_69 = arith.constant 0 : index
    %c0_70 = arith.constant 0 : index
    %101 = vector.load %arg4[%c7, %c0_69, %c0_70] : memref<16x256x128xbf16, #tpu.memory_space<vmem>>, vector<1x256x128xbf16>
    %102 = vector.shape_cast %101 : vector<1x256x128xbf16> to vector<256x128xbf16>
    %cst_71 = arith.constant dense<0.000000e+00> : vector<2x128xf32>
    %103 = tpu.matmul %100, %102, %cst_71 {dimension_numbers = #tpu.dot_dimension_numbers<[1], [0], [0], [1], [0, 0, 1, 1], [], []>} : vector<2x256xbf16>, vector<256x128xbf16>, vector<2x128xf32> -> vector<2x128xf32>
    %104 = arith.addf %94, %103 : vector<2x128xf32>
    %c16 = arith.constant 16 : index
    %c0_72 = arith.constant 0 : index
    %105 = vector.load %arg9[%c16, %c0_72] : memref<32x256xf32, #tpu.memory_space<vmem>>, vector<2x256xf32>
    %106 = vector.broadcast %21 : vector<1x256xf32> to vector<2x256xf32>
    %107 = arith.addf %105, %106 : vector<2x256xf32>
    %cst_73 = arith.constant 0.000000e+00 : f32
    %108 = vector.broadcast %cst_73 : f32 to vector<2x256xf32>
    %109 = arith.maximumf %107, %108 : vector<2x256xf32>
    %110 = arith.truncf %109 : vector<2x256xf32> to vector<2x256xbf16>
    %c8_74 = arith.constant 8 : index
    %c0_75 = arith.constant 0 : index
    %c0_76 = arith.constant 0 : index
    %111 = vector.load %arg4[%c8_74, %c0_75, %c0_76] : memref<16x256x128xbf16, #tpu.memory_space<vmem>>, vector<1x256x128xbf16>
    %112 = vector.shape_cast %111 : vector<1x256x128xbf16> to vector<256x128xbf16>
    %cst_77 = arith.constant dense<0.000000e+00> : vector<2x128xf32>
    %113 = tpu.matmul %110, %112, %cst_77 {dimension_numbers = #tpu.dot_dimension_numbers<[1], [0], [0], [1], [0, 0, 1, 1], [], []>} : vector<2x256xbf16>, vector<256x128xbf16>, vector<2x128xf32> -> vector<2x128xf32>
    %114 = arith.addf %104, %113 : vector<2x128xf32>
    %c18 = arith.constant 18 : index
    %c0_78 = arith.constant 0 : index
    %115 = vector.load %arg9[%c18, %c0_78] : memref<32x256xf32, #tpu.memory_space<vmem>>, vector<2x256xf32>
    %116 = vector.broadcast %21 : vector<1x256xf32> to vector<2x256xf32>
    %117 = arith.addf %115, %116 : vector<2x256xf32>
    %cst_79 = arith.constant 0.000000e+00 : f32
    %118 = vector.broadcast %cst_79 : f32 to vector<2x256xf32>
    %119 = arith.maximumf %117, %118 : vector<2x256xf32>
    %120 = arith.truncf %119 : vector<2x256xf32> to vector<2x256xbf16>
    %c9 = arith.constant 9 : index
    %c0_80 = arith.constant 0 : index
    %c0_81 = arith.constant 0 : index
    %121 = vector.load %arg4[%c9, %c0_80, %c0_81] : memref<16x256x128xbf16, #tpu.memory_space<vmem>>, vector<1x256x128xbf16>
    %122 = vector.shape_cast %121 : vector<1x256x128xbf16> to vector<256x128xbf16>
    %cst_82 = arith.constant dense<0.000000e+00> : vector<2x128xf32>
    %123 = tpu.matmul %120, %122, %cst_82 {dimension_numbers = #tpu.dot_dimension_numbers<[1], [0], [0], [1], [0, 0, 1, 1], [], []>} : vector<2x256xbf16>, vector<256x128xbf16>, vector<2x128xf32> -> vector<2x128xf32>
    %124 = arith.addf %114, %123 : vector<2x128xf32>
    %c20 = arith.constant 20 : index
    %c0_83 = arith.constant 0 : index
    %125 = vector.load %arg9[%c20, %c0_83] : memref<32x256xf32, #tpu.memory_space<vmem>>, vector<2x256xf32>
    %126 = vector.broadcast %21 : vector<1x256xf32> to vector<2x256xf32>
    %127 = arith.addf %125, %126 : vector<2x256xf32>
    %cst_84 = arith.constant 0.000000e+00 : f32
    %128 = vector.broadcast %cst_84 : f32 to vector<2x256xf32>
    %129 = arith.maximumf %127, %128 : vector<2x256xf32>
    %130 = arith.truncf %129 : vector<2x256xf32> to vector<2x256xbf16>
    %c10_85 = arith.constant 10 : index
    %c0_86 = arith.constant 0 : index
    %c0_87 = arith.constant 0 : index
    %131 = vector.load %arg4[%c10_85, %c0_86, %c0_87] : memref<16x256x128xbf16, #tpu.memory_space<vmem>>, vector<1x256x128xbf16>
    %132 = vector.shape_cast %131 : vector<1x256x128xbf16> to vector<256x128xbf16>
    %cst_88 = arith.constant dense<0.000000e+00> : vector<2x128xf32>
    %133 = tpu.matmul %130, %132, %cst_88 {dimension_numbers = #tpu.dot_dimension_numbers<[1], [0], [0], [1], [0, 0, 1, 1], [], []>} : vector<2x256xbf16>, vector<256x128xbf16>, vector<2x128xf32> -> vector<2x128xf32>
    %134 = arith.addf %124, %133 : vector<2x128xf32>
    %c22 = arith.constant 22 : index
    %c0_89 = arith.constant 0 : index
    %135 = vector.load %arg9[%c22, %c0_89] : memref<32x256xf32, #tpu.memory_space<vmem>>, vector<2x256xf32>
    %136 = vector.broadcast %21 : vector<1x256xf32> to vector<2x256xf32>
    %137 = arith.addf %135, %136 : vector<2x256xf32>
    %cst_90 = arith.constant 0.000000e+00 : f32
    %138 = vector.broadcast %cst_90 : f32 to vector<2x256xf32>
    %139 = arith.maximumf %137, %138 : vector<2x256xf32>
    %140 = arith.truncf %139 : vector<2x256xf32> to vector<2x256xbf16>
    %c11 = arith.constant 11 : index
    %c0_91 = arith.constant 0 : index
    %c0_92 = arith.constant 0 : index
    %141 = vector.load %arg4[%c11, %c0_91, %c0_92] : memref<16x256x128xbf16, #tpu.memory_space<vmem>>, vector<1x256x128xbf16>
    %142 = vector.shape_cast %141 : vector<1x256x128xbf16> to vector<256x128xbf16>
    %cst_93 = arith.constant dense<0.000000e+00> : vector<2x128xf32>
    %143 = tpu.matmul %140, %142, %cst_93 {dimension_numbers = #tpu.dot_dimension_numbers<[1], [0], [0], [1], [0, 0, 1, 1], [], []>} : vector<2x256xbf16>, vector<256x128xbf16>, vector<2x128xf32> -> vector<2x128xf32>
    %144 = arith.addf %134, %143 : vector<2x128xf32>
    %c24 = arith.constant 24 : index
    %c0_94 = arith.constant 0 : index
    %145 = vector.load %arg9[%c24, %c0_94] : memref<32x256xf32, #tpu.memory_space<vmem>>, vector<2x256xf32>
    %146 = vector.broadcast %21 : vector<1x256xf32> to vector<2x256xf32>
    %147 = arith.addf %145, %146 : vector<2x256xf32>
    %cst_95 = arith.constant 0.000000e+00 : f32
    %148 = vector.broadcast %cst_95 : f32 to vector<2x256xf32>
    %149 = arith.maximumf %147, %148 : vector<2x256xf32>
    %150 = arith.truncf %149 : vector<2x256xf32> to vector<2x256xbf16>
    %c12_96 = arith.constant 12 : index
    %c0_97 = arith.constant 0 : index
    %c0_98 = arith.constant 0 : index
    %151 = vector.load %arg4[%c12_96, %c0_97, %c0_98] : memref<16x256x128xbf16, #tpu.memory_space<vmem>>, vector<1x256x128xbf16>
    %152 = vector.shape_cast %151 : vector<1x256x128xbf16> to vector<256x128xbf16>
    %cst_99 = arith.constant dense<0.000000e+00> : vector<2x128xf32>
    %153 = tpu.matmul %150, %152, %cst_99 {dimension_numbers = #tpu.dot_dimension_numbers<[1], [0], [0], [1], [0, 0, 1, 1], [], []>} : vector<2x256xbf16>, vector<256x128xbf16>, vector<2x128xf32> -> vector<2x128xf32>
    %154 = arith.addf %144, %153 : vector<2x128xf32>
    %c26 = arith.constant 26 : index
    %c0_100 = arith.constant 0 : index
    %155 = vector.load %arg9[%c26, %c0_100] : memref<32x256xf32, #tpu.memory_space<vmem>>, vector<2x256xf32>
    %156 = vector.broadcast %21 : vector<1x256xf32> to vector<2x256xf32>
    %157 = arith.addf %155, %156 : vector<2x256xf32>
    %cst_101 = arith.constant 0.000000e+00 : f32
    %158 = vector.broadcast %cst_101 : f32 to vector<2x256xf32>
    %159 = arith.maximumf %157, %158 : vector<2x256xf32>
    %160 = arith.truncf %159 : vector<2x256xf32> to vector<2x256xbf16>
    %c13 = arith.constant 13 : index
    %c0_102 = arith.constant 0 : index
    %c0_103 = arith.constant 0 : index
    %161 = vector.load %arg4[%c13, %c0_102, %c0_103] : memref<16x256x128xbf16, #tpu.memory_space<vmem>>, vector<1x256x128xbf16>
    %162 = vector.shape_cast %161 : vector<1x256x128xbf16> to vector<256x128xbf16>
    %cst_104 = arith.constant dense<0.000000e+00> : vector<2x128xf32>
    %163 = tpu.matmul %160, %162, %cst_104 {dimension_numbers = #tpu.dot_dimension_numbers<[1], [0], [0], [1], [0, 0, 1, 1], [], []>} : vector<2x256xbf16>, vector<256x128xbf16>, vector<2x128xf32> -> vector<2x128xf32>
    %164 = arith.addf %154, %163 : vector<2x128xf32>
    %c28 = arith.constant 28 : index
    %c0_105 = arith.constant 0 : index
    %165 = vector.load %arg9[%c28, %c0_105] : memref<32x256xf32, #tpu.memory_space<vmem>>, vector<2x256xf32>
    %166 = vector.broadcast %21 : vector<1x256xf32> to vector<2x256xf32>
    %167 = arith.addf %165, %166 : vector<2x256xf32>
    %cst_106 = arith.constant 0.000000e+00 : f32
    %168 = vector.broadcast %cst_106 : f32 to vector<2x256xf32>
    %169 = arith.maximumf %167, %168 : vector<2x256xf32>
    %170 = arith.truncf %169 : vector<2x256xf32> to vector<2x256xbf16>
    %c14_107 = arith.constant 14 : index
    %c0_108 = arith.constant 0 : index
    %c0_109 = arith.constant 0 : index
    %171 = vector.load %arg4[%c14_107, %c0_108, %c0_109] : memref<16x256x128xbf16, #tpu.memory_space<vmem>>, vector<1x256x128xbf16>
    %172 = vector.shape_cast %171 : vector<1x256x128xbf16> to vector<256x128xbf16>
    %cst_110 = arith.constant dense<0.000000e+00> : vector<2x128xf32>
    %173 = tpu.matmul %170, %172, %cst_110 {dimension_numbers = #tpu.dot_dimension_numbers<[1], [0], [0], [1], [0, 0, 1, 1], [], []>} : vector<2x256xbf16>, vector<256x128xbf16>, vector<2x128xf32> -> vector<2x128xf32>
    %174 = arith.addf %164, %173 : vector<2x128xf32>
    %c30 = arith.constant 30 : index
    %c0_111 = arith.constant 0 : index
    %175 = vector.load %arg9[%c30, %c0_111] : memref<32x256xf32, #tpu.memory_space<vmem>>, vector<2x256xf32>
    %176 = vector.broadcast %21 : vector<1x256xf32> to vector<2x256xf32>
    %177 = arith.addf %175, %176 : vector<2x256xf32>
    %cst_112 = arith.constant 0.000000e+00 : f32
    %178 = vector.broadcast %cst_112 : f32 to vector<2x256xf32>
    %179 = arith.maximumf %177, %178 : vector<2x256xf32>
    %180 = arith.truncf %179 : vector<2x256xf32> to vector<2x256xbf16>
    %c15 = arith.constant 15 : index
    %c0_113 = arith.constant 0 : index
    %c0_114 = arith.constant 0 : index
    %181 = vector.load %arg4[%c15, %c0_113, %c0_114] : memref<16x256x128xbf16, #tpu.memory_space<vmem>>, vector<1x256x128xbf16>
    %182 = vector.shape_cast %181 : vector<1x256x128xbf16> to vector<256x128xbf16>
    %cst_115 = arith.constant dense<0.000000e+00> : vector<2x128xf32>
    %183 = tpu.matmul %180, %182, %cst_115 {dimension_numbers = #tpu.dot_dimension_numbers<[1], [0], [0], [1], [0, 0, 1, 1], [], []>} : vector<2x256xbf16>, vector<256x128xbf16>, vector<2x128xf32> -> vector<2x128xf32>
    %184 = arith.addf %174, %183 : vector<2x128xf32>
    %cst_116 = arith.constant 0.000000e+00 : f32
    %185 = vector.broadcast %cst_116 : f32 to vector<2x128xf32>
    %186 = arith.maximumf %184, %185 : vector<2x128xf32>
    %187 = arith.truncf %186 : vector<2x128xf32> to vector<2x128xbf16>
    %c0_117 = arith.constant 0 : index
    %c0_118 = arith.constant 0 : index
    %188 = vector.load %arg6[%c0_117, %c0_118] : memref<128x128xbf16, #tpu.memory_space<vmem>>, vector<128x128xbf16>
    %cst_119 = arith.constant dense<0.000000e+00> : vector<2x128xf32>
    %189 = tpu.matmul %187, %188, %cst_119 {dimension_numbers = #tpu.dot_dimension_numbers<[1], [0], [0], [1], [0, 0, 1, 1], [], []>} : vector<2x128xbf16>, vector<128x128xbf16>, vector<2x128xf32> -> vector<2x128xf32>
    %c0_120 = arith.constant 0 : index
    %c0_121 = arith.constant 0 : index
    %190 = vector.load %arg7[%c0_120, %c0_121] : memref<1x128xf32, #tpu.memory_space<vmem>>, vector<1x128xf32>
    %191 = vector.broadcast %190 : vector<1x128xf32> to vector<2x128xf32>
    %192 = arith.addf %189, %191 : vector<2x128xf32>
    %c0_122 = arith.constant 0 : index
    %c0_123 = arith.constant 0 : index
    %193 = vector.load %arg8[%c0_122, %c0_123] : memref<2x128xf32, #tpu.memory_space<vmem>>, vector<2x128xf32>
    tpu.vector_store %arg8[%c0_122, %c0_123], %192 {strides = array<i32>} : memref<2x128xf32, #tpu.memory_space<vmem>>, vector<2x128xf32>,
    return
  }
  func.func @transform_0(%arg0: i32) -> (i32, i32, i32) {
    %c0_i32 = arith.constant 0 : i32
    %c0_i32_0 = arith.constant 0 : i32
    %c0_i32_1 = arith.constant 0 : i32
    return %arg0, %c0_i32, %c0_i32_0 : i32, i32, i32
  }
  func.func @transform_1(%arg0: i32) -> (i32, i32, i32) {
    %c0_i32 = arith.constant 0 : i32
    %c0_i32_0 = arith.constant 0 : i32
    %c0_i32_1 = arith.constant 0 : i32
    %c0_i32_2 = arith.constant 0 : i32
    return %c0_i32, %c0_i32_0, %c0_i32_1 : i32, i32, i32
  }
  func.func @transform_2(%arg0: i32) -> (i32, i32) {
    %c0_i32 = arith.constant 0 : i32
    %c0_i32_0 = arith.constant 0 : i32
    %c0_i32_1 = arith.constant 0 : i32
    return %c0_i32, %c0_i32_0 : i32, i32
  }
  func.func @transform_3(%arg0: i32) -> (i32, i32, i32) {
    %c0_i32 = arith.constant 0 : i32
    %c0_i32_0 = arith.constant 0 : i32
    %c0_i32_1 = arith.constant 0 : i32
    %c0_i32_2 = arith.constant 0 : i32
    return %c0_i32, %c0_i32_0, %c0_i32_1 : i32, i32, i32
  }
  func.func @transform_4(%arg0: i32) -> (i32, i32) {
    %c0_i32 = arith.constant 0 : i32
    %c0_i32_0 = arith.constant 0 : i32
    %c0_i32_1 = arith.constant 0 : i32
    return %c0_i32, %c0_i32_0 : i32, i32
  }
  func.func @transform_5(%arg0: i32) -> (i32, i32) {
    %c0_i32 = arith.constant 0 : i32
    %c0_i32_0 = arith.constant 0 : i32
    %c0_i32_1 = arith.constant 0 : i32
    return %c0_i32, %c0_i32_0 : i32, i32
  }
  func.func @transform_6(%arg0: i32) -> (i32, i32) {
    %c0_i32 = arith.constant 0 : i32
    %c0_i32_0 = arith.constant 0 : i32
    %c0_i32_1 = arith.constant 0 : i32
    return %c0_i32, %c0_i32_0 : i32, i32
  }
  func.func @transform_7(%arg0: i32) -> (i32, i32) {
    %c0_i32 = arith.constant 0 : i32
    %c0_i32_0 = arith.constant 0 : i32
    return %arg0, %c0_i32 : i32, i32
  }
}

</mosaic_0001>

<llo_original>
// kernel: actor_critic_forward.1
$region0: #{actor_critic_forward.1}
  #allocation0 [shape = 'u32[]', space=smem, size = 0x4, offset = 0x4, fixed_abs, tag = 'smem constant byte address 0x4 - core index']
  #allocation1 [shape = 'u32[144,128]{1,0:T(1,128)}', space=vmem, size = 0x12000, scoped, tag = 'internal scratch']
  #allocation2 [shape = 'f32[32,256]{1,0:T(8,128)}', space=vmem, size = 0x8000, scoped, tag = 'scratch operand']
  %s0 = inlined_call_operand.vmem [shape: bf16[1,36,72], index: 0, kind: input, shape index: {}]
  %s1 = inlined_call_operand.vmem [shape: bf16[3,72,256], index: 1, kind: input, shape index: {}]
  %s2 = inlined_call_operand.vmem [shape: f32[1,256], index: 2, kind: input, shape index: {}]
  %s3 = inlined_call_operand.hbm [shape: bf16[16,256,128], index: 3, kind: input, shape index: {}]
  %s4 = inlined_call_operand.vmem [shape: f32[1,128], index: 4, kind: input, shape index: {}]
  %s5 = inlined_call_operand.vmem [shape: bf16[128,128], index: 5, kind: input, shape index: {}]
  %s6 = inlined_call_operand.vmem [shape: f32[1,128], index: 6, kind: input, shape index: {}]
  %s7 = inlined_call_operand.vmem [shape: f32[2,128], index: 7, kind: output, shape index: {}]
  %s8 = sld [smem:[#allocation0]]
  $region42: #{actor_critic_forward.1} parent=0
    _
  %s10 = ssub.s32 1, %s8
  %s11 = scalar_select 0, %s10, %s8
  $region1: #{actor_critic_forward.1} parent=0
    #allocation3 [shape = 'u8[1048576]{0}', space=vmem, size = 0x100000, scoped, tag = 'input window, operand 3, single buffered']
    #allocation4 [shape = 's32[1]{0}', space=sflag, size = 0x4, scoped, tag = 'scoped memory for actor_critic_forward.1']
    %12 = vsyncpa [#allocation4], 0
    // Predicated region
    $region2: #{actor_critic_forward.1} parent=1 // pred_check
      _
    $region3: #{actor_critic_forward.1} parent=1 // pred_check_branch
      %14 = sbr.rel (0) target = $region5
    $region4: #{actor_critic_forward.1} parent=1 // pred_region
      _
    $region5: #{actor_critic_forward.1} parent=1 // pred_fallthru
      _
    // Predicated region
    $region6: #{actor_critic_forward.1} parent=1 // pred_check
      _
    $region7: #{actor_critic_forward.1} parent=1 // pred_check_branch
      %16 = sbr.rel (0) target = $region9
    $region8: #{actor_critic_forward.1} parent=1 // pred_region
      _
    $region9: #{actor_critic_forward.1} parent=1 // pred_fallthru
      _
    // Predicated region
    $region10: #{actor_critic_forward.1} parent=1 // pred_check
      _
    $region11: #{actor_critic_forward.1} parent=1 // pred_check_branch
      %18 = sbr.rel (0) target = $region13
    $region12: #{actor_critic_forward.1} parent=1 // pred_region
      _
    $region13: #{actor_critic_forward.1} parent=1 // pred_fallthru
      _
    // Predicated region
    $region14: #{actor_critic_forward.1} parent=1 // pred_check
      _
    $region15: #{actor_critic_forward.1} parent=1 // pred_check_branch
      %20 = sbr.rel (0) target = $region17
    $region16: #{actor_critic_forward.1} parent=1 // pred_region
      %s22 = ssub.s32 32768, 32768
      %23 = vsyncadd [#allocation4], %s22
      %s24 = sshll.u32 [#allocation3], 4
      %s25 = int_to_ptr.vmem [resolvable:$true] %s24
      %30 = dma.hbm_to_vmem [thread:$0]  %s3, 32768, %s25, [#allocation4], 64, 64, 4
    $region17: #{actor_critic_forward.1} parent=1 // pred_fallthru
      _
    // Predicated region
    $region18: #{actor_critic_forward.1} parent=1 // pred_check
      _
    $region19: #{actor_critic_forward.1} parent=1 // pred_check_branch
      %32 = sbr.rel (0) target = $region21
    $region20: #{actor_critic_forward.1} parent=1 // pred_region
      _
    $region21: #{actor_critic_forward.1} parent=1 // pred_fallthru
      _
    // Predicated region
    $region22: #{actor_critic_forward.1} parent=1 // pred_check
      _
    $region23: #{actor_critic_forward.1} parent=1 // pred_check_branch
      %34 = sbr.rel (0) target = $region25
    $region24: #{actor_critic_forward.1} parent=1 // pred_region
      _
    $region25: #{actor_critic_forward.1} parent=1 // pred_fallthru
      _
    // Predicated region
    $region26: #{actor_critic_forward.1} parent=1 // pred_check
      _
    $region27: #{actor_critic_forward.1} parent=1 // pred_check_branch
      %36 = sbr.rel (0) target = $region29
    $region28: #{actor_critic_forward.1} parent=1 // pred_region
      _
    $region29: #{actor_critic_forward.1} parent=1 // pred_fallthru
      _
    // Predicated region
    $region30: #{actor_critic_forward.1} parent=1 // pred_check
      _
    $region31: #{actor_critic_forward.1} parent=1 // pred_check_branch
      %38 = sbr.rel (0) target = $region33
    $region32: #{actor_critic_forward.1} parent=1 // pred_region
      %39 = dma.done [#allocation4], 32768
    $region33: #{actor_critic_forward.1} parent=1 // pred_fallthru
      _
    %v41 = vld [vmem:[%s0] sm:$0xf]
    %v42 = vld [vmem:[%s0 + $0x4] sm:$0xf]
    %v43 = vld [vmem:[%s0 + $0x8] sm:$0xf]
    %v44 = vld [vmem:[%s0 + $0xc] sm:$0xf]
    %v45 = vld [vmem:[%s0 + $0x10] sm:$0x3]
    %v46 = vld [vmem:[%s1] sm:$0xff]
    %v47 = vld [vmem:[%s1 + $0x8] sm:$0xff]
    %v48 = vld [vmem:[%s1 + $0x10] sm:$0xff]
    %v49 = vld [vmem:[%s1 + $0x18] sm:$0xff]
    %v50 = vld [vmem:[%s1 + $0x20] sm:$0xff]
    %v51 = vld [vmem:[%s1 + $0x28] sm:$0xff]
    %v52 = vld [vmem:[%s1 + $0x30] sm:$0xff]
    %v53 = vld [vmem:[%s1 + $0x38] sm:$0xff]
    %v54 = vld [vmem:[%s1 + $0x40] sm:$0xff]
    %v59 = vunpack.c.l.b16 %v41
    %v60 = vunpack.c.l.b16 %v42
    %v61 = vunpack.c.l.b16 %v43
    %v62 = vunpack.c.l.b16 %v44
    %v63 = vpack.c.b16 %v60, %v59
    %v64 = vpack.c.b16 %v62, %v61
    %v74 = vunpack.c.l.b16 %v46
    %v75 = vunpack.c.h.b16 %v46
    %v76 = vunpack.c.l.b16 %v47
    %v77 = vunpack.c.h.b16 %v47
    %v78 = vunpack.c.l.b16 %v48
    %v79 = vunpack.c.h.b16 %v48
    %v80 = vunpack.c.l.b16 %v49
    %v81 = vunpack.c.h.b16 %v49
    %v82 = vunpack.c.l.b16 %v50
    %v83 = vunpack.c.h.b16 %v50
    %v84 = vunpack.c.l.b16 %v51
    %v85 = vunpack.c.h.b16 %v51
    %v86 = vunpack.c.l.b16 %v52
    %v87 = vunpack.c.h.b16 %v52
    %v88 = vunpack.c.l.b16 %v53
    %v89 = vunpack.c.h.b16 %v53
    %v90 = vunpack.c.l.b16 %v54
    %v91 = vunpack.c.h.b16 %v54
    %v92 = vpack.c.b16 %v76, %v74
    %v93 = vpack.c.b16 %v77, %v75
    %v94 = vpack.c.b16 %v80, %v78
    %v95 = vpack.c.b16 %v81, %v79
    %v96 = vpack.c.b16 %v84, %v82
    %v97 = vpack.c.b16 %v85, %v83
    %v98 = vpack.c.b16 %v88, %v86
    %v99 = vpack.c.b16 %v89, %v87
    %v100 = vpack.c.b16 %v90, %v90
    %v101 = vpack.c.b16 %v91, %v91
    %vm110 = vcmask 588800
    %v112 = vsel %vm110, %v63, 0
    %v115 = vsel %vm110, %v64, 0
    %vm117 = vcmask 1043456
    %v119 = vsel %vm117, %v100, 0
    %v122 = vsel %vm117, %v101, 0
    %124 = vmatprep.subr.bf16.mxu0 %v93
    %125 = vmatpush1.bf16.msra.mxu0 %v92
    %126 = vmatprep.subr.bf16.mxu0 %v95
    %127 = vmatpush1.bf16.msra.mxu0 %v94
    %128 = vmatprep.subr.bf16.mxu0 %v97
    %129 = vmatpush1.bf16.msra.mxu0 %v96
    %130 = vmatprep.subr.bf16.mxu0 %v99
    %131 = vmatpush1.bf16.msra.mxu0 %v98
    %132 = vmatprep.subr.bf16.mxu0 %v122
    %133 = vmatpush1.bf16.msra.mxu0 %v119
    %134 = vmatprep.subr.bf16.mxu0 0
    %135 = vmatpush1.bf16.msra.mxu0 0
    %136 = vmatprep.subr.bf16.mxu0 0
    %137 = vmatpush1.bf16.msra.mxu0 0
    %138 = vmatprep.subr.bf16.mxu0 0
    %139 = vmatpush1.bf16.msra.mxu0 0
    %140 = vmatprep.subr.bf16.mxu0 0
    %141 = vmatpush1.bf16.msra.mxu0 0
    %142 = vmatprep.subr.bf16.mxu0 0
    %143 = vmatpush1.bf16.msra.mxu0 0
    %144 = vmatprep.subr.bf16.mxu0 0
    %145 = vmatpush1.bf16.msra.mxu0 0
    %146 = vmatprep.subr.bf16.mxu0 0
    %147 = vmatpush1.bf16.msra.mxu0 0
    %148 = vmatprep.subr.bf16.mxu0 0
    %149 = vmatpush1.bf16.msra.mxu0 0
    %150 = vmatprep.subr.bf16.mxu0 0
    %151 = vmatpush1.bf16.msra.mxu0 0
    %152 = vmatprep.subr.bf16.mxu0 0
    %153 = vmatpush1.bf16.msra.mxu0 0
    %154 = vmatprep.subr.bf16.mxu0 0
    %155 = vmatpush1.bf16.msra.mxu0 0
    %156 = vmatprep.mubr.bf16.mxu0 0
    %157 = vmatmul.mubr.bf16.gmra.mrb[0].mxu0 %v112
    %v158 = vpop.f32.mrb[0].mxu0
    %v159 = vadd.f32 0.0, %v158
    %v160 = vpop.f32.mrb[0].mxu0
    %v161 = vadd.f32 0.0, %v160
    %v162 = vpop.f32.mrb[0].mxu0
    %v163 = vadd.f32 0.0, %v162
    %v164 = vpop.f32.mrb[0].mxu0
    %v165 = vadd.f32 0.0, %v164
    %166 = vmatprep.mubr.bf16.mxu0 0
    %167 = vmatmul.mubr.bf16.gmra.mrb[0].mxu0 %v115
    %v168 = vpop.f32.mrb[0].mxu0
    %v169 = vadd.f32 0.0, %v168
    %v170 = vpop.f32.mrb[0].mxu0
    %v171 = vadd.f32 0.0, %v170
    %v172 = vpop.f32.mrb[0].mxu0
    %v173 = vadd.f32 0.0, %v172
    %v174 = vpop.f32.mrb[0].mxu0
    %v175 = vadd.f32 0.0, %v174
    %176 = vdwg.mxu0
    %177 = vst [vmem:[#allocation2] sm:$0xff] %v159
    %178 = vst [vmem:[#allocation2 + $0x8] sm:$0xff] %v161
    %179 = vst [vmem:[#allocation2 + $0x10] sm:$0xff] %v163
    %180 = vst [vmem:[#allocation2 + $0x18] sm:$0xff] %v165
    %181 = vst [vmem:[#allocation2 + $0x20] sm:$0xff] %v169
    %182 = vst [vmem:[#allocation2 + $0x28] sm:$0xff] %v171
    %183 = vst [vmem:[#allocation2 + $0x30] sm:$0xff] %v173
    %184 = vst [vmem:[#allocation2 + $0x38] sm:$0xff] %v175
    %v185 = vld [vmem:[#allocation2] sm:$0xff]
    %v186 = vld [vmem:[#allocation2 + $0x8] sm:$0xff]
    %v187 = vld [vmem:[#allocation2 + $0x10] sm:$0xff]
    %v188 = vld [vmem:[#allocation2 + $0x18] sm:$0xff]
    %v189 = vld [vmem:[#allocation2 + $0x20] sm:$0xff]
    %v190 = vld [vmem:[#allocation2 + $0x28] sm:$0xff]
    %v191 = vld [vmem:[#allocation2 + $0x30] sm:$0xff]
    %v192 = vld [vmem:[#allocation2 + $0x38] sm:$0xff]
    %s193 = scalar_lea.vmem %s1, 72
    %v194 = vld [vmem:[%s193] sm:$0xff]
    %v195 = vld [vmem:[%s193 + $0x8] sm:$0xff]
    %v196 = vld [vmem:[%s193 + $0x10] sm:$0xff]
    %v197 = vld [vmem:[%s193 + $0x18] sm:$0xff]
    %v198 = vld [vmem:[%s193 + $0x20] sm:$0xff]
    %v199 = vld [vmem:[%s193 + $0x28] sm:$0xff]
    %v200 = vld [vmem:[%s193 + $0x30] sm:$0xff]
    %v201 = vld [vmem:[%s193 + $0x38] sm:$0xff]
    %v202 = vld [vmem:[%s193 + $0x40] sm:$0xff]
    %v204 = vunpack.c.l.b16 %v45
    %v205 = vpack.c.b16 %v204, %v204
    %vm206 = vcmask 1046528
    %v207 = vrot.slane %v63, 1
    %v208 = vrot.slane %v64, 1
    %v209 = vsel %vm206, %v207, %v208
    %v210 = vrot.slane %v205, 1
    %v211 = vsel %vm206, %v208, %v210
    %v221 = vunpack.c.l.b16 %v194
    %v222 = vunpack.c.h.b16 %v194
    %v223 = vunpack.c.l.b16 %v195
    %v224 = vunpack.c.h.b16 %v195
    %v225 = vunpack.c.l.b16 %v196
    %v226 = vunpack.c.h.b16 %v196
    %v227 = vunpack.c.l.b16 %v197
    %v228 = vunpack.c.h.b16 %v197
    %v229 = vunpack.c.l.b16 %v198
    %v230 = vunpack.c.h.b16 %v198
    %v231 = vunpack.c.l.b16 %v199
    %v232 = vunpack.c.h.b16 %v199
    %v233 = vunpack.c.l.b16 %v200
    %v234 = vunpack.c.h.b16 %v200
    %v235 = vunpack.c.l.b16 %v201
    %v236 = vunpack.c.h.b16 %v201
    %v237 = vunpack.c.l.b16 %v202
    %v238 = vunpack.c.h.b16 %v202
    %v239 = vpack.c.b16 %v223, %v221
    %v240 = vpack.c.b16 %v224, %v222
    %v241 = vpack.c.b16 %v227, %v225
    %v242 = vpack.c.b16 %v228, %v226
    %v243 = vpack.c.b16 %v231, %v229
    %v244 = vpack.c.b16 %v232, %v230
    %v245 = vpack.c.b16 %v235, %v233
    %v246 = vpack.c.b16 %v236, %v234
    %v247 = vpack.c.b16 %v237, %v237
    %v248 = vpack.c.b16 %v238, %v238
    %v258 = vsel %vm110, %v209, 0
    %v261 = vsel %vm110, %v211, 0
    %v264 = vsel %vm117, %v247, 0
    %v267 = vsel %vm117, %v248, 0
    %269 = vmatprep.subr.bf16.mxu0 %v240
    %270 = vmatpush1.bf16.msra.mxu0 %v239
    %271 = vmatprep.subr.bf16.mxu0 %v242
    %272 = vmatpush1.bf16.msra.mxu0 %v241
    %273 = vmatprep.subr.bf16.mxu0 %v244
    %274 = vmatpush1.bf16.msra.mxu0 %v243
    %275 = vmatprep.subr.bf16.mxu0 %v246
    %276 = vmatpush1.bf16.msra.mxu0 %v245
    %277 = vmatprep.subr.bf16.mxu0 %v267
    %278 = vmatpush1.bf16.msra.mxu0 %v264
    %279 = vmatprep.subr.bf16.mxu0 0
    %280 = vmatpush1.bf16.msra.mxu0 0
    %281 = vmatprep.subr.bf16.mxu0 0
    %282 = vmatpush1.bf16.msra.mxu0 0
    %283 = vmatprep.subr.bf16.mxu0 0
    %284 = vmatpush1.bf16.msra.mxu0 0
    %285 = vmatprep.subr.bf16.mxu0 0
    %286 = vmatpush1.bf16.msra.mxu0 0
    %287 = vmatprep.subr.bf16.mxu0 0
    %288 = vmatpush1.bf16.msra.mxu0 0
    %289 = vmatprep.subr.bf16.mxu0 0
    %290 = vmatpush1.bf16.msra.mxu0 0
    %291 = vmatprep.subr.bf16.mxu0 0
    %292 = vmatpush1.bf16.msra.mxu0 0
    %293 = vmatprep.subr.bf16.mxu0 0
    %294 = vmatpush1.bf16.msra.mxu0 0
    %295 = vmatprep.subr.bf16.mxu0 0
    %296 = vmatpush1.bf16.msra.mxu0 0
    %297 = vmatprep.subr.bf16.mxu0 0
    %298 = vmatpush1.bf16.msra.mxu0 0
    %299 = vmatprep.subr.bf16.mxu0 0
    %300 = vmatpush1.bf16.msra.mxu0 0
    %301 = vmatprep.mubr.bf16.mxu0 0
    %302 = vmatmul.mubr.bf16.gmra.mrb[0].mxu0 %v258
    %v303 = vpop.f32.mrb[0].mxu0
    %v304 = vadd.f32 0.0, %v303
    %v305 = vpop.f32.mrb[0].mxu0
    %v306 = vadd.f32 0.0, %v305
    %v307 = vpop.f32.mrb[0].mxu0
    %v308 = vadd.f32 0.0, %v307
    %v309 = vpop.f32.mrb[0].mxu0
    %v310 = vadd.f32 0.0, %v309
    %311 = vmatprep.mubr.bf16.mxu0 0
    %312 = vmatmul.mubr.bf16.gmra.mrb[0].mxu0 %v261
    %v313 = vpop.f32.mrb[0].mxu0
    %v314 = vadd.f32 0.0, %v313
    %v315 = vpop.f32.mrb[0].mxu0
    %v316 = vadd.f32 0.0, %v315
    %v317 = vpop.f32.mrb[0].mxu0
    %v318 = vadd.f32 0.0, %v317
    %v319 = vpop.f32.mrb[0].mxu0
    %v320 = vadd.f32 0.0, %v319
    %321 = vdwg.mxu0
    %v322 = vadd.f32 %v185, %v304
    %v323 = vadd.f32 %v186, %v306
    %v324 = vadd.f32 %v187, %v308
    %v325 = vadd.f32 %v188, %v310
    %v326 = vadd.f32 %v189, %v314
    %v327 = vadd.f32 %v190, %v316
    %v328 = vadd.f32 %v191, %v318
    %v329 = vadd.f32 %v192, %v320
    %330 = vst [vmem:[#allocation2] sm:$0xff] %v322
    %331 = vst [vmem:[#allocation2 + $0x8] sm:$0xff] %v323
    %332 = vst [vmem:[#allocation2 + $0x10] sm:$0xff] %v324
    %333 = vst [vmem:[#allocation2 + $0x18] sm:$0xff] %v325
    %334 = vst [vmem:[#allocation2 + $0x20] sm:$0xff] %v326
    %335 = vst [vmem:[#allocation2 + $0x28] sm:$0xff] %v327
    %336 = vst [vmem:[#allocation2 + $0x30] sm:$0xff] %v328
    %337 = vst [vmem:[#allocation2 + $0x38] sm:$0xff] %v329
    %v338 = vld [vmem:[#allocation2] sm:$0xff]
    %v339 = vld [vmem:[#allocation2 + $0x8] sm:$0xff]
    %v340 = vld [vmem:[#allocation2 + $0x10] sm:$0xff]
    %v341 = vld [vmem:[#allocation2 + $0x18] sm:$0xff]
    %v342 = vld [vmem:[#allocation2 + $0x20] sm:$0xff]
    %v343 = vld [vmem:[#allocation2 + $0x28] sm:$0xff]
    %v344 = vld [vmem:[#allocation2 + $0x30] sm:$0xff]
    %v345 = vld [vmem:[#allocation2 + $0x38] sm:$0xff]
    %s346 = scalar_lea.vmem %s1, 144
    %v347 = vld [vmem:[%s346] sm:$0xff]
    %v348 = vld [vmem:[%s346 + $0x8] sm:$0xff]
    %v349 = vld [vmem:[%s346 + $0x10] sm:$0xff]
    %v350 = vld [vmem:[%s346 + $0x18] sm:$0xff]
    %v351 = vld [vmem:[%s346 + $0x20] sm:$0xff]
    %v352 = vld [vmem:[%s346 + $0x28] sm:$0xff]
    %v353 = vld [vmem:[%s346 + $0x30] sm:$0xff]
    %v354 = vld [vmem:[%s346 + $0x38] sm:$0xff]
    %v355 = vld [vmem:[%s346 + $0x40] sm:$0xff]
    %vm356 = vcmask 1045504
    %v357 = vrot.slane %v63, 2
    %v358 = vrot.slane %v64, 2
    %v359 = vsel %vm356, %v357, %v358
    %v360 = vrot.slane %v205, 2
    %v361 = vsel %vm356, %v358, %v360
    %v371 = vunpack.c.l.b16 %v347
    %v372 = vunpack.c.h.b16 %v347
    %v373 = vunpack.c.l.b16 %v348
    %v374 = vunpack.c.h.b16 %v348
    %v375 = vunpack.c.l.b16 %v349
    %v376 = vunpack.c.h.b16 %v349
    %v377 = vunpack.c.l.b16 %v350
    %v378 = vunpack.c.h.b16 %v350
    %v379 = vunpack.c.l.b16 %v351
    %v380 = vunpack.c.h.b16 %v351
    %v381 = vunpack.c.l.b16 %v352
    %v382 = vunpack.c.h.b16 %v352
    %v383 = vunpack.c.l.b16 %v353
    %v384 = vunpack.c.h.b16 %v353
    %v385 = vunpack.c.l.b16 %v354
    %v386 = vunpack.c.h.b16 %v354
    %v387 = vunpack.c.l.b16 %v355
    %v388 = vunpack.c.h.b16 %v355
    %v389 = vpack.c.b16 %v373, %v371
    %v390 = vpack.c.b16 %v374, %v372
    %v391 = vpack.c.b16 %v377, %v375
    %v392 = vpack.c.b16 %v378, %v376
    %v393 = vpack.c.b16 %v381, %v379
    %v394 = vpack.c.b16 %v382, %v380
    %v395 = vpack.c.b16 %v385, %v383
    %v396 = vpack.c.b16 %v386, %v384
    %v397 = vpack.c.b16 %v387, %v387
    %v398 = vpack.c.b16 %v388, %v388
    %v408 = vsel %vm110, %v359, 0
    %v411 = vsel %vm110, %v361, 0
    %v414 = vsel %vm117, %v397, 0
    %v417 = vsel %vm117, %v398, 0
    %419 = vmatprep.subr.bf16.mxu0 %v390
    %420 = vmatpush1.bf16.msra.mxu0 %v389
    %421 = vmatprep.subr.bf16.mxu0 %v392
    %422 = vmatpush1.bf16.msra.mxu0 %v391
    %423 = vmatprep.subr.bf16.mxu0 %v394
    %424 = vmatpush1.bf16.msra.mxu0 %v393
    %425 = vmatprep.subr.bf16.mxu0 %v396
    %426 = vmatpush1.bf16.msra.mxu0 %v395
    %427 = vmatprep.subr.bf16.mxu0 %v417
    %428 = vmatpush1.bf16.msra.mxu0 %v414
    %429 = vmatprep.subr.bf16.mxu0 0
    %430 = vmatpush1.bf16.msra.mxu0 0
    %431 = vmatprep.subr.bf16.mxu0 0
    %432 = vmatpush1.bf16.msra.mxu0 0
    %433 = vmatprep.subr.bf16.mxu0 0
    %434 = vmatpush1.bf16.msra.mxu0 0
    %435 = vmatprep.subr.bf16.mxu0 0
    %436 = vmatpush1.bf16.msra.mxu0 0
    %437 = vmatprep.subr.bf16.mxu0 0
    %438 = vmatpush1.bf16.msra.mxu0 0
    %439 = vmatprep.subr.bf16.mxu0 0
    %440 = vmatpush1.bf16.msra.mxu0 0
    %441 = vmatprep.subr.bf16.mxu0 0
    %442 = vmatpush1.bf16.msra.mxu0 0
    %443 = vmatprep.subr.bf16.mxu0 0
    %444 = vmatpush1.bf16.msra.mxu0 0
    %445 = vmatprep.subr.bf16.mxu0 0
    %446 = vmatpush1.bf16.msra.mxu0 0
    %447 = vmatprep.subr.bf16.mxu0 0
    %448 = vmatpush1.bf16.msra.mxu0 0
    %449 = vmatprep.subr.bf16.mxu0 0
    %450 = vmatpush1.bf16.msra.mxu0 0
    %451 = vmatprep.mubr.bf16.mxu0 0
    %452 = vmatmul.mubr.bf16.gmra.mrb[0].mxu0 %v408
    %v453 = vpop.f32.mrb[0].mxu0
    %v454 = vadd.f32 0.0, %v453
    %v455 = vpop.f32.mrb[0].mxu0
    %v456 = vadd.f32 0.0, %v455
    %v457 = vpop.f32.mrb[0].mxu0
    %v458 = vadd.f32 0.0, %v457
    %v459 = vpop.f32.mrb[0].mxu0
    %v460 = vadd.f32 0.0, %v459
    %461 = vmatprep.mubr.bf16.mxu0 0
    %462 = vmatmul.mubr.bf16.gmra.mrb[0].mxu0 %v411
    %v463 = vpop.f32.mrb[0].mxu0
    %v464 = vadd.f32 0.0, %v463
    %v465 = vpop.f32.mrb[0].mxu0
    %v466 = vadd.f32 0.0, %v465
    %v467 = vpop.f32.mrb[0].mxu0
    %v468 = vadd.f32 0.0, %v467
    %v469 = vpop.f32.mrb[0].mxu0
    %v470 = vadd.f32 0.0, %v469
    %471 = vdwg.mxu0
    %v472 = vadd.f32 %v338, %v454
    %v473 = vadd.f32 %v339, %v456
    %v474 = vadd.f32 %v340, %v458
    %v475 = vadd.f32 %v341, %v460
    %v476 = vadd.f32 %v342, %v464
    %v477 = vadd.f32 %v343, %v466
    %v478 = vadd.f32 %v344, %v468
    %v479 = vadd.f32 %v345, %v470
    %480 = vst [vmem:[#allocation2] sm:$0xff] %v472
    %481 = vst [vmem:[#allocation2 + $0x8] sm:$0xff] %v473
    %482 = vst [vmem:[#allocation2 + $0x10] sm:$0xff] %v474
    %483 = vst [vmem:[#allocation2 + $0x18] sm:$0xff] %v475
    %484 = vst [vmem:[#allocation2 + $0x20] sm:$0xff] %v476
    %485 = vst [vmem:[#allocation2 + $0x28] sm:$0xff] %v477
    %486 = vst [vmem:[#allocation2 + $0x30] sm:$0xff] %v478
    %487 = vst [vmem:[#allocation2 + $0x38] sm:$0xff] %v479
    %v488 = vld [vmem:[%s2] sm:$0x3]
    %v489 = vld [vmem:[%s4] sm:$0x1]
    %v491 = vlaneseq
    %v492 = vshrl.u32 %v491, 7
    %v493 = vsub.s32 0, %v492
    %v494 = vrot.slane %v489, %v493
    %v496 = vld [vmem:[#allocation2] sm:$0x3]
    %v497 = vld [vmem:[#allocation2 + $0x8] sm:$0x3]
    %v499 = vlaneseq
    %v500 = vshrl.u32 %v499, 7
    %v501 = vsub.s32 0, %v500
    %v502 = vrot.slane %v488, %v501
    %v503 = vlaneseq
    %v504 = vshrl.u32 %v503, 7
    %v505 = vsub.s32 1, %v504
    %v506 = vrot.slane %v488, %v505
    %v509 = vadd.f32 %v496, %v502
    %v510 = vadd.f32 %v497, %v506
    %v511 = vmax.f32 %v509, 0.0
    %v512 = vmax.f32 %v510, 0.0
    %v513 = vpack.c.bf16 %v511, %v511
    %v514 = vpack.c.bf16 %v512, %v512
    %v515 = vld [vmem:[#allocation3] sm:$0xf]
    %v516 = vld [vmem:[#allocation3 + $0x4] sm:$0xf]
    %v517 = vld [vmem:[#allocation3 + $0x8] sm:$0xf]
    %v518 = vld [vmem:[#allocation3 + $0xc] sm:$0xf]
    %v519 = vld [vmem:[#allocation3 + $0x10] sm:$0xf]
    %v520 = vld [vmem:[#allocation3 + $0x14] sm:$0xf]
    %v521 = vld [vmem:[#allocation3 + $0x18] sm:$0xf]
    %v522 = vld [vmem:[#allocation3 + $0x1c] sm:$0xf]
    %v523 = vld [vmem:[#allocation3 + $0x20] sm:$0xf]
    %v524 = vld [vmem:[#allocation3 + $0x24] sm:$0xf]
    %v525 = vld [vmem:[#allocation3 + $0x28] sm:$0xf]
    %v526 = vld [vmem:[#allocation3 + $0x2c] sm:$0xf]
    %v527 = vld [vmem:[#allocation3 + $0x30] sm:$0xf]
    %v528 = vld [vmem:[#allocation3 + $0x34] sm:$0xf]
    %v529 = vld [vmem:[#allocation3 + $0x38] sm:$0xf]
    %v530 = vld [vmem:[#allocation3 + $0x3c] sm:$0xf]
    %v531 = vld [vmem:[#allocation3 + $0x40] sm:$0xf]
    %v532 = vld [vmem:[#allocation3 + $0x44] sm:$0xf]
    %v533 = vld [vmem:[#allocation3 + $0x48] sm:$0xf]
    %v534 = vld [vmem:[#allocation3 + $0x4c] sm:$0xf]
    %v535 = vld [vmem:[#allocation3 + $0x50] sm:$0xf]
    %v536 = vld [vmem:[#allocation3 + $0x54] sm:$0xf]
    %v537 = vld [vmem:[#allocation3 + $0x58] sm:$0xf]
    %v538 = vld [vmem:[#allocation3 + $0x5c] sm:$0xf]
    %v539 = vld [vmem:[#allocation3 + $0x60] sm:$0xf]
    %v540 = vld [vmem:[#allocation3 + $0x64] sm:$0xf]
    %v541 = vld [vmem:[#allocation3 + $0x68] sm:$0xf]
    %v542 = vld [vmem:[#allocation3 + $0x6c] sm:$0xf]
    %v543 = vld [vmem:[#allocation3 + $0x70] sm:$0xf]
    %v544 = vld [vmem:[#allocation3 + $0x74] sm:$0xf]
    %v545 = vld [vmem:[#allocation3 + $0x78] sm:$0xf]
    %v546 = vld [vmem:[#allocation3 + $0x7c] sm:$0xf]
    %v579 = vunpack.c.l.b16 %v515
    %v580 = vunpack.c.l.b16 %v516
    %v581 = vunpack.c.l.b16 %v517
    %v582 = vunpack.c.l.b16 %v518
    %v583 = vunpack.c.l.b16 %v519
    %v584 = vunpack.c.l.b16 %v520
    %v585 = vunpack.c.l.b16 %v521
    %v586 = vunpack.c.l.b16 %v522
    %v587 = vunpack.c.l.b16 %v523
    %v588 = vunpack.c.l.b16 %v524
    %v589 = vunpack.c.l.b16 %v525
    %v590 = vunpack.c.l.b16 %v526
    %v591 = vunpack.c.l.b16 %v527
    %v592 = vunpack.c.l.b16 %v528
    %v593 = vunpack.c.l.b16 %v529
    %v594 = vunpack.c.l.b16 %v530
    %v595 = vunpack.c.l.b16 %v531
    %v596 = vunpack.c.l.b16 %v532
    %v597 = vunpack.c.l.b16 %v533
    %v598 = vunpack.c.l.b16 %v534
    %v599 = vunpack.c.l.b16 %v535
    %v600 = vunpack.c.l.b16 %v536
    %v601 = vunpack.c.l.b16 %v537
    %v602 = vunpack.c.l.b16 %v538
    %v603 = vunpack.c.l.b16 %v539
    %v604 = vunpack.c.l.b16 %v540
    %v605 = vunpack.c.l.b16 %v541
    %v606 = vunpack.c.l.b16 %v542
    %v607 = vunpack.c.l.b16 %v543
    %v608 = vunpack.c.l.b16 %v544
    %v609 = vunpack.c.l.b16 %v545
    %v610 = vunpack.c.l.b16 %v546
    %v611 = vpack.c.b16 %v580, %v579
    %v612 = vpack.c.b16 %v582, %v581
    %v613 = vpack.c.b16 %v584, %v583
    %v614 = vpack.c.b16 %v586, %v585
    %v615 = vpack.c.b16 %v588, %v587
    %v616 = vpack.c.b16 %v590, %v589
    %v617 = vpack.c.b16 %v592, %v591
    %v618 = vpack.c.b16 %v594, %v593
    %v619 = vpack.c.b16 %v596, %v595
    %v620 = vpack.c.b16 %v598, %v597
    %v621 = vpack.c.b16 %v600, %v599
    %v622 = vpack.c.b16 %v602, %v601
    %v623 = vpack.c.b16 %v604, %v603
    %v624 = vpack.c.b16 %v606, %v605
    %v625 = vpack.c.b16 %v608, %v607
    %v626 = vpack.c.b16 %v610, %v609
    %643 = vmatprep.subr.bf16.mxu0 0
    %644 = vmatpush1.bf16.msra.mxu0 %v611
    %645 = vmatprep.subr.bf16.mxu0 0
    %646 = vmatpush1.bf16.msra.mxu0 %v612
    %647 = vmatprep.subr.bf16.mxu0 0
    %648 = vmatpush1.bf16.msra.mxu0 %v613
    %649 = vmatprep.subr.bf16.mxu0 0
    %650 = vmatpush1.bf16.msra.mxu0 %v614
    %651 = vmatprep.subr.bf16.mxu0 0
    %652 = vmatpush1.bf16.msra.mxu0 %v615
    %653 = vmatprep.subr.bf16.mxu0 0
    %654 = vmatpush1.bf16.msra.mxu0 %v616
    %655 = vmatprep.subr.bf16.mxu0 0
    %656 = vmatpush1.bf16.msra.mxu0 %v617
    %657 = vmatprep.subr.bf16.mxu0 0
    %658 = vmatpush1.bf16.msra.mxu0 %v618
    %659 = vmatprep.subr.bf16.mxu0 0
    %660 = vmatpush1.bf16.msra.mxu0 %v619
    %661 = vmatprep.subr.bf16.mxu0 0
    %662 = vmatpush1.bf16.msra.mxu0 %v620
    %663 = vmatprep.subr.bf16.mxu0 0
    %664 = vmatpush1.bf16.msra.mxu0 %v621
    %665 = vmatprep.subr.bf16.mxu0 0
    %666 = vmatpush1.bf16.msra.mxu0 %v622
    %667 = vmatprep.subr.bf16.mxu0 0
    %668 = vmatpush1.bf16.msra.mxu0 %v623
    %669 = vmatprep.subr.bf16.mxu0 0
    %670 = vmatpush1.bf16.msra.mxu0 %v624
    %671 = vmatprep.subr.bf16.mxu0 0
    %672 = vmatpush1.bf16.msra.mxu0 %v625
    %673 = vmatprep.subr.bf16.mxu0 0
    %674 = vmatpush1.bf16.msra.mxu0 %v626
    %675 = vmatprep.mubr.bf16.mxu0 %v514
    %676 = vmatmul.mubr.bf16.gmra.mrb[0].mxu0 %v513
    %v677 = vpop.f32.mrb[0].mxu0
    %v678 = vadd.f32 0.0, %v677
    %v679 = vpop.f32.mrb[0].mxu0
    %v680 = vpop.f32.mrb[0].mxu0
    %v681 = vpop.f32.mrb[0].mxu0
    %682 = vdwg.mxu0
    %v683 = vadd.f32 %v494, %v678
    %v684 = vld [vmem:[#allocation2] sm:$0xc]
    %v685 = vld [vmem:[#allocation2 + $0x8] sm:$0xc]
    %v686 = vadd.f32 %v684, %v502
    %v687 = vadd.f32 %v685, %v506
    %v688 = vmax.f32 %v686, 0.0
    %v689 = vmax.f32 %v687, 0.0
    %v690 = vpack.c.bf16 %v688, %v688
    %v691 = vpack.c.bf16 %v689, %v689
    %s692 = scalar_lea.vmem [#allocation3], 128
    %v693 = vld [vmem:[%s692] sm:$0xf]
    %v694 = vld [vmem:[%s692 + $0x4] sm:$0xf]
    %v695 = vld [vmem:[%s692 + $0x8] sm:$0xf]
    %v696 = vld [vmem:[%s692 + $0xc] sm:$0xf]
    %v697 = vld [vmem:[%s692 + $0x10] sm:$0xf]
    %v698 = vld [vmem:[%s692 + $0x14] sm:$0xf]
    %v699 = vld [vmem:[%s692 + $0x18] sm:$0xf]
    %v700 = vld [vmem:[%s692 + $0x1c] sm:$0xf]
    %v701 = vld [vmem:[%s692 + $0x20] sm:$0xf]
    %v702 = vld [vmem:[%s692 + $0x24] sm:$0xf]
    %v703 = vld [vmem:[%s692 + $0x28] sm:$0xf]
    %v704 = vld [vmem:[%s692 + $0x2c] sm:$0xf]
    %v705 = vld [vmem:[%s692 + $0x30] sm:$0xf]
    %v706 = vld [vmem:[%s692 + $0x34] sm:$0xf]
    %v707 = vld [vmem:[%s692 + $0x38] sm:$0xf]
    %v708 = vld [vmem:[%s692 + $0x3c] sm:$0xf]
    %v709 = vld [vmem:[%s692 + $0x40] sm:$0xf]
    %v710 = vld [vmem:[%s692 + $0x44] sm:$0xf]
    %v711 = vld [vmem:[%s692 + $0x48] sm:$0xf]
    %v712 = vld [vmem:[%s692 + $0x4c] sm:$0xf]
    %v713 = vld [vmem:[%s692 + $0x50] sm:$0xf]
    %v714 = vld [vmem:[%s692 + $0x54] sm:$0xf]
    %v715 = vld [vmem:[%s692 + $0x58] sm:$0xf]
    %v716 = vld [vmem:[%s692 + $0x5c] sm:$0xf]
    %v717 = vld [vmem:[%s692 + $0x60] sm:$0xf]
    %v718 = vld [vmem:[%s692 + $0x64] sm:$0xf]
    %v719 = vld [vmem:[%s692 + $0x68] sm:$0xf]
    %v720 = vld [vmem:[%s692 + $0x6c] sm:$0xf]
    %v721 = vld [vmem:[%s692 + $0x70] sm:$0xf]
    %v722 = vld [vmem:[%s692 + $0x74] sm:$0xf]
    %v723 = vld [vmem:[%s692 + $0x78] sm:$0xf]
    %v724 = vld [vmem:[%s692 + $0x7c] sm:$0xf]
    %v727 = vrot.slane %v690, 1
    %v728 = vrot.slane %v691, 1
    %v763 = vunpack.c.l.b16 %v693
    %v764 = vunpack.c.l.b16 %v694
    %v765 = vunpack.c.l.b16 %v695
    %v766 = vunpack.c.l.b16 %v696
    %v767 = vunpack.c.l.b16 %v697
    %v768 = vunpack.c.l.b16 %v698
    %v769 = vunpack.c.l.b16 %v699
    %v770 = vunpack.c.l.b16 %v700
    %v771 = vunpack.c.l.b16 %v701
    %v772 = vunpack.c.l.b16 %v702
    %v773 = vunpack.c.l.b16 %v703
    %v774 = vunpack.c.l.b16 %v704
    %v775 = vunpack.c.l.b16 %v705
    %v776 = vunpack.c.l.b16 %v706
    %v777 = vunpack.c.l.b16 %v707
    %v778 = vunpack.c.l.b16 %v708
    %v779 = vunpack.c.l.b16 %v709
    %v780 = vunpack.c.l.b16 %v710
    %v781 = vunpack.c.l.b16 %v711
    %v782 = vunpack.c.l.b16 %v712
    %v783 = vunpack.c.l.b16 %v713
    %v784 = vunpack.c.l.b16 %v714
    %v785 = vunpack.c.l.b16 %v715
    %v786 = vunpack.c.l.b16 %v716
    %v787 = vunpack.c.l.b16 %v717
    %v788 = vunpack.c.l.b16 %v718
    %v789 = vunpack.c.l.b16 %v719
    %v790 = vunpack.c.l.b16 %v720
    %v791 = vunpack.c.l.b16 %v721
    %v792 = vunpack.c.l.b16 %v722
    %v793 = vunpack.c.l.b16 %v723
    %v794 = vunpack.c.l.b16 %v724
    %v795 = vpack.c.b16 %v764, %v763
    %v796 = vpack.c.b16 %v766, %v765
    %v797 = vpack.c.b16 %v768, %v767
    %v798 = vpack.c.b16 %v770, %v769
    %v799 = vpack.c.b16 %v772, %v771
    %v800 = vpack.c.b16 %v774, %v773
    %v801 = vpack.c.b16 %v776, %v775
    %v802 = vpack.c.b16 %v778, %v777
    %v803 = vpack.c.b16 %v780, %v779
    %v804 = vpack.c.b16 %v782, %v781
    %v805 = vpack.c.b16 %v784, %v783
    %v806 = vpack.c.b16 %v786, %v785
    %v807 = vpack.c.b16 %v788, %v787
    %v808 = vpack.c.b16 %v790, %v789
    %v809 = vpack.c.b16 %v792, %v791
    %v810 = vpack.c.b16 %v794, %v793
    %827 = vmatprep.subr.bf16.mxu0 0
    %828 = vmatpush1.bf16.msra.mxu0 %v795
    %829 = vmatprep.subr.bf16.mxu0 0
    %830 = vmatpush1.bf16.msra.mxu0 %v796
    %831 = vmatprep.subr.bf16.mxu0 0
    %832 = vmatpush1.bf16.msra.mxu0 %v797
    %833 = vmatprep.subr.bf16.mxu0 0
    %834 = vmatpush1.bf16.msra.mxu0 %v798
    %835 = vmatprep.subr.bf16.mxu0 0
    %836 = vmatpush1.bf16.msra.mxu0 %v799
    %837 = vmatprep.subr.bf16.mxu0 0
    %838 = vmatpush1.bf16.msra.mxu0 %v800
    %839 = vmatprep.subr.bf16.mxu0 0
    %840 = vmatpush1.bf16.msra.mxu0 %v801
    %841 = vmatprep.subr.bf16.mxu0 0
    %842 = vmatpush1.bf16.msra.mxu0 %v802
    %843 = vmatprep.subr.bf16.mxu0 0
    %844 = vmatpush1.bf16.msra.mxu0 %v803
    %845 = vmatprep.subr.bf16.mxu0 0
    %846 = vmatpush1.bf16.msra.mxu0 %v804
    %847 = vmatprep.subr.bf16.mxu0 0
    %848 = vmatpush1.bf16.msra.mxu0 %v805
    %849 = vmatprep.subr.bf16.mxu0 0
    %850 = vmatpush1.bf16.msra.mxu0 %v806
    %851 = vmatprep.subr.bf16.mxu0 0
    %852 = vmatpush1.bf16.msra.mxu0 %v807
    %853 = vmatprep.subr.bf16.mxu0 0
    %854 = vmatpush1.bf16.msra.mxu0 %v808
    %855 = vmatprep.subr.bf16.mxu0 0
    %856 = vmatpush1.bf16.msra.mxu0 %v809
    %857 = vmatprep.subr.bf16.mxu0 0
    %858 = vmatpush1.bf16.msra.mxu0 %v810
    %859 = vmatprep.mubr.bf16.mxu0 %v728
    %860 = vmatmul.mubr.bf16.gmra.mrb[0].mxu0 %v727
    %v861 = vpop.f32.mrb[0].mxu0
    %v862 = vadd.f32 0.0, %v861
    %v863 = vpop.f32.mrb[0].mxu0
    %v864 = vpop.f32.mrb[0].mxu0
    %v865 = vpop.f32.mrb[0].mxu0
    %866 = vdwg.mxu0
    %v867 = vadd.f32 %v683, %v862
    %v868 = vld [vmem:[#allocation2] sm:$0x30]
    %v869 = vld [vmem:[#allocation2 + $0x8] sm:$0x30]
    %v870 = vadd.f32 %v868, %v502
    %v871 = vadd.f32 %v869, %v506
    %v872 = vmax.f32 %v870, 0.0
    %v873 = vmax.f32 %v871, 0.0
    %v874 = vpack.c.bf16 %v872, %v872
    %v875 = vpack.c.bf16 %v873, %v873
    %s876 = scalar_lea.vmem [#allocation3], 256
    %v877 = vld [vmem:[%s876] sm:$0xf]
    %v878 = vld [vmem:[%s876 + $0x4] sm:$0xf]
    %v879 = vld [vmem:[%s876 + $0x8] sm:$0xf]
    %v880 = vld [vmem:[%s876 + $0xc] sm:$0xf]
    %v881 = vld [vmem:[%s876 + $0x10] sm:$0xf]
    %v882 = vld [vmem:[%s876 + $0x14] sm:$0xf]
    %v883 = vld [vmem:[%s876 + $0x18] sm:$0xf]
    %v884 = vld [vmem:[%s876 + $0x1c] sm:$0xf]
    %v885 = vld [vmem:[%s876 + $0x20] sm:$0xf]
    %v886 = vld [vmem:[%s876 + $0x24] sm:$0xf]
    %v887 = vld [vmem:[%s876 + $0x28] sm:$0xf]
    %v888 = vld [vmem:[%s876 + $0x2c] sm:$0xf]
    %v889 = vld [vmem:[%s876 + $0x30] sm:$0xf]
    %v890 = vld [vmem:[%s876 + $0x34] sm:$0xf]
    %v891 = vld [vmem:[%s876 + $0x38] sm:$0xf]
    %v892 = vld [vmem:[%s876 + $0x3c] sm:$0xf]
    %v893 = vld [vmem:[%s876 + $0x40] sm:$0xf]
    %v894 = vld [vmem:[%s876 + $0x44] sm:$0xf]
    %v895 = vld [vmem:[%s876 + $0x48] sm:$0xf]
    %v896 = vld [vmem:[%s876 + $0x4c] sm:$0xf]
    %v897 = vld [vmem:[%s876 + $0x50] sm:$0xf]
    %v898 = vld [vmem:[%s876 + $0x54] sm:$0xf]
    %v899 = vld [vmem:[%s876 + $0x58] sm:$0xf]
    %v900 = vld [vmem:[%s876 + $0x5c] sm:$0xf]
    %v901 = vld [vmem:[%s876 + $0x60] sm:$0xf]
    %v902 = vld [vmem:[%s876 + $0x64] sm:$0xf]
    %v903 = vld [vmem:[%s876 + $0x68] sm:$0xf]
    %v904 = vld [vmem:[%s876 + $0x6c] sm:$0xf]
    %v905 = vld [vmem:[%s876 + $0x70] sm:$0xf]
    %v906 = vld [vmem:[%s876 + $0x74] sm:$0xf]
    %v907 = vld [vmem:[%s876 + $0x78] sm:$0xf]
    %v908 = vld [vmem:[%s876 + $0x7c] sm:$0xf]
    %v911 = vrot.slane %v874, 2
    %v912 = vrot.slane %v875, 2
    %v947 = vunpack.c.l.b16 %v877
    %v948 = vunpack.c.l.b16 %v878
    %v949 = vunpack.c.l.b16 %v879
    %v950 = vunpack.c.l.b16 %v880
    %v951 = vunpack.c.l.b16 %v881
    %v952 = vunpack.c.l.b16 %v882
    %v953 = vunpack.c.l.b16 %v883
    %v954 = vunpack.c.l.b16 %v884
    %v955 = vunpack.c.l.b16 %v885
    %v956 = vunpack.c.l.b16 %v886
    %v957 = vunpack.c.l.b16 %v887
    %v958 = vunpack.c.l.b16 %v888
    %v959 = vunpack.c.l.b16 %v889
    %v960 = vunpack.c.l.b16 %v890
    %v961 = vunpack.c.l.b16 %v891
    %v962 = vunpack.c.l.b16 %v892
    %v963 = vunpack.c.l.b16 %v893
    %v964 = vunpack.c.l.b16 %v894
    %v965 = vunpack.c.l.b16 %v895
    %v966 = vunpack.c.l.b16 %v896
    %v967 = vunpack.c.l.b16 %v897
    %v968 = vunpack.c.l.b16 %v898
    %v969 = vunpack.c.l.b16 %v899
    %v970 = vunpack.c.l.b16 %v900
    %v971 = vunpack.c.l.b16 %v901
    %v972 = vunpack.c.l.b16 %v902
    %v973 = vunpack.c.l.b16 %v903
    %v974 = vunpack.c.l.b16 %v904
    %v975 = vunpack.c.l.b16 %v905
    %v976 = vunpack.c.l.b16 %v906
    %v977 = vunpack.c.l.b16 %v907
    %v978 = vunpack.c.l.b16 %v908
    %v979 = vpack.c.b16 %v948, %v947
    %v980 = vpack.c.b16 %v950, %v949
    %v981 = vpack.c.b16 %v952, %v951
    %v982 = vpack.c.b16 %v954, %v953
    %v983 = vpack.c.b16 %v956, %v955
    %v984 = vpack.c.b16 %v958, %v957
    %v985 = vpack.c.b16 %v960, %v959
    %v986 = vpack.c.b16 %v962, %v961
    %v987 = vpack.c.b16 %v964, %v963
    %v988 = vpack.c.b16 %v966, %v965
    %v989 = vpack.c.b16 %v968, %v967
    %v990 = vpack.c.b16 %v970, %v969
    %v991 = vpack.c.b16 %v972, %v971
    %v992 = vpack.c.b16 %v974, %v973
    %v993 = vpack.c.b16 %v976, %v975
    %v994 = vpack.c.b16 %v978, %v977
    %1011 = vmatprep.subr.bf16.mxu0 0
    %1012 = vmatpush1.bf16.msra.mxu0 %v979
    %1013 = vmatprep.subr.bf16.mxu0 0
    %1014 = vmatpush1.bf16.msra.mxu0 %v980
    %1015 = vmatprep.subr.bf16.mxu0 0
    %1016 = vmatpush1.bf16.msra.mxu0 %v981
    %1017 = vmatprep.subr.bf16.mxu0 0
    %1018 = vmatpush1.bf16.msra.mxu0 %v982
    %1019 = vmatprep.subr.bf16.mxu0 0
    %1020 = vmatpush1.bf16.msra.mxu0 %v983
    %1021 = vmatprep.subr.bf16.mxu0 0
    %1022 = vmatpush1.bf16.msra.mxu0 %v984
    %1023 = vmatprep.subr.bf16.mxu0 0
    %1024 = vmatpush1.bf16.msra.mxu0 %v985
    %1025 = vmatprep.subr.bf16.mxu0 0
    %1026 = vmatpush1.bf16.msra.mxu0 %v986
    %1027 = vmatprep.subr.bf16.mxu0 0
    %1028 = vmatpush1.bf16.msra.mxu0 %v987
    %1029 = vmatprep.subr.bf16.mxu0 0
    %1030 = vmatpush1.bf16.msra.mxu0 %v988
    %1031 = vmatprep.subr.bf16.mxu0 0
    %1032 = vmatpush1.bf16.msra.mxu0 %v989
    %1033 = vmatprep.subr.bf16.mxu0 0
    %1034 = vmatpush1.bf16.msra.mxu0 %v990
    %1035 = vmatprep.subr.bf16.mxu0 0
    %1036 = vmatpush1.bf16.msra.mxu0 %v991
    %1037 = vmatprep.subr.bf16.mxu0 0
    %1038 = vmatpush1.bf16.msra.mxu0 %v992
    %1039 = vmatprep.subr.bf16.mxu0 0
    %1040 = vmatpush1.bf16.msra.mxu0 %v993
    %1041 = vmatprep.subr.bf16.mxu0 0
    %1042 = vmatpush1.bf16.msra.mxu0 %v994
    %1043 = vmatprep.mubr.bf16.mxu0 %v912
    %1044 = vmatmul.mubr.bf16.gmra.mrb[0].mxu0 %v911
    %v1045 = vpop.f32.mrb[0].mxu0
    %v1046 = vadd.f32 0.0, %v1045
    %v1047 = vpop.f32.mrb[0].mxu0
    %v1048 = vpop.f32.mrb[0].mxu0
    %v1049 = vpop.f32.mrb[0].mxu0
    %1050 = vdwg.mxu0
    %v1051 = vadd.f32 %v867, %v1046
    %v1052 = vld [vmem:[#allocation2] sm:$0xc0]
    %v1053 = vld [vmem:[#allocation2 + $0x8] sm:$0xc0]
    %v1054 = vadd.f32 %v1052, %v502
    %v1055 = vadd.f32 %v1053, %v506
    %v1056 = vmax.f32 %v1054, 0.0
    %v1057 = vmax.f32 %v1055, 0.0
    %v1058 = vpack.c.bf16 %v1056, %v1056
    %v1059 = vpack.c.bf16 %v1057, %v1057
    %s1060 = scalar_lea.vmem [#allocation3], 384
    %v1061 = vld [vmem:[%s1060] sm:$0xf]
    %v1062 = vld [vmem:[%s1060 + $0x4] sm:$0xf]
    %v1063 = vld [vmem:[%s1060 + $0x8] sm:$0xf]
    %v1064 = vld [vmem:[%s1060 + $0xc] sm:$0xf]
    %v1065 = vld [vmem:[%s1060 + $0x10] sm:$0xf]
    %v1066 = vld [vmem:[%s1060 + $0x14] sm:$0xf]
    %v1067 = vld [vmem:[%s1060 + $0x18] sm:$0xf]
    %v1068 = vld [vmem:[%s1060 + $0x1c] sm:$0xf]
    %v1069 = vld [vmem:[%s1060 + $0x20] sm:$0xf]
    %v1070 = vld [vmem:[%s1060 + $0x24] sm:$0xf]
    %v1071 = vld [vmem:[%s1060 + $0x28] sm:$0xf]
    %v1072 = vld [vmem:[%s1060 + $0x2c] sm:$0xf]
    %v1073 = vld [vmem:[%s1060 + $0x30] sm:$0xf]
    %v1074 = vld [vmem:[%s1060 + $0x34] sm:$0xf]
    %v1075 = vld [vmem:[%s1060 + $0x38] sm:$0xf]
    %v1076 = vld [vmem:[%s1060 + $0x3c] sm:$0xf]
    %v1077 = vld [vmem:[%s1060 + $0x40] sm:$0xf]
    %v1078 = vld [vmem:[%s1060 + $0x44] sm:$0xf]
    %v1079 = vld [vmem:[%s1060 + $0x48] sm:$0xf]
    %v1080 = vld [vmem:[%s1060 + $0x4c] sm:$0xf]
    %v1081 = vld [vmem:[%s1060 + $0x50] sm:$0xf]
    %v1082 = vld [vmem:[%s1060 + $0x54] sm:$0xf]
    %v1083 = vld [vmem:[%s1060 + $0x58] sm:$0xf]
    %v1084 = vld [vmem:[%s1060 + $0x5c] sm:$0xf]
    %v1085 = vld [vmem:[%s1060 + $0x60] sm:$0xf]
    %v1086 = vld [vmem:[%s1060 + $0x64] sm:$0xf]
    %v1087 = vld [vmem:[%s1060 + $0x68] sm:$0xf]
    %v1088 = vld [vmem:[%s1060 + $0x6c] sm:$0xf]
    %v1089 = vld [vmem:[%s1060 + $0x70] sm:$0xf]
    %v1090 = vld [vmem:[%s1060 + $0x74] sm:$0xf]
    %v1091 = vld [vmem:[%s1060 + $0x78] sm:$0xf]
    %v1092 = vld [vmem:[%s1060 + $0x7c] sm:$0xf]
    %v1095 = vrot.slane %v1058, 3
    %v1096 = vrot.slane %v1059, 3
    %v1131 = vunpack.c.l.b16 %v1061
    %v1132 = vunpack.c.l.b16 %v1062
    %v1133 = vunpack.c.l.b16 %v1063
    %v1134 = vunpack.c.l.b16 %v1064
    %v1135 = vunpack.c.l.b16 %v1065
    %v1136 = vunpack.c.l.b16 %v1066
    %v1137 = vunpack.c.l.b16 %v1067
    %v1138 = vunpack.c.l.b16 %v1068
    %v1139 = vunpack.c.l.b16 %v1069
    %v1140 = vunpack.c.l.b16 %v1070
    %v1141 = vunpack.c.l.b16 %v1071
    %v1142 = vunpack.c.l.b16 %v1072
    %v1143 = vunpack.c.l.b16 %v1073
    %v1144 = vunpack.c.l.b16 %v1074
    %v1145 = vunpack.c.l.b16 %v1075
    %v1146 = vunpack.c.l.b16 %v1076
    %v1147 = vunpack.c.l.b16 %v1077
    %v1148 = vunpack.c.l.b16 %v1078
    %v1149 = vunpack.c.l.b16 %v1079
    %v1150 = vunpack.c.l.b16 %v1080
    %v1151 = vunpack.c.l.b16 %v1081
    %v1152 = vunpack.c.l.b16 %v1082
    %v1153 = vunpack.c.l.b16 %v1083
    %v1154 = vunpack.c.l.b16 %v1084
    %v1155 = vunpack.c.l.b16 %v1085
    %v1156 = vunpack.c.l.b16 %v1086
    %v1157 = vunpack.c.l.b16 %v1087
    %v1158 = vunpack.c.l.b16 %v1088
    %v1159 = vunpack.c.l.b16 %v1089
    %v1160 = vunpack.c.l.b16 %v1090
    %v1161 = vunpack.c.l.b16 %v1091
    %v1162 = vunpack.c.l.b16 %v1092
    %v1163 = vpack.c.b16 %v1132, %v1131
    %v1164 = vpack.c.b16 %v1134, %v1133
    %v1165 = vpack.c.b16 %v1136, %v1135
    %v1166 = vpack.c.b16 %v1138, %v1137
    %v1167 = vpack.c.b16 %v1140, %v1139
    %v1168 = vpack.c.b16 %v1142, %v1141
    %v1169 = vpack.c.b16 %v1144, %v1143
    %v1170 = vpack.c.b16 %v1146, %v1145
    %v1171 = vpack.c.b16 %v1148, %v1147
    %v1172 = vpack.c.b16 %v1150, %v1149
    %v1173 = vpack.c.b16 %v1152, %v1151
    %v1174 = vpack.c.b16 %v1154, %v1153
    %v1175 = vpack.c.b16 %v1156, %v1155
    %v1176 = vpack.c.b16 %v1158, %v1157
    %v1177 = vpack.c.b16 %v1160, %v1159
    %v1178 = vpack.c.b16 %v1162, %v1161
    %1195 = vmatprep.subr.bf16.mxu0 0
    %1196 = vmatpush1.bf16.msra.mxu0 %v1163
    %1197 = vmatprep.subr.bf16.mxu0 0
    %1198 = vmatpush1.bf16.msra.mxu0 %v1164
    %1199 = vmatprep.subr.bf16.mxu0 0
    %1200 = vmatpush1.bf16.msra.mxu0 %v1165
    %1201 = vmatprep.subr.bf16.mxu0 0
    %1202 = vmatpush1.bf16.msra.mxu0 %v1166
    %1203 = vmatprep.subr.bf16.mxu0 0
    %1204 = vmatpush1.bf16.msra.mxu0 %v1167
    %1205 = vmatprep.subr.bf16.mxu0 0
    %1206 = vmatpush1.bf16.msra.mxu0 %v1168
    %1207 = vmatprep.subr.bf16.mxu0 0
    %1208 = vmatpush1.bf16.msra.mxu0 %v1169
    %1209 = vmatprep.subr.bf16.mxu0 0
    %1210 = vmatpush1.bf16.msra.mxu0 %v1170
    %1211 = vmatprep.subr.bf16.mxu0 0
    %1212 = vmatpush1.bf16.msra.mxu0 %v1171
    %1213 = vmatprep.subr.bf16.mxu0 0
    %1214 = vmatpush1.bf16.msra.mxu0 %v1172
    %1215 = vmatprep.subr.bf16.mxu0 0
    %1216 = vmatpush1.bf16.msra.mxu0 %v1173
    %1217 = vmatprep.subr.bf16.mxu0 0
    %1218 = vmatpush1.bf16.msra.mxu0 %v1174
    %1219 = vmatprep.subr.bf16.mxu0 0
    %1220 = vmatpush1.bf16.msra.mxu0 %v1175
    %1221 = vmatprep.subr.bf16.mxu0 0
    %1222 = vmatpush1.bf16.msra.mxu0 %v1176
    %1223 = vmatprep.subr.bf16.mxu0 0
    %1224 = vmatpush1.bf16.msra.mxu0 %v1177
    %1225 = vmatprep.subr.bf16.mxu0 0
    %1226 = vmatpush1.bf16.msra.mxu0 %v1178
    %1227 = vmatprep.mubr.bf16.mxu0 %v1096
    %1228 = vmatmul.mubr.bf16.gmra.mrb[0].mxu0 %v1095
    %v1229 = vpop.f32.mrb[0].mxu0
    %v1230 = vadd.f32 0.0, %v1229
    %v1231 = vpop.f32.mrb[0].mxu0
    %v1232 = vpop.f32.mrb[0].mxu0
    %v1233 = vpop.f32.mrb[0].mxu0
    %1234 = vdwg.mxu0
    %v1235 = vadd.f32 %v1051, %v1230
    %v1236 = vld [vmem:[#allocation2 + $0x10] sm:$0x3]
    %v1237 = vld [vmem:[#allocation2 + $0x18] sm:$0x3]
    %v1238 = vadd.f32 %v1236, %v502
    %v1239 = vadd.f32 %v1237, %v506
    %v1240 = vmax.f32 %v1238, 0.0
    %v1241 = vmax.f32 %v1239, 0.0
    %v1242 = vpack.c.bf16 %v1240, %v1240
    %v1243 = vpack.c.bf16 %v1241, %v1241
    %s1244 = scalar_lea.vmem [#allocation3], 512
    %v1245 = vld [vmem:[%s1244] sm:$0xf]
    %v1246 = vld [vmem:[%s1244 + $0x4] sm:$0xf]
    %v1247 = vld [vmem:[%s1244 + $0x8] sm:$0xf]
    %v1248 = vld [vmem:[%s1244 + $0xc] sm:$0xf]
    %v1249 = vld [vmem:[%s1244 + $0x10] sm:$0xf]
    %v1250 = vld [vmem:[%s1244 + $0x14] sm:$0xf]
    %v1251 = vld [vmem:[%s1244 + $0x18] sm:$0xf]
    %v1252 = vld [vmem:[%s1244 + $0x1c] sm:$0xf]
    %v1253 = vld [vmem:[%s1244 + $0x20] sm:$0xf]
    %v1254 = vld [vmem:[%s1244 + $0x24] sm:$0xf]
    %v1255 = vld [vmem:[%s1244 + $0x28] sm:$0xf]
    %v1256 = vld [vmem:[%s1244 + $0x2c] sm:$0xf]
    %v1257 = vld [vmem:[%s1244 + $0x30] sm:$0xf]
    %v1258 = vld [vmem:[%s1244 + $0x34] sm:$0xf]
    %v1259 = vld [vmem:[%s1244 + $0x38] sm:$0xf]
    %v1260 = vld [vmem:[%s1244 + $0x3c] sm:$0xf]
    %v1261 = vld [vmem:[%s1244 + $0x40] sm:$0xf]
    %v1262 = vld [vmem:[%s1244 + $0x44] sm:$0xf]
    %v1263 = vld [vmem:[%s1244 + $0x48] sm:$0xf]
    %v1264 = vld [vmem:[%s1244 + $0x4c] sm:$0xf]
    %v1265 = vld [vmem:[%s1244 + $0x50] sm:$0xf]
    %v1266 = vld [vmem:[%s1244 + $0x54] sm:$0xf]
    %v1267 = vld [vmem:[%s1244 + $0x58] sm:$0xf]
    %v1268 = vld [vmem:[%s1244 + $0x5c] sm:$0xf]
    %v1269 = vld [vmem:[%s1244 + $0x60] sm:$0xf]
    %v1270 = vld [vmem:[%s1244 + $0x64] sm:$0xf]
    %v1271 = vld [vmem:[%s1244 + $0x68] sm:$0xf]
    %v1272 = vld [vmem:[%s1244 + $0x6c] sm:$0xf]
    %v1273 = vld [vmem:[%s1244 + $0x70] sm:$0xf]
    %v1274 = vld [vmem:[%s1244 + $0x74] sm:$0xf]
    %v1275 = vld [vmem:[%s1244 + $0x78] sm:$0xf]
    %v1276 = vld [vmem:[%s1244 + $0x7c] sm:$0xf]
    %v1309 = vunpack.c.l.b16 %v1245
    %v1310 = vunpack.c.l.b16 %v1246
    %v1311 = vunpack.c.l.b16 %v1247
    %v1312 = vunpack.c.l.b16 %v1248
    %v1313 = vunpack.c.l.b16 %v1249
    %v1314 = vunpack.c.l.b16 %v1250
    %v1315 = vunpack.c.l.b16 %v1251
    %v1316 = vunpack.c.l.b16 %v1252
    %v1317 = vunpack.c.l.b16 %v1253
    %v1318 = vunpack.c.l.b16 %v1254
    %v1319 = vunpack.c.l.b16 %v1255
    %v1320 = vunpack.c.l.b16 %v1256
    %v1321 = vunpack.c.l.b16 %v1257
    %v1322 = vunpack.c.l.b16 %v1258
    %v1323 = vunpack.c.l.b16 %v1259
    %v1324 = vunpack.c.l.b16 %v1260
    %v1325 = vunpack.c.l.b16 %v1261
    %v1326 = vunpack.c.l.b16 %v1262
    %v1327 = vunpack.c.l.b16 %v1263
    %v1328 = vunpack.c.l.b16 %v1264
    %v1329 = vunpack.c.l.b16 %v1265
    %v1330 = vunpack.c.l.b16 %v1266
    %v1331 = vunpack.c.l.b16 %v1267
    %v1332 = vunpack.c.l.b16 %v1268
    %v1333 = vunpack.c.l.b16 %v1269
    %v1334 = vunpack.c.l.b16 %v1270
    %v1335 = vunpack.c.l.b16 %v1271
    %v1336 = vunpack.c.l.b16 %v1272
    %v1337 = vunpack.c.l.b16 %v1273
    %v1338 = vunpack.c.l.b16 %v1274
    %v1339 = vunpack.c.l.b16 %v1275
    %v1340 = vunpack.c.l.b16 %v1276
    %v1341 = vpack.c.b16 %v1310, %v1309
    %v1342 = vpack.c.b16 %v1312, %v1311
    %v1343 = vpack.c.b16 %v1314, %v1313
    %v1344 = vpack.c.b16 %v1316, %v1315
    %v1345 = vpack.c.b16 %v1318, %v1317
    %v1346 = vpack.c.b16 %v1320, %v1319
    %v1347 = vpack.c.b16 %v1322, %v1321
    %v1348 = vpack.c.b16 %v1324, %v1323
    %v1349 = vpack.c.b16 %v1326, %v1325
    %v1350 = vpack.c.b16 %v1328, %v1327
    %v1351 = vpack.c.b16 %v1330, %v1329
    %v1352 = vpack.c.b16 %v1332, %v1331
    %v1353 = vpack.c.b16 %v1334, %v1333
    %v1354 = vpack.c.b16 %v1336, %v1335
    %v1355 = vpack.c.b16 %v1338, %v1337
    %v1356 = vpack.c.b16 %v1340, %v1339
    %1373 = vmatprep.subr.bf16.mxu0 0
    %1374 = vmatpush1.bf16.msra.mxu0 %v1341
    %1375 = vmatprep.subr.bf16.mxu0 0
    %1376 = vmatpush1.bf16.msra.mxu0 %v1342
    %1377 = vmatprep.subr.bf16.mxu0 0
    %1378 = vmatpush1.bf16.msra.mxu0 %v1343
    %1379 = vmatprep.subr.bf16.mxu0 0
    %1380 = vmatpush1.bf16.msra.mxu0 %v1344
    %1381 = vmatprep.subr.bf16.mxu0 0
    %1382 = vmatpush1.bf16.msra.mxu0 %v1345
    %1383 = vmatprep.subr.bf16.mxu0 0
    %1384 = vmatpush1.bf16.msra.mxu0 %v1346
    %1385 = vmatprep.subr.bf16.mxu0 0
    %1386 = vmatpush1.bf16.msra.mxu0 %v1347
    %1387 = vmatprep.subr.bf16.mxu0 0
    %1388 = vmatpush1.bf16.msra.mxu0 %v1348
    %1389 = vmatprep.subr.bf16.mxu0 0
    %1390 = vmatpush1.bf16.msra.mxu0 %v1349
    %1391 = vmatprep.subr.bf16.mxu0 0
    %1392 = vmatpush1.bf16.msra.mxu0 %v1350
    %1393 = vmatprep.subr.bf16.mxu0 0
    %1394 = vmatpush1.bf16.msra.mxu0 %v1351
    %1395 = vmatprep.subr.bf16.mxu0 0
    %1396 = vmatpush1.bf16.msra.mxu0 %v1352
    %1397 = vmatprep.subr.bf16.mxu0 0
    %1398 = vmatpush1.bf16.msra.mxu0 %v1353
    %1399 = vmatprep.subr.bf16.mxu0 0
    %1400 = vmatpush1.bf16.msra.mxu0 %v1354
    %1401 = vmatprep.subr.bf16.mxu0 0
    %1402 = vmatpush1.bf16.msra.mxu0 %v1355
    %1403 = vmatprep.subr.bf16.mxu0 0
    %1404 = vmatpush1.bf16.msra.mxu0 %v1356
    %1405 = vmatprep.mubr.bf16.mxu0 %v1243
    %1406 = vmatmul.mubr.bf16.gmra.mrb[0].mxu0 %v1242
    %v1407 = vpop.f32.mrb[0].mxu0
    %v1408 = vadd.f32 0.0, %v1407
    %v1409 = vpop.f32.mrb[0].mxu0
    %v1410 = vpop.f32.mrb[0].mxu0
    %v1411 = vpop.f32.mrb[0].mxu0
    %1412 = vdwg.mxu0
    %v1413 = vadd.f32 %v1235, %v1408
    %v1414 = vld [vmem:[#allocation2 + $0x10] sm:$0xc]
    %v1415 = vld [vmem:[#allocation2 + $0x18] sm:$0xc]
    %v1416 = vadd.f32 %v1414, %v502
    %v1417 = vadd.f32 %v1415, %v506
    %v1418 = vmax.f32 %v1416, 0.0
    %v1419 = vmax.f32 %v1417, 0.0
    %v1420 = vpack.c.bf16 %v1418, %v1418
    %v1421 = vpack.c.bf16 %v1419, %v1419
    %s1422 = scalar_lea.vmem [#allocation3], 640
    %v1423 = vld [vmem:[%s1422] sm:$0xf]
    %v1424 = vld [vmem:[%s1422 + $0x4] sm:$0xf]
    %v1425 = vld [vmem:[%s1422 + $0x8] sm:$0xf]
    %v1426 = vld [vmem:[%s1422 + $0xc] sm:$0xf]
    %v1427 = vld [vmem:[%s1422 + $0x10] sm:$0xf]
    %v1428 = vld [vmem:[%s1422 + $0x14] sm:$0xf]
    %v1429 = vld [vmem:[%s1422 + $0x18] sm:$0xf]
    %v1430 = vld [vmem:[%s1422 + $0x1c] sm:$0xf]
    %v1431 = vld [vmem:[%s1422 + $0x20] sm:$0xf]
    %v1432 = vld [vmem:[%s1422 + $0x24] sm:$0xf]
    %v1433 = vld [vmem:[%s1422 + $0x28] sm:$0xf]
    %v1434 = vld [vmem:[%s1422 + $0x2c] sm:$0xf]
    %v1435 = vld [vmem:[%s1422 + $0x30] sm:$0xf]
    %v1436 = vld [vmem:[%s1422 + $0x34] sm:$0xf]
    %v1437 = vld [vmem:[%s1422 + $0x38] sm:$0xf]
    %v1438 = vld [vmem:[%s1422 + $0x3c] sm:$0xf]
    %v1439 = vld [vmem:[%s1422 + $0x40] sm:$0xf]
    %v1440 = vld [vmem:[%s1422 + $0x44] sm:$0xf]
    %v1441 = vld [vmem:[%s1422 + $0x48] sm:$0xf]
    %v1442 = vld [vmem:[%s1422 + $0x4c] sm:$0xf]
    %v1443 = vld [vmem:[%s1422 + $0x50] sm:$0xf]
    %v1444 = vld [vmem:[%s1422 + $0x54] sm:$0xf]
    %v1445 = vld [vmem:[%s1422 + $0x58] sm:$0xf]
    %v1446 = vld [vmem:[%s1422 + $0x5c] sm:$0xf]
    %v1447 = vld [vmem:[%s1422 + $0x60] sm:$0xf]
    %v1448 = vld [vmem:[%s1422 + $0x64] sm:$0xf]
    %v1449 = vld [vmem:[%s1422 + $0x68] sm:$0xf]
    %v1450 = vld [vmem:[%s1422 + $0x6c] sm:$0xf]
    %v1451 = vld [vmem:[%s1422 + $0x70] sm:$0xf]
    %v1452 = vld [vmem:[%s1422 + $0x74] sm:$0xf]
    %v1453 = vld [vmem:[%s1422 + $0x78] sm:$0xf]
    %v1454 = vld [vmem:[%s1422 + $0x7c] sm:$0xf]
    %v1457 = vrot.slane %v1420, 1
    %v1458 = vrot.slane %v1421, 1
    %v1493 = vunpack.c.l.b16 %v1423
    %v1494 = vunpack.c.l.b16 %v1424
    %v1495 = vunpack.c.l.b16 %v1425
    %v1496 = vunpack.c.l.b16 %v1426
    %v1497 = vunpack.c.l.b16 %v1427
    %v1498 = vunpack.c.l.b16 %v1428
    %v1499 = vunpack.c.l.b16 %v1429
    %v1500 = vunpack.c.l.b16 %v1430
    %v1501 = vunpack.c.l.b16 %v1431
    %v1502 = vunpack.c.l.b16 %v1432
    %v1503 = vunpack.c.l.b16 %v1433
    %v1504 = vunpack.c.l.b16 %v1434
    %v1505 = vunpack.c.l.b16 %v1435
    %v1506 = vunpack.c.l.b16 %v1436
    %v1507 = vunpack.c.l.b16 %v1437
    %v1508 = vunpack.c.l.b16 %v1438
    %v1509 = vunpack.c.l.b16 %v1439
    %v1510 = vunpack.c.l.b16 %v1440
    %v1511 = vunpack.c.l.b16 %v1441
    %v1512 = vunpack.c.l.b16 %v1442
    %v1513 = vunpack.c.l.b16 %v1443
    %v1514 = vunpack.c.l.b16 %v1444
    %v1515 = vunpack.c.l.b16 %v1445
    %v1516 = vunpack.c.l.b16 %v1446
    %v1517 = vunpack.c.l.b16 %v1447
    %v1518 = vunpack.c.l.b16 %v1448
    %v1519 = vunpack.c.l.b16 %v1449
    %v1520 = vunpack.c.l.b16 %v1450
    %v1521 = vunpack.c.l.b16 %v1451
    %v1522 = vunpack.c.l.b16 %v1452
    %v1523 = vunpack.c.l.b16 %v1453
    %v1524 = vunpack.c.l.b16 %v1454
    %v1525 = vpack.c.b16 %v1494, %v1493
    %v1526 = vpack.c.b16 %v1496, %v1495
    %v1527 = vpack.c.b16 %v1498, %v1497
    %v1528 = vpack.c.b16 %v1500, %v1499
    %v1529 = vpack.c.b16 %v1502, %v1501
    %v1530 = vpack.c.b16 %v1504, %v1503
    %v1531 = vpack.c.b16 %v1506, %v1505
    %v1532 = vpack.c.b16 %v1508, %v1507
    %v1533 = vpack.c.b16 %v1510, %v1509
    %v1534 = vpack.c.b16 %v1512, %v1511
    %v1535 = vpack.c.b16 %v1514, %v1513
    %v1536 = vpack.c.b16 %v1516, %v1515
    %v1537 = vpack.c.b16 %v1518, %v1517
    %v1538 = vpack.c.b16 %v1520, %v1519
    %v1539 = vpack.c.b16 %v1522, %v1521
    %v1540 = vpack.c.b16 %v1524, %v1523
    %1557 = vmatprep.subr.bf16.mxu0 0
    %1558 = vmatpush1.bf16.msra.mxu0 %v1525
    %1559 = vmatprep.subr.bf16.mxu0 0
    %1560 = vmatpush1.bf16.msra.mxu0 %v1526
    %1561 = vmatprep.subr.bf16.mxu0 0
    %1562 = vmatpush1.bf16.msra.mxu0 %v1527
    %1563 = vmatprep.subr.bf16.mxu0 0
    %1564 = vmatpush1.bf16.msra.mxu0 %v1528
    %1565 = vmatprep.subr.bf16.mxu0 0
    %1566 = vmatpush1.bf16.msra.mxu0 %v1529
    %1567 = vmatprep.subr.bf16.mxu0 0
    %1568 = vmatpush1.bf16.msra.mxu0 %v1530
    %1569 = vmatprep.subr.bf16.mxu0 0
    %1570 = vmatpush1.bf16.msra.mxu0 %v1531
    %1571 = vmatprep.subr.bf16.mxu0 0
    %1572 = vmatpush1.bf16.msra.mxu0 %v1532
    %1573 = vmatprep.subr.bf16.mxu0 0
    %1574 = vmatpush1.bf16.msra.mxu0 %v1533
    %1575 = vmatprep.subr.bf16.mxu0 0
    %1576 = vmatpush1.bf16.msra.mxu0 %v1534
    %1577 = vmatprep.subr.bf16.mxu0 0
    %1578 = vmatpush1.bf16.msra.mxu0 %v1535
    %1579 = vmatprep.subr.bf16.mxu0 0
    %1580 = vmatpush1.bf16.msra.mxu0 %v1536
    %1581 = vmatprep.subr.bf16.mxu0 0
    %1582 = vmatpush1.bf16.msra.mxu0 %v1537
    %1583 = vmatprep.subr.bf16.mxu0 0
    %1584 = vmatpush1.bf16.msra.mxu0 %v1538
    %1585 = vmatprep.subr.bf16.mxu0 0
    %1586 = vmatpush1.bf16.msra.mxu0 %v1539
    %1587 = vmatprep.subr.bf16.mxu0 0
    %1588 = vmatpush1.bf16.msra.mxu0 %v1540
    %1589 = vmatprep.mubr.bf16.mxu0 %v1458
    %1590 = vmatmul.mubr.bf16.gmra.mrb[0].mxu0 %v1457
    %v1591 = vpop.f32.mrb[0].mxu0
    %v1592 = vadd.f32 0.0, %v1591
    %v1593 = vpop.f32.mrb[0].mxu0
    %v1594 = vpop.f32.mrb[0].mxu0
    %v1595 = vpop.f32.mrb[0].mxu0
    %1596 = vdwg.mxu0
    %v1597 = vadd.f32 %v1413, %v1592
    %v1598 = vld [vmem:[#allocation2 + $0x10] sm:$0x30]
    %v1599 = vld [vmem:[#allocation2 + $0x18] sm:$0x30]
    %v1600 = vadd.f32 %v1598, %v502
    %v1601 = vadd.f32 %v1599, %v506
    %v1602 = vmax.f32 %v1600, 0.0
    %v1603 = vmax.f32 %v1601, 0.0
    %v1604 = vpack.c.bf16 %v1602, %v1602
    %v1605 = vpack.c.bf16 %v1603, %v1603
    %s1606 = scalar_lea.vmem [#allocation3], 768
    %v1607 = vld [vmem:[%s1606] sm:$0xf]
    %v1608 = vld [vmem:[%s1606 + $0x4] sm:$0xf]
    %v1609 = vld [vmem:[%s1606 + $0x8] sm:$0xf]
    %v1610 = vld [vmem:[%s1606 + $0xc] sm:$0xf]
    %v1611 = vld [vmem:[%s1606 + $0x10] sm:$0xf]
    %v1612 = vld [vmem:[%s1606 + $0x14] sm:$0xf]
    %v1613 = vld [vmem:[%s1606 + $0x18] sm:$0xf]
    %v1614 = vld [vmem:[%s1606 + $0x1c] sm:$0xf]
    %v1615 = vld [vmem:[%s1606 + $0x20] sm:$0xf]
    %v1616 = vld [vmem:[%s1606 + $0x24] sm:$0xf]
    %v1617 = vld [vmem:[%s1606 + $0x28] sm:$0xf]
    %v1618 = vld [vmem:[%s1606 + $0x2c] sm:$0xf]
    %v1619 = vld [vmem:[%s1606 + $0x30] sm:$0xf]
    %v1620 = vld [vmem:[%s1606 + $0x34] sm:$0xf]
    %v1621 = vld [vmem:[%s1606 + $0x38] sm:$0xf]
    %v1622 = vld [vmem:[%s1606 + $0x3c] sm:$0xf]
    %v1623 = vld [vmem:[%s1606 + $0x40] sm:$0xf]
    %v1624 = vld [vmem:[%s1606 + $0x44] sm:$0xf]
    %v1625 = vld [vmem:[%s1606 + $0x48] sm:$0xf]
    %v1626 = vld [vmem:[%s1606 + $0x4c] sm:$0xf]
    %v1627 = vld [vmem:[%s1606 + $0x50] sm:$0xf]
    %v1628 = vld [vmem:[%s1606 + $0x54] sm:$0xf]
    %v1629 = vld [vmem:[%s1606 + $0x58] sm:$0xf]
    %v1630 = vld [vmem:[%s1606 + $0x5c] sm:$0xf]
    %v1631 = vld [vmem:[%s1606 + $0x60] sm:$0xf]
    %v1632 = vld [vmem:[%s1606 + $0x64] sm:$0xf]
    %v1633 = vld [vmem:[%s1606 + $0x68] sm:$0xf]
    %v1634 = vld [vmem:[%s1606 + $0x6c] sm:$0xf]
    %v1635 = vld [vmem:[%s1606 + $0x70] sm:$0xf]
    %v1636 = vld [vmem:[%s1606 + $0x74] sm:$0xf]
    %v1637 = vld [vmem:[%s1606 + $0x78] sm:$0xf]
    %v1638 = vld [vmem:[%s1606 + $0x7c] sm:$0xf]
    %v1641 = vrot.slane %v1604, 2
    %v1642 = vrot.slane %v1605, 2
    %v1677 = vunpack.c.l.b16 %v1607
    %v1678 = vunpack.c.l.b16 %v1608
    %v1679 = vunpack.c.l.b16 %v1609
    %v1680 = vunpack.c.l.b16 %v1610
    %v1681 = vunpack.c.l.b16 %v1611
    %v1682 = vunpack.c.l.b16 %v1612
    %v1683 = vunpack.c.l.b16 %v1613
    %v1684 = vunpack.c.l.b16 %v1614
    %v1685 = vunpack.c.l.b16 %v1615
    %v1686 = vunpack.c.l.b16 %v1616
    %v1687 = vunpack.c.l.b16 %v1617
    %v1688 = vunpack.c.l.b16 %v1618
    %v1689 = vunpack.c.l.b16 %v1619
    %v1690 = vunpack.c.l.b16 %v1620
    %v1691 = vunpack.c.l.b16 %v1621
    %v1692 = vunpack.c.l.b16 %v1622
    %v1693 = vunpack.c.l.b16 %v1623
    %v1694 = vunpack.c.l.b16 %v1624
    %v1695 = vunpack.c.l.b16 %v1625
    %v1696 = vunpack.c.l.b16 %v1626
    %v1697 = vunpack.c.l.b16 %v1627
    %v1698 = vunpack.c.l.b16 %v1628
    %v1699 = vunpack.c.l.b16 %v1629
    %v1700 = vunpack.c.l.b16 %v1630
    %v1701 = vunpack.c.l.b16 %v1631
    %v1702 = vunpack.c.l.b16 %v1632
    %v1703 = vunpack.c.l.b16 %v1633
    %v1704 = vunpack.c.l.b16 %v1634
    %v1705 = vunpack.c.l.b16 %v1635
    %v1706 = vunpack.c.l.b16 %v1636
    %v1707 = vunpack.c.l.b16 %v1637
    %v1708 = vunpack.c.l.b16 %v1638
    %v1709 = vpack.c.b16 %v1678, %v1677
    %v1710 = vpack.c.b16 %v1680, %v1679
    %v1711 = vpack.c.b16 %v1682, %v1681
    %v1712 = vpack.c.b16 %v1684, %v1683
    %v1713 = vpack.c.b16 %v1686, %v1685
    %v1714 = vpack.c.b16 %v1688, %v1687
    %v1715 = vpack.c.b16 %v1690, %v1689
    %v1716 = vpack.c.b16 %v1692, %v1691
    %v1717 = vpack.c.b16 %v1694, %v1693
    %v1718 = vpack.c.b16 %v1696, %v1695
    %v1719 = vpack.c.b16 %v1698, %v1697
    %v1720 = vpack.c.b16 %v1700, %v1699
    %v1721 = vpack.c.b16 %v1702, %v1701
    %v1722 = vpack.c.b16 %v1704, %v1703
    %v1723 = vpack.c.b16 %v1706, %v1705
    %v1724 = vpack.c.b16 %v1708, %v1707
    %1741 = vmatprep.subr.bf16.mxu0 0
    %1742 = vmatpush1.bf16.msra.mxu0 %v1709
    %1743 = vmatprep.subr.bf16.mxu0 0
    %1744 = vmatpush1.bf16.msra.mxu0 %v1710
    %1745 = vmatprep.subr.bf16.mxu0 0
    %1746 = vmatpush1.bf16.msra.mxu0 %v1711
    %1747 = vmatprep.subr.bf16.mxu0 0
    %1748 = vmatpush1.bf16.msra.mxu0 %v1712
    %1749 = vmatprep.subr.bf16.mxu0 0
    %1750 = vmatpush1.bf16.msra.mxu0 %v1713
    %1751 = vmatprep.subr.bf16.mxu0 0
    %1752 = vmatpush1.bf16.msra.mxu0 %v1714
    %1753 = vmatprep.subr.bf16.mxu0 0
    %1754 = vmatpush1.bf16.msra.mxu0 %v1715
    %1755 = vmatprep.subr.bf16.mxu0 0
    %1756 = vmatpush1.bf16.msra.mxu0 %v1716
    %1757 = vmatprep.subr.bf16.mxu0 0
    %1758 = vmatpush1.bf16.msra.mxu0 %v1717
    %1759 = vmatprep.subr.bf16.mxu0 0
    %1760 = vmatpush1.bf16.msra.mxu0 %v1718
    %1761 = vmatprep.subr.bf16.mxu0 0
    %1762 = vmatpush1.bf16.msra.mxu0 %v1719
    %1763 = vmatprep.subr.bf16.mxu0 0
    %1764 = vmatpush1.bf16.msra.mxu0 %v1720
    %1765 = vmatprep.subr.bf16.mxu0 0
    %1766 = vmatpush1.bf16.msra.mxu0 %v1721
    %1767 = vmatprep.subr.bf16.mxu0 0
    %1768 = vmatpush1.bf16.msra.mxu0 %v1722
    %1769 = vmatprep.subr.bf16.mxu0 0
    %1770 = vmatpush1.bf16.msra.mxu0 %v1723
    %1771 = vmatprep.subr.bf16.mxu0 0
    %1772 = vmatpush1.bf16.msra.mxu0 %v1724
    %1773 = vmatprep.mubr.bf16.mxu0 %v1642
    %1774 = vmatmul.mubr.bf16.gmra.mrb[0].mxu0 %v1641
    %v1775 = vpop.f32.mrb[0].mxu0
    %v1776 = vadd.f32 0.0, %v1775
    %v1777 = vpop.f32.mrb[0].mxu0
    %v1778 = vpop.f32.mrb[0].mxu0
    %v1779 = vpop.f32.mrb[0].mxu0
    %1780 = vdwg.mxu0
    %v1781 = vadd.f32 %v1597, %v1776
    %v1782 = vld [vmem:[#allocation2 + $0x10] sm:$0xc0]
    %v1783 = vld [vmem:[#allocation2 + $0x18] sm:$0xc0]
    %v1784 = vadd.f32 %v1782, %v502
    %v1785 = vadd.f32 %v1783, %v506
    %v1786 = vmax.f32 %v1784, 0.0
    %v1787 = vmax.f32 %v1785, 0.0
    %v1788 = vpack.c.bf16 %v1786, %v1786
    %v1789 = vpack.c.bf16 %v1787, %v1787
    %s1790 = scalar_lea.vmem [#allocation3], 896
    %v1791 = vld [vmem:[%s1790] sm:$0xf]
    %v1792 = vld [vmem:[%s1790 + $0x4] sm:$0xf]
    %v1793 = vld [vmem:[%s1790 + $0x8] sm:$0xf]
    %v1794 = vld [vmem:[%s1790 + $0xc] sm:$0xf]
    %v1795 = vld [vmem:[%s1790 + $0x10] sm:$0xf]
    %v1796 = vld [vmem:[%s1790 + $0x14] sm:$0xf]
    %v1797 = vld [vmem:[%s1790 + $0x18] sm:$0xf]
    %v1798 = vld [vmem:[%s1790 + $0x1c] sm:$0xf]
    %v1799 = vld [vmem:[%s1790 + $0x20] sm:$0xf]
    %v1800 = vld [vmem:[%s1790 + $0x24] sm:$0xf]
    %v1801 = vld [vmem:[%s1790 + $0x28] sm:$0xf]
    %v1802 = vld [vmem:[%s1790 + $0x2c] sm:$0xf]
    %v1803 = vld [vmem:[%s1790 + $0x30] sm:$0xf]
    %v1804 = vld [vmem:[%s1790 + $0x34] sm:$0xf]
    %v1805 = vld [vmem:[%s1790 + $0x38] sm:$0xf]
    %v1806 = vld [vmem:[%s1790 + $0x3c] sm:$0xf]
    %v1807 = vld [vmem:[%s1790 + $0x40] sm:$0xf]
    %v1808 = vld [vmem:[%s1790 + $0x44] sm:$0xf]
    %v1809 = vld [vmem:[%s1790 + $0x48] sm:$0xf]
    %v1810 = vld [vmem:[%s1790 + $0x4c] sm:$0xf]
    %v1811 = vld [vmem:[%s1790 + $0x50] sm:$0xf]
    %v1812 = vld [vmem:[%s1790 + $0x54] sm:$0xf]
    %v1813 = vld [vmem:[%s1790 + $0x58] sm:$0xf]
    %v1814 = vld [vmem:[%s1790 + $0x5c] sm:$0xf]
    %v1815 = vld [vmem:[%s1790 + $0x60] sm:$0xf]
    %v1816 = vld [vmem:[%s1790 + $0x64] sm:$0xf]
    %v1817 = vld [vmem:[%s1790 + $0x68] sm:$0xf]
    %v1818 = vld [vmem:[%s1790 + $0x6c] sm:$0xf]
    %v1819 = vld [vmem:[%s1790 + $0x70] sm:$0xf]
    %v1820 = vld [vmem:[%s1790 + $0x74] sm:$0xf]
    %v1821 = vld [vmem:[%s1790 + $0x78] sm:$0xf]
    %v1822 = vld [vmem:[%s1790 + $0x7c] sm:$0xf]
    %v1825 = vrot.slane %v1788, 3
    %v1826 = vrot.slane %v1789, 3
    %v1861 = vunpack.c.l.b16 %v1791
    %v1862 = vunpack.c.l.b16 %v1792
    %v1863 = vunpack.c.l.b16 %v1793
    %v1864 = vunpack.c.l.b16 %v1794
    %v1865 = vunpack.c.l.b16 %v1795
    %v1866 = vunpack.c.l.b16 %v1796
    %v1867 = vunpack.c.l.b16 %v1797
    %v1868 = vunpack.c.l.b16 %v1798
    %v1869 = vunpack.c.l.b16 %v1799
    %v1870 = vunpack.c.l.b16 %v1800
    %v1871 = vunpack.c.l.b16 %v1801
    %v1872 = vunpack.c.l.b16 %v1802
    %v1873 = vunpack.c.l.b16 %v1803
    %v1874 = vunpack.c.l.b16 %v1804
    %v1875 = vunpack.c.l.b16 %v1805
    %v1876 = vunpack.c.l.b16 %v1806
    %v1877 = vunpack.c.l.b16 %v1807
    %v1878 = vunpack.c.l.b16 %v1808
    %v1879 = vunpack.c.l.b16 %v1809
    %v1880 = vunpack.c.l.b16 %v1810
    %v1881 = vunpack.c.l.b16 %v1811
    %v1882 = vunpack.c.l.b16 %v1812
    %v1883 = vunpack.c.l.b16 %v1813
    %v1884 = vunpack.c.l.b16 %v1814
    %v1885 = vunpack.c.l.b16 %v1815
    %v1886 = vunpack.c.l.b16 %v1816
    %v1887 = vunpack.c.l.b16 %v1817
    %v1888 = vunpack.c.l.b16 %v1818
    %v1889 = vunpack.c.l.b16 %v1819
    %v1890 = vunpack.c.l.b16 %v1820
    %v1891 = vunpack.c.l.b16 %v1821
    %v1892 = vunpack.c.l.b16 %v1822
    %v1893 = vpack.c.b16 %v1862, %v1861
    %v1894 = vpack.c.b16 %v1864, %v1863
    %v1895 = vpack.c.b16 %v1866, %v1865
    %v1896 = vpack.c.b16 %v1868, %v1867
    %v1897 = vpack.c.b16 %v1870, %v1869
    %v1898 = vpack.c.b16 %v1872, %v1871
    %v1899 = vpack.c.b16 %v1874, %v1873
    %v1900 = vpack.c.b16 %v1876, %v1875
    %v1901 = vpack.c.b16 %v1878, %v1877
    %v1902 = vpack.c.b16 %v1880, %v1879
    %v1903 = vpack.c.b16 %v1882, %v1881
    %v1904 = vpack.c.b16 %v1884, %v1883
    %v1905 = vpack.c.b16 %v1886, %v1885
    %v1906 = vpack.c.b16 %v1888, %v1887
    %v1907 = vpack.c.b16 %v1890, %v1889
    %v1908 = vpack.c.b16 %v1892, %v1891
    %1925 = vmatprep.subr.bf16.mxu0 0
    %1926 = vmatpush1.bf16.msra.mxu0 %v1893
    %1927 = vmatprep.subr.bf16.mxu0 0
    %1928 = vmatpush1.bf16.msra.mxu0 %v1894
    %1929 = vmatprep.subr.bf16.mxu0 0
    %1930 = vmatpush1.bf16.msra.mxu0 %v1895
    %1931 = vmatprep.subr.bf16.mxu0 0
    %1932 = vmatpush1.bf16.msra.mxu0 %v1896
    %1933 = vmatprep.subr.bf16.mxu0 0
    %1934 = vmatpush1.bf16.msra.mxu0 %v1897
    %1935 = vmatprep.subr.bf16.mxu0 0
    %1936 = vmatpush1.bf16.msra.mxu0 %v1898
    %1937 = vmatprep.subr.bf16.mxu0 0
    %1938 = vmatpush1.bf16.msra.mxu0 %v1899
    %1939 = vmatprep.subr.bf16.mxu0 0
    %1940 = vmatpush1.bf16.msra.mxu0 %v1900
    %1941 = vmatprep.subr.bf16.mxu0 0
    %1942 = vmatpush1.bf16.msra.mxu0 %v1901
    %1943 = vmatprep.subr.bf16.mxu0 0
    %1944 = vmatpush1.bf16.msra.mxu0 %v1902
    %1945 = vmatprep.subr.bf16.mxu0 0
    %1946 = vmatpush1.bf16.msra.mxu0 %v1903
    %1947 = vmatprep.subr.bf16.mxu0 0
    %1948 = vmatpush1.bf16.msra.mxu0 %v1904
    %1949 = vmatprep.subr.bf16.mxu0 0
    %1950 = vmatpush1.bf16.msra.mxu0 %v1905
    %1951 = vmatprep.subr.bf16.mxu0 0
    %1952 = vmatpush1.bf16.msra.mxu0 %v1906
    %1953 = vmatprep.subr.bf16.mxu0 0
    %1954 = vmatpush1.bf16.msra.mxu0 %v1907
    %1955 = vmatprep.subr.bf16.mxu0 0
    %1956 = vmatpush1.bf16.msra.mxu0 %v1908
    %1957 = vmatprep.mubr.bf16.mxu0 %v1826
    %1958 = vmatmul.mubr.bf16.gmra.mrb[0].mxu0 %v1825
    %v1959 = vpop.f32.mrb[0].mxu0
    %v1960 = vadd.f32 0.0, %v1959
    %v1961 = vpop.f32.mrb[0].mxu0
    %v1962 = vpop.f32.mrb[0].mxu0
    %v1963 = vpop.f32.mrb[0].mxu0
    %1964 = vdwg.mxu0
    %v1965 = vadd.f32 %v1781, %v1960
    %v1966 = vld [vmem:[#allocation2 + $0x20] sm:$0x3]
    %v1967 = vld [vmem:[#allocation2 + $0x28] sm:$0x3]
    %v1968 = vadd.f32 %v1966, %v502
    %v1969 = vadd.f32 %v1967, %v506
    %v1970 = vmax.f32 %v1968, 0.0
    %v1971 = vmax.f32 %v1969, 0.0
    %v1972 = vpack.c.bf16 %v1970, %v1970
    %v1973 = vpack.c.bf16 %v1971, %v1971
    %s1974 = scalar_lea.vmem [#allocation3], 1024
    %v1975 = vld [vmem:[%s1974] sm:$0xf]
    %v1976 = vld [vmem:[%s1974 + $0x4] sm:$0xf]
    %v1977 = vld [vmem:[%s1974 + $0x8] sm:$0xf]
    %v1978 = vld [vmem:[%s1974 + $0xc] sm:$0xf]
    %v1979 = vld [vmem:[%s1974 + $0x10] sm:$0xf]
    %v1980 = vld [vmem:[%s1974 + $0x14] sm:$0xf]
    %v1981 = vld [vmem:[%s1974 + $0x18] sm:$0xf]
    %v1982 = vld [vmem:[%s1974 + $0x1c] sm:$0xf]
    %v1983 = vld [vmem:[%s1974 + $0x20] sm:$0xf]
    %v1984 = vld [vmem:[%s1974 + $0x24] sm:$0xf]
    %v1985 = vld [vmem:[%s1974 + $0x28] sm:$0xf]
    %v1986 = vld [vmem:[%s1974 + $0x2c] sm:$0xf]
    %v1987 = vld [vmem:[%s1974 + $0x30] sm:$0xf]
    %v1988 = vld [vmem:[%s1974 + $0x34] sm:$0xf]
    %v1989 = vld [vmem:[%s1974 + $0x38] sm:$0xf]
    %v1990 = vld [vmem:[%s1974 + $0x3c] sm:$0xf]
    %v1991 = vld [vmem:[%s1974 + $0x40] sm:$0xf]
    %v1992 = vld [vmem:[%s1974 + $0x44] sm:$0xf]
    %v1993 = vld [vmem:[%s1974 + $0x48] sm:$0xf]
    %v1994 = vld [vmem:[%s1974 + $0x4c] sm:$0xf]
    %v1995 = vld [vmem:[%s1974 + $0x50] sm:$0xf]
    %v1996 = vld [vmem:[%s1974 + $0x54] sm:$0xf]
    %v1997 = vld [vmem:[%s1974 + $0x58] sm:$0xf]
    %v1998 = vld [vmem:[%s1974 + $0x5c] sm:$0xf]
    %v1999 = vld [vmem:[%s1974 + $0x60] sm:$0xf]
    %v2000 = vld [vmem:[%s1974 + $0x64] sm:$0xf]
    %v2001 = vld [vmem:[%s1974 + $0x68] sm:$0xf]
    %v2002 = vld [vmem:[%s1974 + $0x6c] sm:$0xf]
    %v2003 = vld [vmem:[%s1974 + $0x70] sm:$0xf]
    %v2004 = vld [vmem:[%s1974 + $0x74] sm:$0xf]
    %v2005 = vld [vmem:[%s1974 + $0x78] sm:$0xf]
    %v2006 = vld [vmem:[%s1974 + $0x7c] sm:$0xf]
    %v2039 = vunpack.c.l.b16 %v1975
    %v2040 = vunpack.c.l.b16 %v1976
    %v2041 = vunpack.c.l.b16 %v1977
    %v2042 = vunpack.c.l.b16 %v1978
    %v2043 = vunpack.c.l.b16 %v1979
    %v2044 = vunpack.c.l.b16 %v1980
    %v2045 = vunpack.c.l.b16 %v1981
    %v2046 = vunpack.c.l.b16 %v1982
    %v2047 = vunpack.c.l.b16 %v1983
    %v2048 = vunpack.c.l.b16 %v1984
    %v2049 = vunpack.c.l.b16 %v1985
    %v2050 = vunpack.c.l.b16 %v1986
    %v2051 = vunpack.c.l.b16 %v1987
    %v2052 = vunpack.c.l.b16 %v1988
    %v2053 = vunpack.c.l.b16 %v1989
    %v2054 = vunpack.c.l.b16 %v1990
    %v2055 = vunpack.c.l.b16 %v1991
    %v2056 = vunpack.c.l.b16 %v1992
    %v2057 = vunpack.c.l.b16 %v1993
    %v2058 = vunpack.c.l.b16 %v1994
    %v2059 = vunpack.c.l.b16 %v1995
    %v2060 = vunpack.c.l.b16 %v1996
    %v2061 = vunpack.c.l.b16 %v1997
    %v2062 = vunpack.c.l.b16 %v1998
    %v2063 = vunpack.c.l.b16 %v1999
    %v2064 = vunpack.c.l.b16 %v2000
    %v2065 = vunpack.c.l.b16 %v2001
    %v2066 = vunpack.c.l.b16 %v2002
    %v2067 = vunpack.c.l.b16 %v2003
    %v2068 = vunpack.c.l.b16 %v2004
    %v2069 = vunpack.c.l.b16 %v2005
    %v2070 = vunpack.c.l.b16 %v2006
    %v2071 = vpack.c.b16 %v2040, %v2039
    %v2072 = vpack.c.b16 %v2042, %v2041
    %v2073 = vpack.c.b16 %v2044, %v2043
    %v2074 = vpack.c.b16 %v2046, %v2045
    %v2075 = vpack.c.b16 %v2048, %v2047
    %v2076 = vpack.c.b16 %v2050, %v2049
    %v2077 = vpack.c.b16 %v2052, %v2051
    %v2078 = vpack.c.b16 %v2054, %v2053
    %v2079 = vpack.c.b16 %v2056, %v2055
    %v2080 = vpack.c.b16 %v2058, %v2057
    %v2081 = vpack.c.b16 %v2060, %v2059
    %v2082 = vpack.c.b16 %v2062, %v2061
    %v2083 = vpack.c.b16 %v2064, %v2063
    %v2084 = vpack.c.b16 %v2066, %v2065
    %v2085 = vpack.c.b16 %v2068, %v2067
    %v2086 = vpack.c.b16 %v2070, %v2069
    %2103 = vmatprep.subr.bf16.mxu0 0
    %2104 = vmatpush1.bf16.msra.mxu0 %v2071
    %2105 = vmatprep.subr.bf16.mxu0 0
    %2106 = vmatpush1.bf16.msra.mxu0 %v2072
    %2107 = vmatprep.subr.bf16.mxu0 0
    %2108 = vmatpush1.bf16.msra.mxu0 %v2073
    %2109 = vmatprep.subr.bf16.mxu0 0
    %2110 = vmatpush1.bf16.msra.mxu0 %v2074
    %2111 = vmatprep.subr.bf16.mxu0 0
    %2112 = vmatpush1.bf16.msra.mxu0 %v2075
    %2113 = vmatprep.subr.bf16.mxu0 0
    %2114 = vmatpush1.bf16.msra.mxu0 %v2076
    %2115 = vmatprep.subr.bf16.mxu0 0
    %2116 = vmatpush1.bf16.msra.mxu0 %v2077
    %2117 = vmatprep.subr.bf16.mxu0 0
    %2118 = vmatpush1.bf16.msra.mxu0 %v2078
    %2119 = vmatprep.subr.bf16.mxu0 0
    %2120 = vmatpush1.bf16.msra.mxu0 %v2079
    %2121 = vmatprep.subr.bf16.mxu0 0
    %2122 = vmatpush1.bf16.msra.mxu0 %v2080
    %2123 = vmatprep.subr.bf16.mxu0 0
    %2124 = vmatpush1.bf16.msra.mxu0 %v2081
    %2125 = vmatprep.subr.bf16.mxu0 0
    %2126 = vmatpush1.bf16.msra.mxu0 %v2082
    %2127 = vmatprep.subr.bf16.mxu0 0
    %2128 = vmatpush1.bf16.msra.mxu0 %v2083
    %2129 = vmatprep.subr.bf16.mxu0 0
    %2130 = vmatpush1.bf16.msra.mxu0 %v2084
    %2131 = vmatprep.subr.bf16.mxu0 0
    %2132 = vmatpush1.bf16.msra.mxu0 %v2085
    %2133 = vmatprep.subr.bf16.mxu0 0
    %2134 = vmatpush1.bf16.msra.mxu0 %v2086
    %2135 = vmatprep.mubr.bf16.mxu0 %v1973
    %2136 = vmatmul.mubr.bf16.gmra.mrb[0].mxu0 %v1972
    %v2137 = vpop.f32.mrb[0].mxu0
    %v2138 = vadd.f32 0.0, %v2137
    %v2139 = vpop.f32.mrb[0].mxu0
    %v2140 = vpop.f32.mrb[0].mxu0
    %v2141 = vpop.f32.mrb[0].mxu0
    %2142 = vdwg.mxu0
    %v2143 = vadd.f32 %v1965, %v2138
    %v2144 = vld [vmem:[#allocation2 + $0x20] sm:$0xc]
    %v2145 = vld [vmem:[#allocation2 + $0x28] sm:$0xc]
    %v2146 = vadd.f32 %v2144, %v502
    %v2147 = vadd.f32 %v2145, %v506
    %v2148 = vmax.f32 %v2146, 0.0
    %v2149 = vmax.f32 %v2147, 0.0
    %v2150 = vpack.c.bf16 %v2148, %v2148
    %v2151 = vpack.c.bf16 %v2149, %v2149
    %s2152 = scalar_lea.vmem [#allocation3], 1152
    %v2153 = vld [vmem:[%s2152] sm:$0xf]
    %v2154 = vld [vmem:[%s2152 + $0x4] sm:$0xf]
    %v2155 = vld [vmem:[%s2152 + $0x8] sm:$0xf]
    %v2156 = vld [vmem:[%s2152 + $0xc] sm:$0xf]
    %v2157 = vld [vmem:[%s2152 + $0x10] sm:$0xf]
    %v2158 = vld [vmem:[%s2152 + $0x14] sm:$0xf]
    %v2159 = vld [vmem:[%s2152 + $0x18] sm:$0xf]
    %v2160 = vld [vmem:[%s2152 + $0x1c] sm:$0xf]
    %v2161 = vld [vmem:[%s2152 + $0x20] sm:$0xf]
    %v2162 = vld [vmem:[%s2152 + $0x24] sm:$0xf]
    %v2163 = vld [vmem:[%s2152 + $0x28] sm:$0xf]
    %v2164 = vld [vmem:[%s2152 + $0x2c] sm:$0xf]
    %v2165 = vld [vmem:[%s2152 + $0x30] sm:$0xf]
    %v2166 = vld [vmem:[%s2152 + $0x34] sm:$0xf]
    %v2167 = vld [vmem:[%s2152 + $0x38] sm:$0xf]
    %v2168 = vld [vmem:[%s2152 + $0x3c] sm:$0xf]
    %v2169 = vld [vmem:[%s2152 + $0x40] sm:$0xf]
    %v2170 = vld [vmem:[%s2152 + $0x44] sm:$0xf]
    %v2171 = vld [vmem:[%s2152 + $0x48] sm:$0xf]
    %v2172 = vld [vmem:[%s2152 + $0x4c] sm:$0xf]
    %v2173 = vld [vmem:[%s2152 + $0x50] sm:$0xf]
    %v2174 = vld [vmem:[%s2152 + $0x54] sm:$0xf]
    %v2175 = vld [vmem:[%s2152 + $0x58] sm:$0xf]
    %v2176 = vld [vmem:[%s2152 + $0x5c] sm:$0xf]
    %v2177 = vld [vmem:[%s2152 + $0x60] sm:$0xf]
    %v2178 = vld [vmem:[%s2152 + $0x64] sm:$0xf]
    %v2179 = vld [vmem:[%s2152 + $0x68] sm:$0xf]
    %v2180 = vld [vmem:[%s2152 + $0x6c] sm:$0xf]
    %v2181 = vld [vmem:[%s2152 + $0x70] sm:$0xf]
    %v2182 = vld [vmem:[%s2152 + $0x74] sm:$0xf]
    %v2183 = vld [vmem:[%s2152 + $0x78] sm:$0xf]
    %v2184 = vld [vmem:[%s2152 + $0x7c] sm:$0xf]
    %v2187 = vrot.slane %v2150, 1
    %v2188 = vrot.slane %v2151, 1
    %v2223 = vunpack.c.l.b16 %v2153
    %v2224 = vunpack.c.l.b16 %v2154
    %v2225 = vunpack.c.l.b16 %v2155
    %v2226 = vunpack.c.l.b16 %v2156
    %v2227 = vunpack.c.l.b16 %v2157
    %v2228 = vunpack.c.l.b16 %v2158
    %v2229 = vunpack.c.l.b16 %v2159
    %v2230 = vunpack.c.l.b16 %v2160
    %v2231 = vunpack.c.l.b16 %v2161
    %v2232 = vunpack.c.l.b16 %v2162
    %v2233 = vunpack.c.l.b16 %v2163
    %v2234 = vunpack.c.l.b16 %v2164
    %v2235 = vunpack.c.l.b16 %v2165
    %v2236 = vunpack.c.l.b16 %v2166
    %v2237 = vunpack.c.l.b16 %v2167
    %v2238 = vunpack.c.l.b16 %v2168
    %v2239 = vunpack.c.l.b16 %v2169
    %v2240 = vunpack.c.l.b16 %v2170
    %v2241 = vunpack.c.l.b16 %v2171
    %v2242 = vunpack.c.l.b16 %v2172
    %v2243 = vunpack.c.l.b16 %v2173
    %v2244 = vunpack.c.l.b16 %v2174
    %v2245 = vunpack.c.l.b16 %v2175
    %v2246 = vunpack.c.l.b16 %v2176
    %v2247 = vunpack.c.l.b16 %v2177
    %v2248 = vunpack.c.l.b16 %v2178
    %v2249 = vunpack.c.l.b16 %v2179
    %v2250 = vunpack.c.l.b16 %v2180
    %v2251 = vunpack.c.l.b16 %v2181
    %v2252 = vunpack.c.l.b16 %v2182
    %v2253 = vunpack.c.l.b16 %v2183
    %v2254 = vunpack.c.l.b16 %v2184
    %v2255 = vpack.c.b16 %v2224, %v2223
    %v2256 = vpack.c.b16 %v2226, %v2225
    %v2257 = vpack.c.b16 %v2228, %v2227
    %v2258 = vpack.c.b16 %v2230, %v2229
    %v2259 = vpack.c.b16 %v2232, %v2231
    %v2260 = vpack.c.b16 %v2234, %v2233
    %v2261 = vpack.c.b16 %v2236, %v2235
    %v2262 = vpack.c.b16 %v2238, %v2237
    %v2263 = vpack.c.b16 %v2240, %v2239
    %v2264 = vpack.c.b16 %v2242, %v2241
    %v2265 = vpack.c.b16 %v2244, %v2243
    %v2266 = vpack.c.b16 %v2246, %v2245
    %v2267 = vpack.c.b16 %v2248, %v2247
    %v2268 = vpack.c.b16 %v2250, %v2249
    %v2269 = vpack.c.b16 %v2252, %v2251
    %v2270 = vpack.c.b16 %v2254, %v2253
    %2287 = vmatprep.subr.bf16.mxu0 0
    %2288 = vmatpush1.bf16.msra.mxu0 %v2255
    %2289 = vmatprep.subr.bf16.mxu0 0
    %2290 = vmatpush1.bf16.msra.mxu0 %v2256
    %2291 = vmatprep.subr.bf16.mxu0 0
    %2292 = vmatpush1.bf16.msra.mxu0 %v2257
    %2293 = vmatprep.subr.bf16.mxu0 0
    %2294 = vmatpush1.bf16.msra.mxu0 %v2258
    %2295 = vmatprep.subr.bf16.mxu0 0
    %2296 = vmatpush1.bf16.msra.mxu0 %v2259
    %2297 = vmatprep.subr.bf16.mxu0 0
    %2298 = vmatpush1.bf16.msra.mxu0 %v2260
    %2299 = vmatprep.subr.bf16.mxu0 0
    %2300 = vmatpush1.bf16.msra.mxu0 %v2261
    %2301 = vmatprep.subr.bf16.mxu0 0
    %2302 = vmatpush1.bf16.msra.mxu0 %v2262
    %2303 = vmatprep.subr.bf16.mxu0 0
    %2304 = vmatpush1.bf16.msra.mxu0 %v2263
    %2305 = vmatprep.subr.bf16.mxu0 0
    %2306 = vmatpush1.bf16.msra.mxu0 %v2264
    %2307 = vmatprep.subr.bf16.mxu0 0
    %2308 = vmatpush1.bf16.msra.mxu0 %v2265
    %2309 = vmatprep.subr.bf16.mxu0 0
    %2310 = vmatpush1.bf16.msra.mxu0 %v2266
    %2311 = vmatprep.subr.bf16.mxu0 0
    %2312 = vmatpush1.bf16.msra.mxu0 %v2267
    %2313 = vmatprep.subr.bf16.mxu0 0
    %2314 = vmatpush1.bf16.msra.mxu0 %v2268
    %2315 = vmatprep.subr.bf16.mxu0 0
    %2316 = vmatpush1.bf16.msra.mxu0 %v2269
    %2317 = vmatprep.subr.bf16.mxu0 0
    %2318 = vmatpush1.bf16.msra.mxu0 %v2270
    %2319 = vmatprep.mubr.bf16.mxu0 %v2188
    %2320 = vmatmul.mubr.bf16.gmra.mrb[0].mxu0 %v2187
    %v2321 = vpop.f32.mrb[0].mxu0
    %v2322 = vadd.f32 0.0, %v2321
    %v2323 = vpop.f32.mrb[0].mxu0
    %v2324 = vpop.f32.mrb[0].mxu0
    %v2325 = vpop.f32.mrb[0].mxu0
    %2326 = vdwg.mxu0
    %v2327 = vadd.f32 %v2143, %v2322
    %v2328 = vld [vmem:[#allocation2 + $0x20] sm:$0x30]
    %v2329 = vld [vmem:[#allocation2 + $0x28] sm:$0x30]
    %v2330 = vadd.f32 %v2328, %v502
    %v2331 = vadd.f32 %v2329, %v506
    %v2332 = vmax.f32 %v2330, 0.0
    %v2333 = vmax.f32 %v2331, 0.0
    %v2334 = vpack.c.bf16 %v2332, %v2332
    %v2335 = vpack.c.bf16 %v2333, %v2333
    %s2336 = scalar_lea.vmem [#allocation3], 1280
    %v2337 = vld [vmem:[%s2336] sm:$0xf]
    %v2338 = vld [vmem:[%s2336 + $0x4] sm:$0xf]
    %v2339 = vld [vmem:[%s2336 + $0x8] sm:$0xf]
    %v2340 = vld [vmem:[%s2336 + $0xc] sm:$0xf]
    %v2341 = vld [vmem:[%s2336 + $0x10] sm:$0xf]
    %v2342 = vld [vmem:[%s2336 + $0x14] sm:$0xf]
    %v2343 = vld [vmem:[%s2336 + $0x18] sm:$0xf]
    %v2344 = vld [vmem:[%s2336 + $0x1c] sm:$0xf]
    %v2345 = vld [vmem:[%s2336 + $0x20] sm:$0xf]
    %v2346 = vld [vmem:[%s2336 + $0x24] sm:$0xf]
    %v2347 = vld [vmem:[%s2336 + $0x28] sm:$0xf]
    %v2348 = vld [vmem:[%s2336 + $0x2c] sm:$0xf]
    %v2349 = vld [vmem:[%s2336 + $0x30] sm:$0xf]
    %v2350 = vld [vmem:[%s2336 + $0x34] sm:$0xf]
    %v2351 = vld [vmem:[%s2336 + $0x38] sm:$0xf]
    %v2352 = vld [vmem:[%s2336 + $0x3c] sm:$0xf]
    %v2353 = vld [vmem:[%s2336 + $0x40] sm:$0xf]
    %v2354 = vld [vmem:[%s2336 + $0x44] sm:$0xf]
    %v2355 = vld [vmem:[%s2336 + $0x48] sm:$0xf]
    %v2356 = vld [vmem:[%s2336 + $0x4c] sm:$0xf]
    %v2357 = vld [vmem:[%s2336 + $0x50] sm:$0xf]
    %v2358 = vld [vmem:[%s2336 + $0x54] sm:$0xf]
    %v2359 = vld [vmem:[%s2336 + $0x58] sm:$0xf]
    %v2360 = vld [vmem:[%s2336 + $0x5c] sm:$0xf]
    %v2361 = vld [vmem:[%s2336 + $0x60] sm:$0xf]
    %v2362 = vld [vmem:[%s2336 + $0x64] sm:$0xf]
    %v2363 = vld [vmem:[%s2336 + $0x68] sm:$0xf]
    %v2364 = vld [vmem:[%s2336 + $0x6c] sm:$0xf]
    %v2365 = vld [vmem:[%s2336 + $0x70] sm:$0xf]
    %v2366 = vld [vmem:[%s2336 + $0x74] sm:$0xf]
    %v2367 = vld [vmem:[%s2336 + $0x78] sm:$0xf]
    %v2368 = vld [vmem:[%s2336 + $0x7c] sm:$0xf]
    %v2371 = vrot.slane %v2334, 2
    %v2372 = vrot.slane %v2335, 2
    %v2407 = vunpack.c.l.b16 %v2337
    %v2408 = vunpack.c.l.b16 %v2338
    %v2409 = vunpack.c.l.b16 %v2339
    %v2410 = vunpack.c.l.b16 %v2340
    %v2411 = vunpack.c.l.b16 %v2341
    %v2412 = vunpack.c.l.b16 %v2342
    %v2413 = vunpack.c.l.b16 %v2343
    %v2414 = vunpack.c.l.b16 %v2344
    %v2415 = vunpack.c.l.b16 %v2345
    %v2416 = vunpack.c.l.b16 %v2346
    %v2417 = vunpack.c.l.b16 %v2347
    %v2418 = vunpack.c.l.b16 %v2348
    %v2419 = vunpack.c.l.b16 %v2349
    %v2420 = vunpack.c.l.b16 %v2350
    %v2421 = vunpack.c.l.b16 %v2351
    %v2422 = vunpack.c.l.b16 %v2352
    %v2423 = vunpack.c.l.b16 %v2353
    %v2424 = vunpack.c.l.b16 %v2354
    %v2425 = vunpack.c.l.b16 %v2355
    %v2426 = vunpack.c.l.b16 %v2356
    %v2427 = vunpack.c.l.b16 %v2357
    %v2428 = vunpack.c.l.b16 %v2358
    %v2429 = vunpack.c.l.b16 %v2359
    %v2430 = vunpack.c.l.b16 %v2360
    %v2431 = vunpack.c.l.b16 %v2361
    %v2432 = vunpack.c.l.b16 %v2362
    %v2433 = vunpack.c.l.b16 %v2363
    %v2434 = vunpack.c.l.b16 %v2364
    %v2435 = vunpack.c.l.b16 %v2365
    %v2436 = vunpack.c.l.b16 %v2366
    %v2437 = vunpack.c.l.b16 %v2367
    %v2438 = vunpack.c.l.b16 %v2368
    %v2439 = vpack.c.b16 %v2408, %v2407
    %v2440 = vpack.c.b16 %v2410, %v2409
    %v2441 = vpack.c.b16 %v2412, %v2411
    %v2442 = vpack.c.b16 %v2414, %v2413
    %v2443 = vpack.c.b16 %v2416, %v2415
    %v2444 = vpack.c.b16 %v2418, %v2417
    %v2445 = vpack.c.b16 %v2420, %v2419
    %v2446 = vpack.c.b16 %v2422, %v2421
    %v2447 = vpack.c.b16 %v2424, %v2423
    %v2448 = vpack.c.b16 %v2426, %v2425
    %v2449 = vpack.c.b16 %v2428, %v2427
    %v2450 = vpack.c.b16 %v2430, %v2429
    %v2451 = vpack.c.b16 %v2432, %v2431
    %v2452 = vpack.c.b16 %v2434, %v2433
    %v2453 = vpack.c.b16 %v2436, %v2435
    %v2454 = vpack.c.b16 %v2438, %v2437
    %2471 = vmatprep.subr.bf16.mxu0 0
    %2472 = vmatpush1.bf16.msra.mxu0 %v2439
    %2473 = vmatprep.subr.bf16.mxu0 0
    %2474 = vmatpush1.bf16.msra.mxu0 %v2440
    %2475 = vmatprep.subr.bf16.mxu0 0
    %2476 = vmatpush1.bf16.msra.mxu0 %v2441
    %2477 = vmatprep.subr.bf16.mxu0 0
    %2478 = vmatpush1.bf16.msra.mxu0 %v2442
    %2479 = vmatprep.subr.bf16.mxu0 0
    %2480 = vmatpush1.bf16.msra.mxu0 %v2443
    %2481 = vmatprep.subr.bf16.mxu0 0
    %2482 = vmatpush1.bf16.msra.mxu0 %v2444
    %2483 = vmatprep.subr.bf16.mxu0 0
    %2484 = vmatpush1.bf16.msra.mxu0 %v2445
    %2485 = vmatprep.subr.bf16.mxu0 0
    %2486 = vmatpush1.bf16.msra.mxu0 %v2446
    %2487 = vmatprep.subr.bf16.mxu0 0
    %2488 = vmatpush1.bf16.msra.mxu0 %v2447
    %2489 = vmatprep.subr.bf16.mxu0 0
    %2490 = vmatpush1.bf16.msra.mxu0 %v2448
    %2491 = vmatprep.subr.bf16.mxu0 0
    %2492 = vmatpush1.bf16.msra.mxu0 %v2449
    %2493 = vmatprep.subr.bf16.mxu0 0
    %2494 = vmatpush1.bf16.msra.mxu0 %v2450
    %2495 = vmatprep.subr.bf16.mxu0 0
    %2496 = vmatpush1.bf16.msra.mxu0 %v2451
    %2497 = vmatprep.subr.bf16.mxu0 0
    %2498 = vmatpush1.bf16.msra.mxu0 %v2452
    %2499 = vmatprep.subr.bf16.mxu0 0
    %2500 = vmatpush1.bf16.msra.mxu0 %v2453
    %2501 = vmatprep.subr.bf16.mxu0 0
    %2502 = vmatpush1.bf16.msra.mxu0 %v2454
    %2503 = vmatprep.mubr.bf16.mxu0 %v2372
    %2504 = vmatmul.mubr.bf16.gmra.mrb[0].mxu0 %v2371
    %v2505 = vpop.f32.mrb[0].mxu0
    %v2506 = vadd.f32 0.0, %v2505
    %v2507 = vpop.f32.mrb[0].mxu0
    %v2508 = vpop.f32.mrb[0].mxu0
    %v2509 = vpop.f32.mrb[0].mxu0
    %2510 = vdwg.mxu0
    %v2511 = vadd.f32 %v2327, %v2506
    %v2512 = vld [vmem:[#allocation2 + $0x20] sm:$0xc0]
    %v2513 = vld [vmem:[#allocation2 + $0x28] sm:$0xc0]
    %v2514 = vadd.f32 %v2512, %v502
    %v2515 = vadd.f32 %v2513, %v506
    %v2516 = vmax.f32 %v2514, 0.0
    %v2517 = vmax.f32 %v2515, 0.0
    %v2518 = vpack.c.bf16 %v2516, %v2516
    %v2519 = vpack.c.bf16 %v2517, %v2517
    %s2520 = scalar_lea.vmem [#allocation3], 1408
    %v2521 = vld [vmem:[%s2520] sm:$0xf]
    %v2522 = vld [vmem:[%s2520 + $0x4] sm:$0xf]
    %v2523 = vld [vmem:[%s2520 + $0x8] sm:$0xf]
    %v2524 = vld [vmem:[%s2520 + $0xc] sm:$0xf]
    %v2525 = vld [vmem:[%s2520 + $0x10] sm:$0xf]
    %v2526 = vld [vmem:[%s2520 + $0x14] sm:$0xf]
    %v2527 = vld [vmem:[%s2520 + $0x18] sm:$0xf]
    %v2528 = vld [vmem:[%s2520 + $0x1c] sm:$0xf]
    %v2529 = vld [vmem:[%s2520 + $0x20] sm:$0xf]
    %v2530 = vld [vmem:[%s2520 + $0x24] sm:$0xf]
    %v2531 = vld [vmem:[%s2520 + $0x28] sm:$0xf]
    %v2532 = vld [vmem:[%s2520 + $0x2c] sm:$0xf]
    %v2533 = vld [vmem:[%s2520 + $0x30] sm:$0xf]
    %v2534 = vld [vmem:[%s2520 + $0x34] sm:$0xf]
    %v2535 = vld [vmem:[%s2520 + $0x38] sm:$0xf]
    %v2536 = vld [vmem:[%s2520 + $0x3c] sm:$0xf]
    %v2537 = vld [vmem:[%s2520 + $0x40] sm:$0xf]
    %v2538 = vld [vmem:[%s2520 + $0x44] sm:$0xf]
    %v2539 = vld [vmem:[%s2520 + $0x48] sm:$0xf]
    %v2540 = vld [vmem:[%s2520 + $0x4c] sm:$0xf]
    %v2541 = vld [vmem:[%s2520 + $0x50] sm:$0xf]
    %v2542 = vld [vmem:[%s2520 + $0x54] sm:$0xf]
    %v2543 = vld [vmem:[%s2520 + $0x58] sm:$0xf]
    %v2544 = vld [vmem:[%s2520 + $0x5c] sm:$0xf]
    %v2545 = vld [vmem:[%s2520 + $0x60] sm:$0xf]
    %v2546 = vld [vmem:[%s2520 + $0x64] sm:$0xf]
    %v2547 = vld [vmem:[%s2520 + $0x68] sm:$0xf]
    %v2548 = vld [vmem:[%s2520 + $0x6c] sm:$0xf]
    %v2549 = vld [vmem:[%s2520 + $0x70] sm:$0xf]
    %v2550 = vld [vmem:[%s2520 + $0x74] sm:$0xf]
    %v2551 = vld [vmem:[%s2520 + $0x78] sm:$0xf]
    %v2552 = vld [vmem:[%s2520 + $0x7c] sm:$0xf]
    %v2555 = vrot.slane %v2518, 3
    %v2556 = vrot.slane %v2519, 3
    %v2591 = vunpack.c.l.b16 %v2521
    %v2592 = vunpack.c.l.b16 %v2522
    %v2593 = vunpack.c.l.b16 %v2523
    %v2594 = vunpack.c.l.b16 %v2524
    %v2595 = vunpack.c.l.b16 %v2525
    %v2596 = vunpack.c.l.b16 %v2526
    %v2597 = vunpack.c.l.b16 %v2527
    %v2598 = vunpack.c.l.b16 %v2528
    %v2599 = vunpack.c.l.b16 %v2529
    %v2600 = vunpack.c.l.b16 %v2530
    %v2601 = vunpack.c.l.b16 %v2531
    %v2602 = vunpack.c.l.b16 %v2532
    %v2603 = vunpack.c.l.b16 %v2533
    %v2604 = vunpack.c.l.b16 %v2534
    %v2605 = vunpack.c.l.b16 %v2535
    %v2606 = vunpack.c.l.b16 %v2536
    %v2607 = vunpack.c.l.b16 %v2537
    %v2608 = vunpack.c.l.b16 %v2538
    %v2609 = vunpack.c.l.b16 %v2539
    %v2610 = vunpack.c.l.b16 %v2540
    %v2611 = vunpack.c.l.b16 %v2541
    %v2612 = vunpack.c.l.b16 %v2542
    %v2613 = vunpack.c.l.b16 %v2543
    %v2614 = vunpack.c.l.b16 %v2544
    %v2615 = vunpack.c.l.b16 %v2545
    %v2616 = vunpack.c.l.b16 %v2546
    %v2617 = vunpack.c.l.b16 %v2547
    %v2618 = vunpack.c.l.b16 %v2548
    %v2619 = vunpack.c.l.b16 %v2549
    %v2620 = vunpack.c.l.b16 %v2550
    %v2621 = vunpack.c.l.b16 %v2551
    %v2622 = vunpack.c.l.b16 %v2552
    %v2623 = vpack.c.b16 %v2592, %v2591
    %v2624 = vpack.c.b16 %v2594, %v2593
    %v2625 = vpack.c.b16 %v2596, %v2595
    %v2626 = vpack.c.b16 %v2598, %v2597
    %v2627 = vpack.c.b16 %v2600, %v2599
    %v2628 = vpack.c.b16 %v2602, %v2601
    %v2629 = vpack.c.b16 %v2604, %v2603
    %v2630 = vpack.c.b16 %v2606, %v2605
    %v2631 = vpack.c.b16 %v2608, %v2607
    %v2632 = vpack.c.b16 %v2610, %v2609
    %v2633 = vpack.c.b16 %v2612, %v2611
    %v2634 = vpack.c.b16 %v2614, %v2613
    %v2635 = vpack.c.b16 %v2616, %v2615
    %v2636 = vpack.c.b16 %v2618, %v2617
    %v2637 = vpack.c.b16 %v2620, %v2619
    %v2638 = vpack.c.b16 %v2622, %v2621
    %2655 = vmatprep.subr.bf16.mxu0 0
    %2656 = vmatpush1.bf16.msra.mxu0 %v2623
    %2657 = vmatprep.subr.bf16.mxu0 0
    %2658 = vmatpush1.bf16.msra.mxu0 %v2624
    %2659 = vmatprep.subr.bf16.mxu0 0
    %2660 = vmatpush1.bf16.msra.mxu0 %v2625
    %2661 = vmatprep.subr.bf16.mxu0 0
    %2662 = vmatpush1.bf16.msra.mxu0 %v2626
    %2663 = vmatprep.subr.bf16.mxu0 0
    %2664 = vmatpush1.bf16.msra.mxu0 %v2627
    %2665 = vmatprep.subr.bf16.mxu0 0
    %2666 = vmatpush1.bf16.msra.mxu0 %v2628
    %2667 = vmatprep.subr.bf16.mxu0 0
    %2668 = vmatpush1.bf16.msra.mxu0 %v2629
    %2669 = vmatprep.subr.bf16.mxu0 0
    %2670 = vmatpush1.bf16.msra.mxu0 %v2630
    %2671 = vmatprep.subr.bf16.mxu0 0
    %2672 = vmatpush1.bf16.msra.mxu0 %v2631
    %2673 = vmatprep.subr.bf16.mxu0 0
    %2674 = vmatpush1.bf16.msra.mxu0 %v2632
    %2675 = vmatprep.subr.bf16.mxu0 0
    %2676 = vmatpush1.bf16.msra.mxu0 %v2633
    %2677 = vmatprep.subr.bf16.mxu0 0
    %2678 = vmatpush1.bf16.msra.mxu0 %v2634
    %2679 = vmatprep.subr.bf16.mxu0 0
    %2680 = vmatpush1.bf16.msra.mxu0 %v2635
    %2681 = vmatprep.subr.bf16.mxu0 0
    %2682 = vmatpush1.bf16.msra.mxu0 %v2636
    %2683 = vmatprep.subr.bf16.mxu0 0
    %2684 = vmatpush1.bf16.msra.mxu0 %v2637
    %2685 = vmatprep.subr.bf16.mxu0 0
    %2686 = vmatpush1.bf16.msra.mxu0 %v2638
    %2687 = vmatprep.mubr.bf16.mxu0 %v2556
    %2688 = vmatmul.mubr.bf16.gmra.mrb[0].mxu0 %v2555
    %v2689 = vpop.f32.mrb[0].mxu0
    %v2690 = vadd.f32 0.0, %v2689
    %v2691 = vpop.f32.mrb[0].mxu0
    %v2692 = vpop.f32.mrb[0].mxu0
    %v2693 = vpop.f32.mrb[0].mxu0
    %2694 = vdwg.mxu0
    %v2695 = vadd.f32 %v2511, %v2690
    %v2696 = vld [vmem:[#allocation2 + $0x30] sm:$0x3]
    %v2697 = vld [vmem:[#allocation2 + $0x38] sm:$0x3]
    %v2698 = vadd.f32 %v2696, %v502
    %v2699 = vadd.f32 %v2697, %v506
    %v2700 = vmax.f32 %v2698, 0.0
    %v2701 = vmax.f32 %v2699, 0.0
    %v2702 = vpack.c.bf16 %v2700, %v2700
    %v2703 = vpack.c.bf16 %v2701, %v2701
    %s2704 = scalar_lea.vmem [#allocation3], 1536
    %v2705 = vld [vmem:[%s2704] sm:$0xf]
    %v2706 = vld [vmem:[%s2704 + $0x4] sm:$0xf]
    %v2707 = vld [vmem:[%s2704 + $0x8] sm:$0xf]
    %v2708 = vld [vmem:[%s2704 + $0xc] sm:$0xf]
    %v2709 = vld [vmem:[%s2704 + $0x10] sm:$0xf]
    %v2710 = vld [vmem:[%s2704 + $0x14] sm:$0xf]
    %v2711 = vld [vmem:[%s2704 + $0x18] sm:$0xf]
    %v2712 = vld [vmem:[%s2704 + $0x1c] sm:$0xf]
    %v2713 = vld [vmem:[%s2704 + $0x20] sm:$0xf]
    %v2714 = vld [vmem:[%s2704 + $0x24] sm:$0xf]
    %v2715 = vld [vmem:[%s2704 + $0x28] sm:$0xf]
    %v2716 = vld [vmem:[%s2704 + $0x2c] sm:$0xf]
    %v2717 = vld [vmem:[%s2704 + $0x30] sm:$0xf]
    %v2718 = vld [vmem:[%s2704 + $0x34] sm:$0xf]
    %v2719 = vld [vmem:[%s2704 + $0x38] sm:$0xf]
    %v2720 = vld [vmem:[%s2704 + $0x3c] sm:$0xf]
    %v2721 = vld [vmem:[%s2704 + $0x40] sm:$0xf]
    %v2722 = vld [vmem:[%s2704 + $0x44] sm:$0xf]
    %v2723 = vld [vmem:[%s2704 + $0x48] sm:$0xf]
    %v2724 = vld [vmem:[%s2704 + $0x4c] sm:$0xf]
    %v2725 = vld [vmem:[%s2704 + $0x50] sm:$0xf]
    %v2726 = vld [vmem:[%s2704 + $0x54] sm:$0xf]
    %v2727 = vld [vmem:[%s2704 + $0x58] sm:$0xf]
    %v2728 = vld [vmem:[%s2704 + $0x5c] sm:$0xf]
    %v2729 = vld [vmem:[%s2704 + $0x60] sm:$0xf]
    %v2730 = vld [vmem:[%s2704 + $0x64] sm:$0xf]
    %v2731 = vld [vmem:[%s2704 + $0x68] sm:$0xf]
    %v2732 = vld [vmem:[%s2704 + $0x6c] sm:$0xf]
    %v2733 = vld [vmem:[%s2704 + $0x70] sm:$0xf]
    %v2734 = vld [vmem:[%s2704 + $0x74] sm:$0xf]
    %v2735 = vld [vmem:[%s2704 + $0x78] sm:$0xf]
    %v2736 = vld [vmem:[%s2704 + $0x7c] sm:$0xf]
    %v2769 = vunpack.c.l.b16 %v2705
    %v2770 = vunpack.c.l.b16 %v2706
    %v2771 = vunpack.c.l.b16 %v2707
    %v2772 = vunpack.c.l.b16 %v2708
    %v2773 = vunpack.c.l.b16 %v2709
    %v2774 = vunpack.c.l.b16 %v2710
    %v2775 = vunpack.c.l.b16 %v2711
    %v2776 = vunpack.c.l.b16 %v2712
    %v2777 = vunpack.c.l.b16 %v2713
    %v2778 = vunpack.c.l.b16 %v2714
    %v2779 = vunpack.c.l.b16 %v2715
    %v2780 = vunpack.c.l.b16 %v2716
    %v2781 = vunpack.c.l.b16 %v2717
    %v2782 = vunpack.c.l.b16 %v2718
    %v2783 = vunpack.c.l.b16 %v2719
    %v2784 = vunpack.c.l.b16 %v2720
    %v2785 = vunpack.c.l.b16 %v2721
    %v2786 = vunpack.c.l.b16 %v2722
    %v2787 = vunpack.c.l.b16 %v2723
    %v2788 = vunpack.c.l.b16 %v2724
    %v2789 = vunpack.c.l.b16 %v2725
    %v2790 = vunpack.c.l.b16 %v2726
    %v2791 = vunpack.c.l.b16 %v2727
    %v2792 = vunpack.c.l.b16 %v2728
    %v2793 = vunpack.c.l.b16 %v2729
    %v2794 = vunpack.c.l.b16 %v2730
    %v2795 = vunpack.c.l.b16 %v2731
    %v2796 = vunpack.c.l.b16 %v2732
    %v2797 = vunpack.c.l.b16 %v2733
    %v2798 = vunpack.c.l.b16 %v2734
    %v2799 = vunpack.c.l.b16 %v2735
    %v2800 = vunpack.c.l.b16 %v2736
    %v2801 = vpack.c.b16 %v2770, %v2769
    %v2802 = vpack.c.b16 %v2772, %v2771
    %v2803 = vpack.c.b16 %v2774, %v2773
    %v2804 = vpack.c.b16 %v2776, %v2775
    %v2805 = vpack.c.b16 %v2778, %v2777
    %v2806 = vpack.c.b16 %v2780, %v2779
    %v2807 = vpack.c.b16 %v2782, %v2781
    %v2808 = vpack.c.b16 %v2784, %v2783
    %v2809 = vpack.c.b16 %v2786, %v2785
    %v2810 = vpack.c.b16 %v2788, %v2787
    %v2811 = vpack.c.b16 %v2790, %v2789
    %v2812 = vpack.c.b16 %v2792, %v2791
    %v2813 = vpack.c.b16 %v2794, %v2793
    %v2814 = vpack.c.b16 %v2796, %v2795
    %v2815 = vpack.c.b16 %v2798, %v2797
    %v2816 = vpack.c.b16 %v2800, %v2799
    %2833 = vmatprep.subr.bf16.mxu0 0
    %2834 = vmatpush1.bf16.msra.mxu0 %v2801
    %2835 = vmatprep.subr.bf16.mxu0 0
    %2836 = vmatpush1.bf16.msra.mxu0 %v2802
    %2837 = vmatprep.subr.bf16.mxu0 0
    %2838 = vmatpush1.bf16.msra.mxu0 %v2803
    %2839 = vmatprep.subr.bf16.mxu0 0
    %2840 = vmatpush1.bf16.msra.mxu0 %v2804
    %2841 = vmatprep.subr.bf16.mxu0 0
    %2842 = vmatpush1.bf16.msra.mxu0 %v2805
    %2843 = vmatprep.subr.bf16.mxu0 0
    %2844 = vmatpush1.bf16.msra.mxu0 %v2806
    %2845 = vmatprep.subr.bf16.mxu0 0
    %2846 = vmatpush1.bf16.msra.mxu0 %v2807
    %2847 = vmatprep.subr.bf16.mxu0 0
    %2848 = vmatpush1.bf16.msra.mxu0 %v2808
    %2849 = vmatprep.subr.bf16.mxu0 0
    %2850 = vmatpush1.bf16.msra.mxu0 %v2809
    %2851 = vmatprep.subr.bf16.mxu0 0
    %2852 = vmatpush1.bf16.msra.mxu0 %v2810
    %2853 = vmatprep.subr.bf16.mxu0 0
    %2854 = vmatpush1.bf16.msra.mxu0 %v2811
    %2855 = vmatprep.subr.bf16.mxu0 0
    %2856 = vmatpush1.bf16.msra.mxu0 %v2812
    %2857 = vmatprep.subr.bf16.mxu0 0
    %2858 = vmatpush1.bf16.msra.mxu0 %v2813
    %2859 = vmatprep.subr.bf16.mxu0 0
    %2860 = vmatpush1.bf16.msra.mxu0 %v2814
    %2861 = vmatprep.subr.bf16.mxu0 0
    %2862 = vmatpush1.bf16.msra.mxu0 %v2815
    %2863 = vmatprep.subr.bf16.mxu0 0
    %2864 = vmatpush1.bf16.msra.mxu0 %v2816
    %2865 = vmatprep.mubr.bf16.mxu0 %v2703
    %2866 = vmatmul.mubr.bf16.gmra.mrb[0].mxu0 %v2702
    %v2867 = vpop.f32.mrb[0].mxu0
    %v2868 = vadd.f32 0.0, %v2867
    %v2869 = vpop.f32.mrb[0].mxu0
    %v2870 = vpop.f32.mrb[0].mxu0
    %v2871 = vpop.f32.mrb[0].mxu0
    %2872 = vdwg.mxu0
    %v2873 = vadd.f32 %v2695, %v2868
    %v2874 = vld [vmem:[#allocation2 + $0x30] sm:$0xc]
    %v2875 = vld [vmem:[#allocation2 + $0x38] sm:$0xc]
    %v2876 = vadd.f32 %v2874, %v502
    %v2877 = vadd.f32 %v2875, %v506
    %v2878 = vmax.f32 %v2876, 0.0
    %v2879 = vmax.f32 %v2877, 0.0
    %v2880 = vpack.c.bf16 %v2878, %v2878
    %v2881 = vpack.c.bf16 %v2879, %v2879
    %s2882 = scalar_lea.vmem [#allocation3], 1664
    %v2883 = vld [vmem:[%s2882] sm:$0xf]
    %v2884 = vld [vmem:[%s2882 + $0x4] sm:$0xf]
    %v2885 = vld [vmem:[%s2882 + $0x8] sm:$0xf]
    %v2886 = vld [vmem:[%s2882 + $0xc] sm:$0xf]
    %v2887 = vld [vmem:[%s2882 + $0x10] sm:$0xf]
    %v2888 = vld [vmem:[%s2882 + $0x14] sm:$0xf]
    %v2889 = vld [vmem:[%s2882 + $0x18] sm:$0xf]
    %v2890 = vld [vmem:[%s2882 + $0x1c] sm:$0xf]
    %v2891 = vld [vmem:[%s2882 + $0x20] sm:$0xf]
    %v2892 = vld [vmem:[%s2882 + $0x24] sm:$0xf]
    %v2893 = vld [vmem:[%s2882 + $0x28] sm:$0xf]
    %v2894 = vld [vmem:[%s2882 + $0x2c] sm:$0xf]
    %v2895 = vld [vmem:[%s2882 + $0x30] sm:$0xf]
    %v2896 = vld [vmem:[%s2882 + $0x34] sm:$0xf]
    %v2897 = vld [vmem:[%s2882 + $0x38] sm:$0xf]
    %v2898 = vld [vmem:[%s2882 + $0x3c] sm:$0xf]
    %v2899 = vld [vmem:[%s2882 + $0x40] sm:$0xf]
    %v2900 = vld [vmem:[%s2882 + $0x44] sm:$0xf]
    %v2901 = vld [vmem:[%s2882 + $0x48] sm:$0xf]
    %v2902 = vld [vmem:[%s2882 + $0x4c] sm:$0xf]
    %v2903 = vld [vmem:[%s2882 + $0x50] sm:$0xf]
    %v2904 = vld [vmem:[%s2882 + $0x54] sm:$0xf]
    %v2905 = vld [vmem:[%s2882 + $0x58] sm:$0xf]
    %v2906 = vld [vmem:[%s2882 + $0x5c] sm:$0xf]
    %v2907 = vld [vmem:[%s2882 + $0x60] sm:$0xf]
    %v2908 = vld [vmem:[%s2882 + $0x64] sm:$0xf]
    %v2909 = vld [vmem:[%s2882 + $0x68] sm:$0xf]
    %v2910 = vld [vmem:[%s2882 + $0x6c] sm:$0xf]
    %v2911 = vld [vmem:[%s2882 + $0x70] sm:$0xf]
    %v2912 = vld [vmem:[%s2882 + $0x74] sm:$0xf]
    %v2913 = vld [vmem:[%s2882 + $0x78] sm:$0xf]
    %v2914 = vld [vmem:[%s2882 + $0x7c] sm:$0xf]
    %v2917 = vrot.slane %v2880, 1
    %v2918 = vrot.slane %v2881, 1
    %v2953 = vunpack.c.l.b16 %v2883
    %v2954 = vunpack.c.l.b16 %v2884
    %v2955 = vunpack.c.l.b16 %v2885
    %v2956 = vunpack.c.l.b16 %v2886
    %v2957 = vunpack.c.l.b16 %v2887
    %v2958 = vunpack.c.l.b16 %v2888
    %v2959 = vunpack.c.l.b16 %v2889
    %v2960 = vunpack.c.l.b16 %v2890
    %v2961 = vunpack.c.l.b16 %v2891
    %v2962 = vunpack.c.l.b16 %v2892
    %v2963 = vunpack.c.l.b16 %v2893
    %v2964 = vunpack.c.l.b16 %v2894
    %v2965 = vunpack.c.l.b16 %v2895
    %v2966 = vunpack.c.l.b16 %v2896
    %v2967 = vunpack.c.l.b16 %v2897
    %v2968 = vunpack.c.l.b16 %v2898
    %v2969 = vunpack.c.l.b16 %v2899
    %v2970 = vunpack.c.l.b16 %v2900
    %v2971 = vunpack.c.l.b16 %v2901
    %v2972 = vunpack.c.l.b16 %v2902
    %v2973 = vunpack.c.l.b16 %v2903
    %v2974 = vunpack.c.l.b16 %v2904
    %v2975 = vunpack.c.l.b16 %v2905
    %v2976 = vunpack.c.l.b16 %v2906
    %v2977 = vunpack.c.l.b16 %v2907
    %v2978 = vunpack.c.l.b16 %v2908
    %v2979 = vunpack.c.l.b16 %v2909
    %v2980 = vunpack.c.l.b16 %v2910
    %v2981 = vunpack.c.l.b16 %v2911
    %v2982 = vunpack.c.l.b16 %v2912
    %v2983 = vunpack.c.l.b16 %v2913
    %v2984 = vunpack.c.l.b16 %v2914
    %v2985 = vpack.c.b16 %v2954, %v2953
    %v2986 = vpack.c.b16 %v2956, %v2955
    %v2987 = vpack.c.b16 %v2958, %v2957
    %v2988 = vpack.c.b16 %v2960, %v2959
    %v2989 = vpack.c.b16 %v2962, %v2961
    %v2990 = vpack.c.b16 %v2964, %v2963
    %v2991 = vpack.c.b16 %v2966, %v2965
    %v2992 = vpack.c.b16 %v2968, %v2967
    %v2993 = vpack.c.b16 %v2970, %v2969
    %v2994 = vpack.c.b16 %v2972, %v2971
    %v2995 = vpack.c.b16 %v2974, %v2973
    %v2996 = vpack.c.b16 %v2976, %v2975
    %v2997 = vpack.c.b16 %v2978, %v2977
    %v2998 = vpack.c.b16 %v2980, %v2979
    %v2999 = vpack.c.b16 %v2982, %v2981
    %v3000 = vpack.c.b16 %v2984, %v2983
    %3017 = vmatprep.subr.bf16.mxu0 0
    %3018 = vmatpush1.bf16.msra.mxu0 %v2985
    %3019 = vmatprep.subr.bf16.mxu0 0
    %3020 = vmatpush1.bf16.msra.mxu0 %v2986
    %3021 = vmatprep.subr.bf16.mxu0 0
    %3022 = vmatpush1.bf16.msra.mxu0 %v2987
    %3023 = vmatprep.subr.bf16.mxu0 0
    %3024 = vmatpush1.bf16.msra.mxu0 %v2988
    %3025 = vmatprep.subr.bf16.mxu0 0
    %3026 = vmatpush1.bf16.msra.mxu0 %v2989
    %3027 = vmatprep.subr.bf16.mxu0 0
    %3028 = vmatpush1.bf16.msra.mxu0 %v2990
    %3029 = vmatprep.subr.bf16.mxu0 0
    %3030 = vmatpush1.bf16.msra.mxu0 %v2991
    %3031 = vmatprep.subr.bf16.mxu0 0
    %3032 = vmatpush1.bf16.msra.mxu0 %v2992
    %3033 = vmatprep.subr.bf16.mxu0 0
    %3034 = vmatpush1.bf16.msra.mxu0 %v2993
    %3035 = vmatprep.subr.bf16.mxu0 0
    %3036 = vmatpush1.bf16.msra.mxu0 %v2994
    %3037 = vmatprep.subr.bf16.mxu0 0
    %3038 = vmatpush1.bf16.msra.mxu0 %v2995
    %3039 = vmatprep.subr.bf16.mxu0 0
    %3040 = vmatpush1.bf16.msra.mxu0 %v2996
    %3041 = vmatprep.subr.bf16.mxu0 0
    %3042 = vmatpush1.bf16.msra.mxu0 %v2997
    %3043 = vmatprep.subr.bf16.mxu0 0
    %3044 = vmatpush1.bf16.msra.mxu0 %v2998
    %3045 = vmatprep.subr.bf16.mxu0 0
    %3046 = vmatpush1.bf16.msra.mxu0 %v2999
    %3047 = vmatprep.subr.bf16.mxu0 0
    %3048 = vmatpush1.bf16.msra.mxu0 %v3000
    %3049 = vmatprep.mubr.bf16.mxu0 %v2918
    %3050 = vmatmul.mubr.bf16.gmra.mrb[0].mxu0 %v2917
    %v3051 = vpop.f32.mrb[0].mxu0
    %v3052 = vadd.f32 0.0, %v3051
    %v3053 = vpop.f32.mrb[0].mxu0
    %v3054 = vpop.f32.mrb[0].mxu0
    %v3055 = vpop.f32.mrb[0].mxu0
    %3056 = vdwg.mxu0
    %v3057 = vadd.f32 %v2873, %v3052
    %v3058 = vld [vmem:[#allocation2 + $0x30] sm:$0x30]
    %v3059 = vld [vmem:[#allocation2 + $0x38] sm:$0x30]
    %v3060 = vadd.f32 %v3058, %v502
    %v3061 = vadd.f32 %v3059, %v506
    %v3062 = vmax.f32 %v3060, 0.0
    %v3063 = vmax.f32 %v3061, 0.0
    %v3064 = vpack.c.bf16 %v3062, %v3062
    %v3065 = vpack.c.bf16 %v3063, %v3063
    %s3066 = scalar_lea.vmem [#allocation3], 1792
    %v3067 = vld [vmem:[%s3066] sm:$0xf]
    %v3068 = vld [vmem:[%s3066 + $0x4] sm:$0xf]
    %v3069 = vld [vmem:[%s3066 + $0x8] sm:$0xf]
    %v3070 = vld [vmem:[%s3066 + $0xc] sm:$0xf]
    %v3071 = vld [vmem:[%s3066 + $0x10] sm:$0xf]
    %v3072 = vld [vmem:[%s3066 + $0x14] sm:$0xf]
    %v3073 = vld [vmem:[%s3066 + $0x18] sm:$0xf]
    %v3074 = vld [vmem:[%s3066 + $0x1c] sm:$0xf]
    %v3075 = vld [vmem:[%s3066 + $0x20] sm:$0xf]
    %v3076 = vld [vmem:[%s3066 + $0x24] sm:$0xf]
    %v3077 = vld [vmem:[%s3066 + $0x28] sm:$0xf]
    %v3078 = vld [vmem:[%s3066 + $0x2c] sm:$0xf]
    %v3079 = vld [vmem:[%s3066 + $0x30] sm:$0xf]
    %v3080 = vld [vmem:[%s3066 + $0x34] sm:$0xf]
    %v3081 = vld [vmem:[%s3066 + $0x38] sm:$0xf]
    %v3082 = vld [vmem:[%s3066 + $0x3c] sm:$0xf]
    %v3083 = vld [vmem:[%s3066 + $0x40] sm:$0xf]
    %v3084 = vld [vmem:[%s3066 + $0x44] sm:$0xf]
    %v3085 = vld [vmem:[%s3066 + $0x48] sm:$0xf]
    %v3086 = vld [vmem:[%s3066 + $0x4c] sm:$0xf]
    %v3087 = vld [vmem:[%s3066 + $0x50] sm:$0xf]
    %v3088 = vld [vmem:[%s3066 + $0x54] sm:$0xf]
    %v3089 = vld [vmem:[%s3066 + $0x58] sm:$0xf]
    %v3090 = vld [vmem:[%s3066 + $0x5c] sm:$0xf]
    %v3091 = vld [vmem:[%s3066 + $0x60] sm:$0xf]
    %v3092 = vld [vmem:[%s3066 + $0x64] sm:$0xf]
    %v3093 = vld [vmem:[%s3066 + $0x68] sm:$0xf]
    %v3094 = vld [vmem:[%s3066 + $0x6c] sm:$0xf]
    %v3095 = vld [vmem:[%s3066 + $0x70] sm:$0xf]
    %v3096 = vld [vmem:[%s3066 + $0x74] sm:$0xf]
    %v3097 = vld [vmem:[%s3066 + $0x78] sm:$0xf]
    %v3098 = vld [vmem:[%s3066 + $0x7c] sm:$0xf]
    %v3101 = vrot.slane %v3064, 2
    %v3102 = vrot.slane %v3065, 2
    %v3137 = vunpack.c.l.b16 %v3067
    %v3138 = vunpack.c.l.b16 %v3068
    %v3139 = vunpack.c.l.b16 %v3069
    %v3140 = vunpack.c.l.b16 %v3070
    %v3141 = vunpack.c.l.b16 %v3071
    %v3142 = vunpack.c.l.b16 %v3072
    %v3143 = vunpack.c.l.b16 %v3073
    %v3144 = vunpack.c.l.b16 %v3074
    %v3145 = vunpack.c.l.b16 %v3075
    %v3146 = vunpack.c.l.b16 %v3076
    %v3147 = vunpack.c.l.b16 %v3077
    %v3148 = vunpack.c.l.b16 %v3078
    %v3149 = vunpack.c.l.b16 %v3079
    %v3150 = vunpack.c.l.b16 %v3080
    %v3151 = vunpack.c.l.b16 %v3081
    %v3152 = vunpack.c.l.b16 %v3082
    %v3153 = vunpack.c.l.b16 %v3083
    %v3154 = vunpack.c.l.b16 %v3084
    %v3155 = vunpack.c.l.b16 %v3085
    %v3156 = vunpack.c.l.b16 %v3086
    %v3157 = vunpack.c.l.b16 %v3087
    %v3158 = vunpack.c.l.b16 %v3088
    %v3159 = vunpack.c.l.b16 %v3089
    %v3160 = vunpack.c.l.b16 %v3090
    %v3161 = vunpack.c.l.b16 %v3091
    %v3162 = vunpack.c.l.b16 %v3092
    %v3163 = vunpack.c.l.b16 %v3093
    %v3164 = vunpack.c.l.b16 %v3094
    %v3165 = vunpack.c.l.b16 %v3095
    %v3166 = vunpack.c.l.b16 %v3096
    %v3167 = vunpack.c.l.b16 %v3097
    %v3168 = vunpack.c.l.b16 %v3098
    %v3169 = vpack.c.b16 %v3138, %v3137
    %v3170 = vpack.c.b16 %v3140, %v3139
    %v3171 = vpack.c.b16 %v3142, %v3141
    %v3172 = vpack.c.b16 %v3144, %v3143
    %v3173 = vpack.c.b16 %v3146, %v3145
    %v3174 = vpack.c.b16 %v3148, %v3147
    %v3175 = vpack.c.b16 %v3150, %v3149
    %v3176 = vpack.c.b16 %v3152, %v3151
    %v3177 = vpack.c.b16 %v3154, %v3153
    %v3178 = vpack.c.b16 %v3156, %v3155
    %v3179 = vpack.c.b16 %v3158, %v3157
    %v3180 = vpack.c.b16 %v3160, %v3159
    %v3181 = vpack.c.b16 %v3162, %v3161
    %v3182 = vpack.c.b16 %v3164, %v3163
    %v3183 = vpack.c.b16 %v3166, %v3165
    %v3184 = vpack.c.b16 %v3168, %v3167
    %3201 = vmatprep.subr.bf16.mxu0 0
    %3202 = vmatpush1.bf16.msra.mxu0 %v3169
    %3203 = vmatprep.subr.bf16.mxu0 0
    %3204 = vmatpush1.bf16.msra.mxu0 %v3170
    %3205 = vmatprep.subr.bf16.mxu0 0
    %3206 = vmatpush1.bf16.msra.mxu0 %v3171
    %3207 = vmatprep.subr.bf16.mxu0 0
    %3208 = vmatpush1.bf16.msra.mxu0 %v3172
    %3209 = vmatprep.subr.bf16.mxu0 0
    %3210 = vmatpush1.bf16.msra.mxu0 %v3173
    %3211 = vmatprep.subr.bf16.mxu0 0
    %3212 = vmatpush1.bf16.msra.mxu0 %v3174
    %3213 = vmatprep.subr.bf16.mxu0 0
    %3214 = vmatpush1.bf16.msra.mxu0 %v3175
    %3215 = vmatprep.subr.bf16.mxu0 0
    %3216 = vmatpush1.bf16.msra.mxu0 %v3176
    %3217 = vmatprep.subr.bf16.mxu0 0
    %3218 = vmatpush1.bf16.msra.mxu0 %v3177
    %3219 = vmatprep.subr.bf16.mxu0 0
    %3220 = vmatpush1.bf16.msra.mxu0 %v3178
    %3221 = vmatprep.subr.bf16.mxu0 0
    %3222 = vmatpush1.bf16.msra.mxu0 %v3179
    %3223 = vmatprep.subr.bf16.mxu0 0
    %3224 = vmatpush1.bf16.msra.mxu0 %v3180
    %3225 = vmatprep.subr.bf16.mxu0 0
    %3226 = vmatpush1.bf16.msra.mxu0 %v3181
    %3227 = vmatprep.subr.bf16.mxu0 0
    %3228 = vmatpush1.bf16.msra.mxu0 %v3182
    %3229 = vmatprep.subr.bf16.mxu0 0
    %3230 = vmatpush1.bf16.msra.mxu0 %v3183
    %3231 = vmatprep.subr.bf16.mxu0 0
    %3232 = vmatpush1.bf16.msra.mxu0 %v3184
    %3233 = vmatprep.mubr.bf16.mxu0 %v3102
    %3234 = vmatmul.mubr.bf16.gmra.mrb[0].mxu0 %v3101
    %v3235 = vpop.f32.mrb[0].mxu0
    %v3236 = vadd.f32 0.0, %v3235
    %v3237 = vpop.f32.mrb[0].mxu0
    %v3238 = vpop.f32.mrb[0].mxu0
    %v3239 = vpop.f32.mrb[0].mxu0
    %3240 = vdwg.mxu0
    %v3241 = vadd.f32 %v3057, %v3236
    %v3242 = vld [vmem:[#allocation2 + $0x30] sm:$0xc0]
    %v3243 = vld [vmem:[#allocation2 + $0x38] sm:$0xc0]
    %v3244 = vadd.f32 %v3242, %v502
    %v3245 = vadd.f32 %v3243, %v506
    %v3246 = vmax.f32 %v3244, 0.0
    %v3247 = vmax.f32 %v3245, 0.0
    %v3248 = vpack.c.bf16 %v3246, %v3246
    %v3249 = vpack.c.bf16 %v3247, %v3247
    %s3250 = scalar_lea.vmem [#allocation3], 1920
    %v3251 = vld [vmem:[%s3250] sm:$0xf]
    %v3252 = vld [vmem:[%s3250 + $0x4] sm:$0xf]
    %v3253 = vld [vmem:[%s3250 + $0x8] sm:$0xf]
    %v3254 = vld [vmem:[%s3250 + $0xc] sm:$0xf]
    %v3255 = vld [vmem:[%s3250 + $0x10] sm:$0xf]
    %v3256 = vld [vmem:[%s3250 + $0x14] sm:$0xf]
    %v3257 = vld [vmem:[%s3250 + $0x18] sm:$0xf]
    %v3258 = vld [vmem:[%s3250 + $0x1c] sm:$0xf]
    %v3259 = vld [vmem:[%s3250 + $0x20] sm:$0xf]
    %v3260 = vld [vmem:[%s3250 + $0x24] sm:$0xf]
    %v3261 = vld [vmem:[%s3250 + $0x28] sm:$0xf]
    %v3262 = vld [vmem:[%s3250 + $0x2c] sm:$0xf]
    %v3263 = vld [vmem:[%s3250 + $0x30] sm:$0xf]
    %v3264 = vld [vmem:[%s3250 + $0x34] sm:$0xf]
    %v3265 = vld [vmem:[%s3250 + $0x38] sm:$0xf]
    %v3266 = vld [vmem:[%s3250 + $0x3c] sm:$0xf]
    %v3267 = vld [vmem:[%s3250 + $0x40] sm:$0xf]
    %v3268 = vld [vmem:[%s3250 + $0x44] sm:$0xf]
    %v3269 = vld [vmem:[%s3250 + $0x48] sm:$0xf]
    %v3270 = vld [vmem:[%s3250 + $0x4c] sm:$0xf]
    %v3271 = vld [vmem:[%s3250 + $0x50] sm:$0xf]
    %v3272 = vld [vmem:[%s3250 + $0x54] sm:$0xf]
    %v3273 = vld [vmem:[%s3250 + $0x58] sm:$0xf]
    %v3274 = vld [vmem:[%s3250 + $0x5c] sm:$0xf]
    %v3275 = vld [vmem:[%s3250 + $0x60] sm:$0xf]
    %v3276 = vld [vmem:[%s3250 + $0x64] sm:$0xf]
    %v3277 = vld [vmem:[%s3250 + $0x68] sm:$0xf]
    %v3278 = vld [vmem:[%s3250 + $0x6c] sm:$0xf]
    %v3279 = vld [vmem:[%s3250 + $0x70] sm:$0xf]
    %v3280 = vld [vmem:[%s3250 + $0x74] sm:$0xf]
    %v3281 = vld [vmem:[%s3250 + $0x78] sm:$0xf]
    %v3282 = vld [vmem:[%s3250 + $0x7c] sm:$0xf]
    %v3285 = vrot.slane %v3248, 3
    %v3286 = vrot.slane %v3249, 3
    %v3321 = vunpack.c.l.b16 %v3251
    %v3322 = vunpack.c.l.b16 %v3252
    %v3323 = vunpack.c.l.b16 %v3253
    %v3324 = vunpack.c.l.b16 %v3254
    %v3325 = vunpack.c.l.b16 %v3255
    %v3326 = vunpack.c.l.b16 %v3256
    %v3327 = vunpack.c.l.b16 %v3257
    %v3328 = vunpack.c.l.b16 %v3258
    %v3329 = vunpack.c.l.b16 %v3259
    %v3330 = vunpack.c.l.b16 %v3260
    %v3331 = vunpack.c.l.b16 %v3261
    %v3332 = vunpack.c.l.b16 %v3262
    %v3333 = vunpack.c.l.b16 %v3263
    %v3334 = vunpack.c.l.b16 %v3264
    %v3335 = vunpack.c.l.b16 %v3265
    %v3336 = vunpack.c.l.b16 %v3266
    %v3337 = vunpack.c.l.b16 %v3267
    %v3338 = vunpack.c.l.b16 %v3268
    %v3339 = vunpack.c.l.b16 %v3269
    %v3340 = vunpack.c.l.b16 %v3270
    %v3341 = vunpack.c.l.b16 %v3271
    %v3342 = vunpack.c.l.b16 %v3272
    %v3343 = vunpack.c.l.b16 %v3273
    %v3344 = vunpack.c.l.b16 %v3274
    %v3345 = vunpack.c.l.b16 %v3275
    %v3346 = vunpack.c.l.b16 %v3276
    %v3347 = vunpack.c.l.b16 %v3277
    %v3348 = vunpack.c.l.b16 %v3278
    %v3349 = vunpack.c.l.b16 %v3279
    %v3350 = vunpack.c.l.b16 %v3280
    %v3351 = vunpack.c.l.b16 %v3281
    %v3352 = vunpack.c.l.b16 %v3282
    %v3353 = vpack.c.b16 %v3322, %v3321
    %v3354 = vpack.c.b16 %v3324, %v3323
    %v3355 = vpack.c.b16 %v3326, %v3325
    %v3356 = vpack.c.b16 %v3328, %v3327
    %v3357 = vpack.c.b16 %v3330, %v3329
    %v3358 = vpack.c.b16 %v3332, %v3331
    %v3359 = vpack.c.b16 %v3334, %v3333
    %v3360 = vpack.c.b16 %v3336, %v3335
    %v3361 = vpack.c.b16 %v3338, %v3337
    %v3362 = vpack.c.b16 %v3340, %v3339
    %v3363 = vpack.c.b16 %v3342, %v3341
    %v3364 = vpack.c.b16 %v3344, %v3343
    %v3365 = vpack.c.b16 %v3346, %v3345
    %v3366 = vpack.c.b16 %v3348, %v3347
    %v3367 = vpack.c.b16 %v3350, %v3349
    %v3368 = vpack.c.b16 %v3352, %v3351
    %3385 = vmatprep.subr.bf16.mxu0 0
    %3386 = vmatpush1.bf16.msra.mxu0 %v3353
    %3387 = vmatprep.subr.bf16.mxu0 0
    %3388 = vmatpush1.bf16.msra.mxu0 %v3354
    %3389 = vmatprep.subr.bf16.mxu0 0
    %3390 = vmatpush1.bf16.msra.mxu0 %v3355
    %3391 = vmatprep.subr.bf16.mxu0 0
    %3392 = vmatpush1.bf16.msra.mxu0 %v3356
    %3393 = vmatprep.subr.bf16.mxu0 0
    %3394 = vmatpush1.bf16.msra.mxu0 %v3357
    %3395 = vmatprep.subr.bf16.mxu0 0
    %3396 = vmatpush1.bf16.msra.mxu0 %v3358
    %3397 = vmatprep.subr.bf16.mxu0 0
    %3398 = vmatpush1.bf16.msra.mxu0 %v3359
    %3399 = vmatprep.subr.bf16.mxu0 0
    %3400 = vmatpush1.bf16.msra.mxu0 %v3360
    %3401 = vmatprep.subr.bf16.mxu0 0
    %3402 = vmatpush1.bf16.msra.mxu0 %v3361
    %3403 = vmatprep.subr.bf16.mxu0 0
    %3404 = vmatpush1.bf16.msra.mxu0 %v3362
    %3405 = vmatprep.subr.bf16.mxu0 0
    %3406 = vmatpush1.bf16.msra.mxu0 %v3363
    %3407 = vmatprep.subr.bf16.mxu0 0
    %3408 = vmatpush1.bf16.msra.mxu0 %v3364
    %3409 = vmatprep.subr.bf16.mxu0 0
    %3410 = vmatpush1.bf16.msra.mxu0 %v3365
    %3411 = vmatprep.subr.bf16.mxu0 0
    %3412 = vmatpush1.bf16.msra.mxu0 %v3366
    %3413 = vmatprep.subr.bf16.mxu0 0
    %3414 = vmatpush1.bf16.msra.mxu0 %v3367
    %3415 = vmatprep.subr.bf16.mxu0 0
    %3416 = vmatpush1.bf16.msra.mxu0 %v3368
    %3417 = vmatprep.mubr.bf16.mxu0 %v3286
    %3418 = vmatmul.mubr.bf16.gmra.mrb[0].mxu0 %v3285
    %v3419 = vpop.f32.mrb[0].mxu0
    %v3420 = vadd.f32 0.0, %v3419
    %v3421 = vpop.f32.mrb[0].mxu0
    %v3422 = vpop.f32.mrb[0].mxu0
    %v3423 = vpop.f32.mrb[0].mxu0
    %3424 = vdwg.mxu0
    %v3425 = vadd.f32 %v3241, %v3420
    %v3426 = vmax.f32 %v3425, 0.0
    %v3427 = vpack.c.bf16 %v3426, %v3426
    %v3428 = vld [vmem:[%s5] sm:$0xf]
    %v3429 = vld [vmem:[%s5 + $0x4] sm:$0xf]
    %v3430 = vld [vmem:[%s5 + $0x8] sm:$0xf]
    %v3431 = vld [vmem:[%s5 + $0xc] sm:$0xf]
    %v3432 = vld [vmem:[%s5 + $0x10] sm:$0xf]
    %v3433 = vld [vmem:[%s5 + $0x14] sm:$0xf]
    %v3434 = vld [vmem:[%s5 + $0x18] sm:$0xf]
    %v3435 = vld [vmem:[%s5 + $0x1c] sm:$0xf]
    %v3436 = vld [vmem:[%s5 + $0x20] sm:$0xf]
    %v3437 = vld [vmem:[%s5 + $0x24] sm:$0xf]
    %v3438 = vld [vmem:[%s5 + $0x28] sm:$0xf]
    %v3439 = vld [vmem:[%s5 + $0x2c] sm:$0xf]
    %v3440 = vld [vmem:[%s5 + $0x30] sm:$0xf]
    %v3441 = vld [vmem:[%s5 + $0x34] sm:$0xf]
    %v3442 = vld [vmem:[%s5 + $0x38] sm:$0xf]
    %v3443 = vld [vmem:[%s5 + $0x3c] sm:$0xf]
    %v3444 = vld [vmem:[%s6] sm:$0x1]
    %v3446 = vlaneseq
    %v3447 = vshrl.u32 %v3446, 7
    %v3448 = vsub.s32 0, %v3447
    %v3449 = vrot.slane %v3444, %v3448
    %v3467 = vunpack.c.l.b16 %v3428
    %v3468 = vunpack.c.l.b16 %v3429
    %v3469 = vunpack.c.l.b16 %v3430
    %v3470 = vunpack.c.l.b16 %v3431
    %v3471 = vunpack.c.l.b16 %v3432
    %v3472 = vunpack.c.l.b16 %v3433
    %v3473 = vunpack.c.l.b16 %v3434
    %v3474 = vunpack.c.l.b16 %v3435
    %v3475 = vunpack.c.l.b16 %v3436
    %v3476 = vunpack.c.l.b16 %v3437
    %v3477 = vunpack.c.l.b16 %v3438
    %v3478 = vunpack.c.l.b16 %v3439
    %v3479 = vunpack.c.l.b16 %v3440
    %v3480 = vunpack.c.l.b16 %v3441
    %v3481 = vunpack.c.l.b16 %v3442
    %v3482 = vunpack.c.l.b16 %v3443
    %v3483 = vpack.c.b16 %v3468, %v3467
    %v3484 = vpack.c.b16 %v3470, %v3469
    %v3485 = vpack.c.b16 %v3472, %v3471
    %v3486 = vpack.c.b16 %v3474, %v3473
    %v3487 = vpack.c.b16 %v3476, %v3475
    %v3488 = vpack.c.b16 %v3478, %v3477
    %v3489 = vpack.c.b16 %v3480, %v3479
    %v3490 = vpack.c.b16 %v3482, %v3481
    %3499 = vmatprep.subr.bf16.mxu0 0
    %3500 = vmatpush1.bf16.msra.mxu0 %v3483
    %3501 = vmatprep.subr.bf16.mxu0 0
    %3502 = vmatpush1.bf16.msra.mxu0 %v3484
    %3503 = vmatprep.subr.bf16.mxu0 0
    %3504 = vmatpush1.bf16.msra.mxu0 %v3485
    %3505 = vmatprep.subr.bf16.mxu0 0
    %3506 = vmatpush1.bf16.msra.mxu0 %v3486
    %3507 = vmatprep.subr.bf16.mxu0 0
    %3508 = vmatpush1.bf16.msra.mxu0 %v3487
    %3509 = vmatprep.subr.bf16.mxu0 0
    %3510 = vmatpush1.bf16.msra.mxu0 %v3488
    %3511 = vmatprep.subr.bf16.mxu0 0
    %3512 = vmatpush1.bf16.msra.mxu0 %v3489
    %3513 = vmatprep.subr.bf16.mxu0 0
    %3514 = vmatpush1.bf16.msra.mxu0 %v3490
    %3515 = vmatprep.subr.bf16.mxu0 0
    %3516 = vmatpush1.bf16.msra.mxu0 0
    %3517 = vmatprep.subr.bf16.mxu0 0
    %3518 = vmatpush1.bf16.msra.mxu0 0
    %3519 = vmatprep.subr.bf16.mxu0 0
    %3520 = vmatpush1.bf16.msra.mxu0 0
    %3521 = vmatprep.subr.bf16.mxu0 0
    %3522 = vmatpush1.bf16.msra.mxu0 0
    %3523 = vmatprep.subr.bf16.mxu0 0
    %3524 = vmatpush1.bf16.msra.mxu0 0
    %3525 = vmatprep.subr.bf16.mxu0 0
    %3526 = vmatpush1.bf16.msra.mxu0 0
    %3527 = vmatprep.subr.bf16.mxu0 0
    %3528 = vmatpush1.bf16.msra.mxu0 0
    %3529 = vmatprep.subr.bf16.mxu0 0
    %3530 = vmatpush1.bf16.msra.mxu0 0
    %3531 = vmatprep.mubr.bf16.mxu0 0
    %3532 = vmatmul.mubr.bf16.gmra.mrb[0].mxu0 %v3427
    %v3533 = vpop.f32.mrb[0].mxu0
    %v3534 = vadd.f32 %v3449, %v3533
    %v3535 = vpop.f32.mrb[0].mxu0
    %v3536 = vpop.f32.mrb[0].mxu0
    %v3537 = vpop.f32.mrb[0].mxu0
    %3538 = vdwg.mxu0
    %3539 = vst [vmem:[%s7] sm:$0x3] %v3534
    // Predicated region
    $region34: #{actor_critic_forward.1} parent=1 // pred_check
      _
    $region35: #{actor_critic_forward.1} parent=1 // pred_check_branch
      %3541 = sbr.rel (0) target = $region37
    $region36: #{actor_critic_forward.1} parent=1 // pred_region
      _
    $region37: #{actor_critic_forward.1} parent=1 // pred_fallthru
      _
    // Predicated region
    $region38: #{actor_critic_forward.1} parent=1 // pred_check
      _
    $region39: #{actor_critic_forward.1} parent=1 // pred_check_branch
      %3543 = sbr.rel (0) target = $region41
    $region40: #{actor_critic_forward.1} parent=1 // pred_region
      _
    $region41: #{actor_critic_forward.1} parent=1 // pred_fallthru
      _
    %3544 = vsyncpa [#allocation4], 1

</llo_original>
